<compile_context>
chip_gen: v6e
topology: v6e:2x2x1
jax: 0.10.0
libtpu: 0.0.40
codegen_flags: <defaults>
</compile_context>

<pallas_src>
import numpy as np
import jax
import jax.numpy as jnp
from jax import lax
from jax.experimental import pallas as pl
from jax.experimental.pallas import tpu as pltpu

_HIGHEST = lax.Precision.HIGHEST


# ----------------------------------------------------------------------------
# fixed perception filters (torch conv2d = cross-correlation, circular pad)
# ----------------------------------------------------------------------------
def _filters_np():
    ident = np.array([[0., 0., 0.], [0., 1., 0.], [0., 0., 0.]], np.float32)
    sob_x = np.array([[-1., 0., 1.], [-2., 0., 2.], [-1., 0., 1.]], np.float32)
    lap = np.array([[1., 2., 1.], [2., -12., 2.], [1., 2., 1.]], np.float32)
    return np.stack([ident, sob_x, sob_x.T, lap])            # (4, 3, 3)


def _fold_perception(w1_t, depth):
    """Fold the fixed 3x3 filters into conv1: (HID, 4D) -> (HID, 9D).

    Output input-index ordering is (ki*3 + kj)*D + c, matching the im2col rows
    built inside the kernel (ki/kj = row/col tap index, 0..2).
    """
    hid = w1_t.shape[0]
    filt = jnp.asarray(_filters_np())                        # (4, 3, 3)
    w1_r = w1_t.reshape(hid, depth, 4)                       # (HID, c, f); torch ch = c*4+f
    w_eff = jnp.einsum('hcf,fij->hijc', w1_r, filt, precision=_HIGHEST)
    return w_eff.reshape(hid, 9 * depth)


# ----------------------------------------------------------------------------
# crop + 2x bilinear upsample (torch align_corners=False) as a dense matrix
# ----------------------------------------------------------------------------
def _axis_upsample_matrix(full, factor):
    inn = full // factor
    out = inn * factor
    assert out == full, "canvas size must be divisible by the scale factor"
    A = np.zeros((out, full), np.float32)                    # zero cols = crop
    scale = inn / out
    for o in range(out):
        src = max(scale * (o + 0.5) - 0.5, 0.0)
        i0 = min(int(np.floor(src)), inn - 1)
        i1 = min(i0 + 1, inn - 1)
        w1 = src - i0
        A[o, i0] += 1.0 - w1
        A[o, i1] += w1
    return A


def _crop_upsample_matrix(H, W, factor):
    """(HW_in, HW_out) matrix: x_new = x_flat @ M  (crop + bilinear upsample)."""
    Ah = _axis_upsample_matrix(H, factor)                    # (H_out, H_in)
    Aw = _axis_upsample_matrix(W, factor)                    # (W_out, W_in)
    # rows = input flat index i*W + j, cols = output flat index o*W + p
    return np.einsum('oi,pj->ijop', Ah, Aw).reshape(H * W, H * W)


# ----------------------------------------------------------------------------
# the fused kernel: all scales x all recursive iterations for one batch element
# ----------------------------------------------------------------------------
def _make_fused_kernel(n_iter, H, W, D, HID, compute_dtype):
    HW = H * W
    prec = _HIGHEST if np.dtype(compute_dtype) == np.dtype(np.float32) else None

    def kernel(x_ref, w1_ref, b1_ref, w2_ref, up_ref, temps_ref, state_ref):
        s = pl.program_id(1)

        # new batch element: (re)initialize the VMEM-resident state from x
        @pl.when(s == 0)
        def _():
            state_ref[...] = x_ref[...]

        w1 = w1_ref[...]                                     # (HID, 9D) compute dtype
        w2 = w2_ref[...]                                     # (D, HID)  compute dtype
        # hoisted out of the recursion loop (broadcast is not CSE'd by JAX)
        b1b = jnp.broadcast_to(b1_ref[...], (HID, HW))       # (HID, HW) f32

        # loop-invariant wrap-fix masks for the within-row circular shifts
        col = lax.broadcasted_iota(jnp.int32, (D, HW), 1) % W
        not_first = col != 0
        not_last = col != (W - 1)

        @pl.loop(0, n_iter)
        def _(it):
            x = state_ref[...]                               # (D, HW) f32 residual state
            xc = x.astype(compute_dtype)                     # cast once; taps in bf16
            # within-row circular left / right neighbors (2 rolls + wrap-fix each)
            xl = jnp.where(not_first, jnp.roll(xc, 1, axis=1),
                           jnp.roll(xc, -(W - 1), axis=1))   # x[i, (j-1) mod W]
            xr = jnp.where(not_last, jnp.roll(xc, -1, axis=1),
                           jnp.roll(xc, W - 1, axis=1))      # x[i, (j+1) mod W]
            mid = jnp.concatenate([xl, xc, xr], axis=0)      # (3D, HW): kj = 0,1,2 @ ki=1
            # vertical circular shifts are exact lane rolls by +/-W on the stack
            im2col = jnp.concatenate(
                [jnp.roll(mid, W, axis=1),                   # ki = 0 (row i-1)
                 mid,                                        # ki = 1 (row i)
                 jnp.roll(mid, -W, axis=1)],                 # ki = 2 (row i+1)
                axis=0)                                      # (9D, HW)
            hid = jnp.dot(w1, im2col, preferred_element_type=jnp.float32,
                          precision=prec)                    # (HID, HW) f32
            hid = jnp.maximum(hid + b1b, 0.0).astype(compute_dtype)
            out = jnp.dot(w2, hid, preferred_element_type=jnp.float32,
                          precision=prec)                    # (D, HW) f32
            state_ref[...] = x + out                         # residual update (f32)

        # emit this scale's result slab
        temps_ref[...] = state_ref[...]

        # between scales: crop + bilinear upsample as one MXU matmul on the state
        @pl.when(s < pl.num_programs(1) - 1)
        def _():
            state_ref[...] = jnp.dot(state_ref[...].astype(compute_dtype),
                                     up_ref[...],
                                     preferred_element_type=jnp.float32,
                                     precision=prec)

    return kernel


# ----------------------------------------------------------------------------
# full forward (mirrors RecursiveNN.forward) -- a single pallas_call
# ----------------------------------------------------------------------------
def recursive_nn_forward(x_nchw, params, scales, iter_per_res,
                         compute_dtype=jnp.bfloat16):
    B, D, H, W = x_nchw.shape
    HW = H * W
    S = len(scales)
    HID = params[0][0].shape[0]
    assert HW % 128 == 0 and D % 8 == 0, "need lane-dense H*W and sublane-aligned D"

    # stacked per-scale parameters (perception folded into conv1)
    w1_stack = jnp.stack([_fold_perception(p[0], D) for p in params]
                         ).astype(compute_dtype)             # (S, HID, 9D)
    b1_stack = jnp.stack([p[1].reshape(HID, 1) for p in params])   # (S, HID, 1) f32
    w2_stack = jnp.stack([p[2] for p in params]).astype(compute_dtype)  # (S, D, HID)

    ups = []
    for i in range(S):
        if i < S - 1:
            factor = scales[i + 1] // scales[i]
            ups.append(_crop_upsample_matrix(H, W, factor))
        else:
            ups.append(np.eye(HW, dtype=np.float32))         # unused (guarded by pl.when)
    up_stack = jnp.asarray(np.stack(ups)).astype(compute_dtype)    # (S, HW, HW)

    x_flat = x_nchw.astype(jnp.float32).reshape(B, D, HW)

    temps = pl.pallas_call(
        _make_fused_kernel(iter_per_res, H, W, D, HID, compute_dtype),
        out_shape=jax.ShapeDtypeStruct((S, B, D, HW), jnp.float32),
        grid=(B, S),
        in_specs=[
            pl.BlockSpec((None, D, HW), lambda b, s: (b, 0, 0)),        # state init
            pl.BlockSpec((None, HID, 9 * D), lambda b, s: (s, 0, 0)),   # folded conv1
            pl.BlockSpec((None, HID, 1), lambda b, s: (s, 0, 0)),       # conv1 bias
            pl.BlockSpec((None, D, HID), lambda b, s: (s, 0, 0)),       # conv2
            pl.BlockSpec((None, HW, HW), lambda b, s: (s, 0, 0)),       # upsample matrix
        ],
        out_specs=pl.BlockSpec((None, None, D, HW), lambda b, s: (s, b, 0, 0)),
        scratch_shapes=[pltpu.VMEM((D, HW), jnp.float32)],   # VMEM-resident state
        compiler_params=pltpu.CompilerParams(
            dimension_semantics=("parallel", "arbitrary")),  # batch across TCs on v7x
    )(x_flat, w1_stack, b1_stack, w2_stack, up_stack)

    return temps.reshape(S, B, D, H, W)


# ----------------------------------------------------------------------------
# independent torch-style reference (verification only)
# ----------------------------------------------------------------------------
def _upsample_indices(in_size, out_size):
    scale = in_size / out_size
    dst = jnp.arange(out_size, dtype=jnp.float32)
    src = jnp.maximum(scale * (dst + 0.5) - 0.5, 0.0)
    i0 = jnp.minimum(jnp.floor(src).astype(jnp.int32), in_size - 1)
    i1 = jnp.minimum(i0 + 1, in_size - 1)
    w1 = src - i0.astype(jnp.float32)
    return i0, i1, 1.0 - w1, w1


def bilinear_upsample_nchw(x, factor):
    B, C, Hin, Win = x.shape
    i0h, i1h, w0h, w1h = _upsample_indices(Hin, Hin * factor)
    i0w, i1w, w0w, w1w = _upsample_indices(Win, Win * factor)
    rows = (x[:, :, i0h, :] * w0h[None, None, :, None]
            + x[:, :, i1h, :] * w1h[None, None, :, None])
    return (rows[:, :, :, i0w] * w0w[None, None, None, :]
            + rows[:, :, :, i1w] * w1w[None, None, None, :])


def _ref_single_step(x, filters, w1_t, b1_t, w2_t):
    B, C, H, W = x.shape
    y = x.reshape(B * C, 1, H, W)
    y = jnp.pad(y, ((0, 0), (0, 0), (1, 1), (1, 1)), mode='wrap')
    y = lax.conv_general_dilated(y, filters[:, None, :, :], (1, 1), 'VALID',
                                 dimension_numbers=('NCHW', 'OIHW', 'NCHW'),
                                 precision=_HIGHEST)
    y = y.reshape(B, 4 * C, H, W)              # channel index = c*4 + f (torch order)
    hid = jnp.einsum('bkhw,nk->bnhw', y, w1_t,
                     precision=_HIGHEST) + b1_t[None, :, None, None]
    hid = jnp.maximum(hid, 0.0)
    out = jnp.einsum('bnhw,dn->bdhw', hid, w2_t, precision=_HIGHEST)
    return x + out


def reference_forward(x_nchw, params, scales, iter_per_res):
    B, D, H, W = x_nchw.shape
    filters = jnp.asarray(_filters_np())
    cur = x_nchw.astype(jnp.float32)
    outs = []
    for i in range(len(scales)):
        w1_t, b1_t, w2_t = params[i]
        for _ in range(iter_per_res):
            cur = _ref_single_step(cur, filters, w1_t, b1_t, w2_t)
        outs.append(cur)
        if i < len(scales) - 1:
            factor = scales[i + 1] // scales[i]
            cur = bilinear_upsample_nchw(cur[:, :, :H // factor, :W // factor],
                                         factor)
    return jnp.stack(outs, axis=0)


# ----------------------------------------------------------------------------
# deterministic parameter init in torch layout
# (per scale: Conv1x1(4D->96)+bias, Conv1x1(96->D) no bias)
# ----------------------------------------------------------------------------
def init_params(key, n_scales, depth, hidden=96):
    params = []
    for _ in range(n_scales):
        key, k1, k2, k3 = jax.random.split(key, 4)
        fan1 = 4 * depth
        w1_t = jax.random.uniform(k1, (hidden, 4 * depth), jnp.float32,
                                  -1.0, 1.0) / np.sqrt(fan1)
        b1_t = jax.random.uniform(k2, (hidden,), jnp.float32,
                                  -1.0, 1.0) / np.sqrt(fan1)
        w2_t = 0.3 * jax.random.uniform(k3, (depth, hidden), jnp.float32,
                                        -1.0, 1.0) / np.sqrt(hidden)
        params.append((w1_t, b1_t, w2_t))
    return params


if __name__ == "__main__":
    # module-consistent small shapes: batch=2, img_layer_depth=8, spatial=16
    B, D, H, W = 2, 8, 16, 16
    scales = [16, 32, 64]        # only the scale ratios (factor=2) enter forward
    iter_per_res = 3
    hidden = 96                  # hard-coded in the PyTorch module

    key = jax.random.PRNGKey(0)
    key, kx, kp = jax.random.split(key, 3)
    x = jax.random.uniform(kx, (B, D, H, W), jnp.float32)    # like torch.rand
    params = init_params(kp, len(scales), D, hidden)

    ref = jax.block_until_ready(
        reference_forward(x, params, scales, iter_per_res))

    out_f32 = jax.block_until_ready(
        recursive_nn_forward(x, params, scales, iter_per_res,
                             compute_dtype=jnp.float32))     # verification build
    out_bf16 = jax.block_until_ready(
        recursive_nn_forward(x, params, scales, iter_per_res,
                             compute_dtype=jnp.bfloat16))    # production build

    assert out_bf16.shape == (len(scales), B, D, H, W), out_bf16.shape
    mag = float(jnp.max(jnp.abs(ref))) + 1.0
    err_f32 = float(jnp.max(jnp.abs(out_f32 - ref)))
    err_bf16 = float(jnp.max(jnp.abs(out_bf16 - ref)))
    if err_f32 > 2e-3 * mag:                  # tight check for the f32 build
        raise AssertionError(f"f32 Pallas mismatch: {err_f32} (mag {mag})")
    if err_bf16 > 5e-2 * mag:                 # loose check for bf16 MXU build
        raise AssertionError(f"bf16 Pallas mismatch: {err_bf16} (mag {mag})")
    print("KERNEL_OK")
</pallas_src>

<mosaic_0001>
module attributes {stable_mosaic.version = 11 : i64} {
  func.func @kernel(%arg0: i32, %arg1: i32, %arg2: memref<1x8x256xf32, #tpu.memory_space<vmem>>, %arg3: memref<1x96x72xf32, #tpu.memory_space<vmem>>, %arg4: memref<1x96x1xf32, #tpu.memory_space<vmem>>, %arg5: memref<1x8x96xf32, #tpu.memory_space<vmem>>, %arg6: memref<1x256x256xf32, #tpu.memory_space<vmem>>, %arg7: memref<1x1x8x256xf32, #tpu.memory_space<vmem>>, %arg8: memref<8x256xf32, #tpu.memory_space<vmem>>) attributes {dimension_semantics = [#tpu.dimension_semantics<parallel>, #tpu.dimension_semantics<arbitrary>], iteration_bounds = array<i64: 2, 3>, scalar_prefetch = 0 : i64, scratch_operands = 1 : i64, tpu.core_type = #tpu.core_type<tc>, window_params = [{transform_indices = @transform_0, window_bounds = array<i64: 1, 8, 256>}, {transform_indices = @transform_1, window_bounds = array<i64: 1, 96, 72>}, {transform_indices = @transform_2, window_bounds = array<i64: 1, 96, 1>}, {transform_indices = @transform_3, window_bounds = array<i64: 1, 8, 96>}, {transform_indices = @transform_4, window_bounds = array<i64: 1, 256, 256>}, {transform_indices = @transform_5, window_bounds = array<i64: 1, 1, 8, 256>}]} {
    %c0_i32 = arith.constant 0 : i32
    %0 = arith.cmpi eq, %arg1, %c0_i32 : i32
    %1 = arith.extui %0 : i1 to i32
    %c0_i32_0 = arith.constant 0 : i32
    %2 = arith.cmpi ne, %1, %c0_i32_0 : i32
    scf.if %2 {
      %c0_23 = arith.constant 0 : index
      %c0_24 = arith.constant 0 : index
      %c0_25 = arith.constant 0 : index
      %40 = vector.load %arg2[%c0_23, %c0_24, %c0_25] : memref<1x8x256xf32, #tpu.memory_space<vmem>>, vector<1x8x256xf32>
      %41 = vector.shape_cast %40 : vector<1x8x256xf32> to vector<8x256xf32>
      %c0_26 = arith.constant 0 : index
      %c0_27 = arith.constant 0 : index
      %42 = vector.load %arg8[%c0_26, %c0_27] : memref<8x256xf32, #tpu.memory_space<vmem>>, vector<8x256xf32>
      tpu.vector_store %arg8[%c0_26, %c0_27], %41 {strides = array<i32>} : memref<8x256xf32, #tpu.memory_space<vmem>>, vector<8x256xf32>,
    } else {
    }
    %c0 = arith.constant 0 : index
    %c0_1 = arith.constant 0 : index
    %c0_2 = arith.constant 0 : index
    %3 = vector.load %arg3[%c0, %c0_1, %c0_2] : memref<1x96x72xf32, #tpu.memory_space<vmem>>, vector<1x96x72xf32>
    %4 = vector.shape_cast %3 : vector<1x96x72xf32> to vector<96x72xf32>
    %c0_3 = arith.constant 0 : index
    %c0_4 = arith.constant 0 : index
    %c0_5 = arith.constant 0 : index
    %5 = vector.load %arg5[%c0_3, %c0_4, %c0_5] : memref<1x8x96xf32, #tpu.memory_space<vmem>>, vector<1x8x96xf32>
    %6 = vector.shape_cast %5 : vector<1x8x96xf32> to vector<8x96xf32>
    %c0_6 = arith.constant 0 : index
    %c0_7 = arith.constant 0 : index
    %c0_8 = arith.constant 0 : index
    %7 = vector.load %arg4[%c0_6, %c0_7, %c0_8] : memref<1x96x1xf32, #tpu.memory_space<vmem>>, vector<1x96x1xf32>
    %8 = vector.shape_cast %7 : vector<1x96x1xf32> to vector<96x1xf32>
    %9 = vector.shape_cast %8 : vector<96x1xf32> to vector<96x1xf32>
    %10 = vector.broadcast %9 : vector<96x1xf32> to vector<96x256xf32>
    %11 = tpu.iota {dimensions = array<i32: 1>} : vector<8x256xi32>
    %c16_i32 = arith.constant 16 : i32
    %c0_i32_9 = arith.constant 0 : i32
    %12 = arith.cmpi eq, %c16_i32, %c0_i32_9 : i32
    %c1_i32 = arith.constant 1 : i32
    %13 = arith.select %12, %c1_i32, %c16_i32 : i32
    %14 = vector.broadcast %13 : i32 to vector<8x256xi32>
    %15 = arith.remsi %11, %14 : vector<8x256xi32>
    %c0_i32_10 = arith.constant 0 : i32
    %16 = vector.broadcast %c0_i32_10 : i32 to vector<8x256xi32>
    %17 = arith.cmpi ne, %15, %16 : vector<8x256xi32>
    %c0_i32_11 = arith.constant 0 : i32
    %18 = vector.broadcast %c0_i32_11 : i32 to vector<8x256xi32>
    %19 = arith.cmpi slt, %15, %18 : vector<8x256xi32>
    %c0_i32_12 = arith.constant 0 : i32
    %20 = arith.cmpi slt, %13, %c0_i32_12 : i32
    %21 = vector.broadcast %20 : i1 to vector<8x256xi1>
    %22 = vector.broadcast %21 : vector<8x256xi1> to vector<8x256xi1>
    %23 = arith.xori %19, %22 : vector<8x256xi1>
    %24 = arith.andi %23, %17 : vector<8x256xi1>
    %25 = vector.broadcast %13 : i32 to vector<8x256xi32>
    %26 = arith.addi %15, %25 : vector<8x256xi32>
    %27 = arith.select %24, %26, %15 : vector<8x256xi1>, vector<8x256xi32>
    %c0_i32_13 = arith.constant 0 : i32
    %28 = vector.broadcast %c0_i32_13 : i32 to vector<8x256xi32>
    %29 = arith.cmpi ne, %27, %28 : vector<8x256xi32>
    %c15_i32 = arith.constant 15 : i32
    %30 = vector.broadcast %c15_i32 : i32 to vector<8x256xi32>
    %31 = arith.cmpi ne, %27, %30 : vector<8x256xi32>
    %c0_i32_14 = arith.constant 0 : i32
    %c3_i32 = arith.constant 3 : i32
    %32 = arith.addi %c0_i32_14, %c3_i32 : i32
    %c1_i32_15 = arith.constant 1 : i32
    scf.for %arg9 = %c0_i32_14 to %32 step %c1_i32_15  : i32 {
      %c0_23 = arith.constant 0 : index
      %c0_24 = arith.constant 0 : index
      %40 = vector.load %arg8[%c0_23, %c0_24] : memref<8x256xf32, #tpu.memory_space<vmem>>, vector<8x256xf32>
      %41 = vector.extract_strided_slice %40 {offsets = [0, 255], sizes = [8, 1], strides = [1, 1]} : vector<8x256xf32> to vector<8x1xf32>
      %42 = vector.extract_strided_slice %40 {offsets = [0, 0], sizes = [8, 255], strides = [1, 1]} : vector<8x256xf32> to vector<8x255xf32>
      %43 = tpu.concatenate %41, %42 in 1 : vector<8x1xf32>, vector<8x255xf32> -> vector<8x256xf32>
      %44 = vector.extract_strided_slice %40 {offsets = [0, 15], sizes = [8, 241], strides = [1, 1]} : vector<8x256xf32> to vector<8x241xf32>
      %45 = vector.extract_strided_slice %40 {offsets = [0, 0], sizes = [8, 15], strides = [1, 1]} : vector<8x256xf32> to vector<8x15xf32>
      %46 = tpu.concatenate %44, %45 in 1 : vector<8x241xf32>, vector<8x15xf32> -> vector<8x256xf32>
      %47 = arith.select %29, %43, %46 : vector<8x256xi1>, vector<8x256xf32>
      %48 = vector.extract_strided_slice %40 {offsets = [0, 1], sizes = [8, 255], strides = [1, 1]} : vector<8x256xf32> to vector<8x255xf32>
      %49 = vector.extract_strided_slice %40 {offsets = [0, 0], sizes = [8, 1], strides = [1, 1]} : vector<8x256xf32> to vector<8x1xf32>
      %50 = tpu.concatenate %48, %49 in 1 : vector<8x255xf32>, vector<8x1xf32> -> vector<8x256xf32>
      %51 = vector.extract_strided_slice %40 {offsets = [0, 241], sizes = [8, 15], strides = [1, 1]} : vector<8x256xf32> to vector<8x15xf32>
      %52 = vector.extract_strided_slice %40 {offsets = [0, 0], sizes = [8, 241], strides = [1, 1]} : vector<8x256xf32> to vector<8x241xf32>
      %53 = tpu.concatenate %51, %52 in 1 : vector<8x15xf32>, vector<8x241xf32> -> vector<8x256xf32>
      %54 = arith.select %31, %50, %53 : vector<8x256xi1>, vector<8x256xf32>
      %55 = tpu.concatenate %47, %40, %54 in 0 : vector<8x256xf32>, vector<8x256xf32>, vector<8x256xf32> -> vector<24x256xf32>
      %56 = vector.extract_strided_slice %55 {offsets = [0, 240], sizes = [24, 16], strides = [1, 1]} : vector<24x256xf32> to vector<24x16xf32>
      %57 = vector.extract_strided_slice %55 {offsets = [0, 0], sizes = [24, 240], strides = [1, 1]} : vector<24x256xf32> to vector<24x240xf32>
      %58 = tpu.concatenate %56, %57 in 1 : vector<24x16xf32>, vector<24x240xf32> -> vector<24x256xf32>
      %59 = vector.extract_strided_slice %55 {offsets = [0, 16], sizes = [24, 240], strides = [1, 1]} : vector<24x256xf32> to vector<24x240xf32>
      %60 = vector.extract_strided_slice %55 {offsets = [0, 0], sizes = [24, 16], strides = [1, 1]} : vector<24x256xf32> to vector<24x16xf32>
      %61 = tpu.concatenate %59, %60 in 1 : vector<24x240xf32>, vector<24x16xf32> -> vector<24x256xf32>
      %62 = tpu.concatenate %58, %55, %61 in 0 : vector<24x256xf32>, vector<24x256xf32>, vector<24x256xf32> -> vector<72x256xf32>
      %cst = arith.constant dense<0.000000e+00> : vector<96x256xf32>
      %63 = tpu.matmul %4, %62, %cst {dimension_numbers = #tpu.dot_dimension_numbers<[1], [0], [0], [1], [0, 0, 1, 1], [], []>, precision = #tpu.contract_precision<fp32>} : vector<96x72xf32>, vector<72x256xf32>, vector<96x256xf32> -> vector<96x256xf32>
      %64 = arith.addf %63, %10 : vector<96x256xf32>
      %cst_25 = arith.constant 0.000000e+00 : f32
      %65 = vector.broadcast %cst_25 : f32 to vector<96x256xf32>
      %66 = arith.maximumf %64, %65 : vector<96x256xf32>
      %cst_26 = arith.constant dense<0.000000e+00> : vector<8x256xf32>
      %67 = tpu.matmul %6, %66, %cst_26 {dimension_numbers = #tpu.dot_dimension_numbers<[1], [0], [0], [1], [0, 0, 1, 1], [], []>, precision = #tpu.contract_precision<fp32>} : vector<8x96xf32>, vector<96x256xf32>, vector<8x256xf32> -> vector<8x256xf32>
      %68 = arith.addf %40, %67 : vector<8x256xf32>
      %c0_27 = arith.constant 0 : index
      %c0_28 = arith.constant 0 : index
      %69 = vector.load %arg8[%c0_27, %c0_28] : memref<8x256xf32, #tpu.memory_space<vmem>>, vector<8x256xf32>
      tpu.vector_store %arg8[%c0_27, %c0_28], %68 {strides = array<i32>} : memref<8x256xf32, #tpu.memory_space<vmem>>, vector<8x256xf32>,
    }
    %c0_16 = arith.constant 0 : index
    %c0_17 = arith.constant 0 : index
    %33 = vector.load %arg8[%c0_16, %c0_17] : memref<8x256xf32, #tpu.memory_space<vmem>>, vector<8x256xf32>
    %c0_18 = arith.constant 0 : index
    %c0_19 = arith.constant 0 : index
    %c0_20 = arith.constant 0 : index
    %c0_21 = arith.constant 0 : index
    %34 = vector.load %arg7[%c0_18, %c0_19, %c0_20, %c0_21] : memref<1x1x8x256xf32, #tpu.memory_space<vmem>>, vector<1x1x8x256xf32>
    %35 = vector.shape_cast %34 : vector<1x1x8x256xf32> to vector<8x256xf32>
    %36 = vector.shape_cast %33 : vector<8x256xf32> to vector<1x1x8x256xf32>
    tpu.vector_store %arg7[%c0_18, %c0_19, %c0_20, %c0_21], %36 {strides = array<i32>} : memref<1x1x8x256xf32, #tpu.memory_space<vmem>>, vector<1x1x8x256xf32>,
    %c2_i32 = arith.constant 2 : i32
    %37 = arith.cmpi slt, %arg1, %c2_i32 : i32
    %38 = arith.extui %37 : i1 to i32
    %c0_i32_22 = arith.constant 0 : i32
    %39 = arith.cmpi ne, %38, %c0_i32_22 : i32
    scf.if %39 {
      %c0_23 = arith.constant 0 : index
      %c0_24 = arith.constant 0 : index
      %40 = vector.load %arg8[%c0_23, %c0_24] : memref<8x256xf32, #tpu.memory_space<vmem>>, vector<8x256xf32>
      %c0_25 = arith.constant 0 : index
      %c0_26 = arith.constant 0 : index
      %c0_27 = arith.constant 0 : index
      %41 = vector.load %arg6[%c0_25, %c0_26, %c0_27] : memref<1x256x256xf32, #tpu.memory_space<vmem>>, vector<1x256x256xf32>
      %42 = vector.shape_cast %41 : vector<1x256x256xf32> to vector<256x256xf32>
      %cst = arith.constant dense<0.000000e+00> : vector<8x256xf32>
      %43 = tpu.matmul %40, %42, %cst {dimension_numbers = #tpu.dot_dimension_numbers<[1], [0], [0], [1], [0, 0, 1, 1], [], []>, precision = #tpu.contract_precision<fp32>} : vector<8x256xf32>, vector<256x256xf32>, vector<8x256xf32> -> vector<8x256xf32>
      %c0_28 = arith.constant 0 : index
      %c0_29 = arith.constant 0 : index
      %44 = vector.load %arg8[%c0_28, %c0_29] : memref<8x256xf32, #tpu.memory_space<vmem>>, vector<8x256xf32>
      tpu.vector_store %arg8[%c0_28, %c0_29], %43 {strides = array<i32>} : memref<8x256xf32, #tpu.memory_space<vmem>>, vector<8x256xf32>,
    } else {
    }
    return
  }
  func.func @transform_0(%arg0: i32, %arg1: i32) -> (i32, i32, i32) {
    %c0_i32 = arith.constant 0 : i32
    %c0_i32_0 = arith.constant 0 : i32
    %c0_i32_1 = arith.constant 0 : i32
    return %arg0, %c0_i32, %c0_i32_0 : i32, i32, i32
  }
  func.func @transform_1(%arg0: i32, %arg1: i32) -> (i32, i32, i32) {
    %c0_i32 = arith.constant 0 : i32
    %c0_i32_0 = arith.constant 0 : i32
    %c0_i32_1 = arith.constant 0 : i32
    return %arg1, %c0_i32, %c0_i32_0 : i32, i32, i32
  }
  func.func @transform_2(%arg0: i32, %arg1: i32) -> (i32, i32, i32) {
    %c0_i32 = arith.constant 0 : i32
    %c0_i32_0 = arith.constant 0 : i32
    %c0_i32_1 = arith.constant 0 : i32
    return %arg1, %c0_i32, %c0_i32_0 : i32, i32, i32
  }
  func.func @transform_3(%arg0: i32, %arg1: i32) -> (i32, i32, i32) {
    %c0_i32 = arith.constant 0 : i32
    %c0_i32_0 = arith.constant 0 : i32
    %c0_i32_1 = arith.constant 0 : i32
    return %arg1, %c0_i32, %c0_i32_0 : i32, i32, i32
  }
  func.func @transform_4(%arg0: i32, %arg1: i32) -> (i32, i32, i32) {
    %c0_i32 = arith.constant 0 : i32
    %c0_i32_0 = arith.constant 0 : i32
    %c0_i32_1 = arith.constant 0 : i32
    return %arg1, %c0_i32, %c0_i32_0 : i32, i32, i32
  }
  func.func @transform_5(%arg0: i32, %arg1: i32) -> (i32, i32, i32, i32) {
    %c0_i32 = arith.constant 0 : i32
    %c0_i32_0 = arith.constant 0 : i32
    %c0_i32_1 = arith.constant 0 : i32
    return %arg1, %arg0, %c0_i32, %c0_i32_0 : i32, i32, i32, i32
  }
}

</mosaic_0001>

<llo_original>
// kernel: tpu_custom_call.1
$region0: #{tpu_custom_call.1}
  #allocation0 [shape = 'u32[]', space=smem, size = 0x4, offset = 0x4, fixed_abs, tag = 'smem constant byte address 0x4 - core index']
  #allocation1 [shape = 'u32[144,128]{1,0:T(1,128)}', space=vmem, size = 0x12000, scoped, tag = 'internal scratch']
  #allocation2 [shape = 'f32[8,256]{1,0:T(8,128)}', space=vmem, size = 0x2000, scoped, tag = 'scratch operand']
  %s0 = inlined_call_operand.vmem [shape: f32[2,8,256], index: 0, kind: input, shape index: {}]
  %s1 = inlined_call_operand.vmem [shape: f32[3,96,72], index: 1, kind: input, shape index: {}]
  %s2 = inlined_call_operand.vmem [shape: f32[3,96,1], index: 2, kind: input, shape index: {}]
  %s3 = inlined_call_operand.vmem [shape: f32[3,8,96], index: 3, kind: input, shape index: {}]
  %s4 = inlined_call_operand.hbm [shape: f32[3,256,256], index: 4, kind: input, shape index: {}]
  %s5 = inlined_call_operand.hbm [shape: f32[3,2,8,256], index: 5, kind: output, shape index: {}]
  %s6 = sld [smem:[#allocation0]]
  $region72: #{tpu_custom_call.1} parent=0
    _
  %s8 = ssub.s32 1, %s6
  %s9 = scalar_select 0, %s8, %s6
  $region1: #{tpu_custom_call.1} parent=0
    #allocation3 [shape = 'u8[524288]{0}', space=vmem, size = 0x80000, scoped, tag = 'input window, operand 4']
    #allocation4 [shape = 's32[2]{0}', space=sflag, size = 0x8, scoped, tag = 'scoped memory for tpu_custom_call.1']
    #allocation5 [shape = 's32[2]{0}', space=sflag, size = 0x8, scoped, tag = 'scoped memory for tpu_custom_call.1']
    #allocation6 [shape = 'u8[16384]{0}', space=vmem, size = 0x4000, scoped, tag = 'output window, operand 0']
    %10 = vsyncpa [#allocation4], 0
    %s11 = scalar_lea.sflag [#allocation4], 1
    %12 = vsyncpa %s11, 0
    %13 = vsyncpa [#allocation5], 0
    %s14 = scalar_lea.sflag [#allocation5], 1
    %15 = vsyncpa %s14, 0
    loop: start=0, step=1, limit=8
    $region2: #{tpu_custom_call.1} parent=1 // loop_pre_header
      _
    $region3: #{tpu_custom_call.1} parent=1 // loop_header
      %s17 = sphi 0, %s21
      %p18 = scmp.ge.s32.totalorder %s17, 8
      %s24 = sphi 0, %s36
      %s25 = sphi 0, %s32
      %s26 = sphi 0, %s24
      %s27 = sphi 0, %s25
      %s28 = sphi 0, %s26
      %s29 = sphi 0, %s27
      %s39 = sphi 0, %s41
      %s42 = sphi 0, %s39
      %s43 = sphi 0, %s42
      %s59 = sphi 0, %s43
      %s65 = sphi 0, %s67
      %s68 = sphi 0, %s65
      %s69 = sphi 0, %s68
      %s85 = sphi 0, %s69
      %s91 = sphi 0, %s93
      %s94 = sphi 0, %s91
      %s95 = sphi 0, %s94
      %s111 = sphi 0, %s95
      %s117 = sphi 0, %s119
      %s120 = sphi 0, %s117
      %s121 = sphi 0, %s120
      %s137 = sphi 0, %s121
      %s143 = sphi 0, %s145
      %s146 = sphi 0, %s143
      %s147 = sphi 0, %s146
      %s163 = sphi 0, %s147
      %s171 = sphi 0, %s173
      %s174 = sphi 0, %s171
      %s175 = sphi 0, %s174
      %s191 = sphi 0, %s175
    $region4: #{tpu_custom_call.1} parent=1 // loop_header_branch
      %20 = sbr.rel (%p18) target = $region8
    $region5: #{tpu_custom_call.1} parent=1 // loop_body
      %s22 = ssub.s32 %s17, 1
      %s23 = ssub.s32 %s17, 2
      %s30 = sadd.s32 1, %s25
      %p31 = scmp.ge.s32.totalorder %s30, 3
      %s32 = scalar_select %p31, 0, %s30
      %s33 = sadd.s32 1, %s24
      %s34 = scalar_select %p31, %s33, %s24
      %p35 = scmp.ge.s32.totalorder %s34, 2
      %s36 = scalar_select %p35, 0, %s34
      %s37 = ssub.s32 %s24, %s36
      %p38 = scmp.eq.s32.totalorder %s37, 0
      %s40 = sadd.s32 %s39, 1
      %s41 = scalar_select %p38, %s39, %s40
      %p44 = pneg %p38
      %p45 = scmp.eq.s32.totalorder %s17, 5
      %p46 = por %p44, %p45
      %p47 = scmp.ne.s32.totalorder %s39, %s42
      %p48 = scmp.eq.s32.totalorder %s17, 0
      %p49 = por %p47, %p48
      %p50 = scmp.ne.s32.totalorder %s39, %s42
      %p51 = scmp.eq.s32.totalorder %s22, 5
      %p52 = por %p50, %p51
      %p53 = scmp.ne.s32.totalorder %s42, %s43
      %p54 = scmp.eq.s32.totalorder %s22, 0
      %p55 = por %p53, %p54
      %p56 = scmp.ne.s32.totalorder %s42, %s43
      %p57 = scmp.eq.s32.totalorder %s23, 5
      %p58 = por %p56, %p57
      %p60 = scmp.ne.s32.totalorder %s43, %s59
      %p61 = scmp.eq.s32.totalorder %s23, 0
      %p62 = por %p60, %p61
      %s63 = ssub.s32 %s25, %s32
      %p64 = scmp.eq.s32.totalorder %s63, 0
      %s66 = sadd.s32 %s65, 1
      %s67 = scalar_select %p64, %s65, %s66
      %p70 = pneg %p64
      %p71 = scmp.eq.s32.totalorder %s17, 5
      %p72 = por %p70, %p71
      %p73 = scmp.ne.s32.totalorder %s65, %s68
      %p74 = scmp.eq.s32.totalorder %s17, 0
      %p75 = por %p73, %p74
      %p76 = scmp.ne.s32.totalorder %s65, %s68
      %p77 = scmp.eq.s32.totalorder %s22, 5
      %p78 = por %p76, %p77
      %p79 = scmp.ne.s32.totalorder %s68, %s69
      %p80 = scmp.eq.s32.totalorder %s22, 0
      %p81 = por %p79, %p80
      %p82 = scmp.ne.s32.totalorder %s68, %s69
      %p83 = scmp.eq.s32.totalorder %s23, 5
      %p84 = por %p82, %p83
      %p86 = scmp.ne.s32.totalorder %s69, %s85
      %p87 = scmp.eq.s32.totalorder %s23, 0
      %p88 = por %p86, %p87
      %s89 = ssub.s32 %s25, %s32
      %p90 = scmp.eq.s32.totalorder %s89, 0
      %s92 = sadd.s32 %s91, 1
      %s93 = scalar_select %p90, %s91, %s92
      %p96 = pneg %p90
      %p97 = scmp.eq.s32.totalorder %s17, 5
      %p98 = por %p96, %p97
      %p99 = scmp.ne.s32.totalorder %s91, %s94
      %p100 = scmp.eq.s32.totalorder %s17, 0
      %p101 = por %p99, %p100
      %p102 = scmp.ne.s32.totalorder %s91, %s94
      %p103 = scmp.eq.s32.totalorder %s22, 5
      %p104 = por %p102, %p103
      %p105 = scmp.ne.s32.totalorder %s94, %s95
      %p106 = scmp.eq.s32.totalorder %s22, 0
      %p107 = por %p105, %p106
      %p108 = scmp.ne.s32.totalorder %s94, %s95
      %p109 = scmp.eq.s32.totalorder %s23, 5
      %p110 = por %p108, %p109
      %p112 = scmp.ne.s32.totalorder %s95, %s111
      %p113 = scmp.eq.s32.totalorder %s23, 0
      %p114 = por %p112, %p113
      %s115 = ssub.s32 %s25, %s32
      %p116 = scmp.eq.s32.totalorder %s115, 0
      %s118 = sadd.s32 %s117, 1
      %s119 = scalar_select %p116, %s117, %s118
      %p122 = pneg %p116
      %p123 = scmp.eq.s32.totalorder %s17, 5
      %p124 = por %p122, %p123
      %p125 = scmp.ne.s32.totalorder %s117, %s120
      %p126 = scmp.eq.s32.totalorder %s17, 0
      %p127 = por %p125, %p126
      %p128 = scmp.ne.s32.totalorder %s117, %s120
      %p129 = scmp.eq.s32.totalorder %s22, 5
      %p130 = por %p128, %p129
      %p131 = scmp.ne.s32.totalorder %s120, %s121
      %p132 = scmp.eq.s32.totalorder %s22, 0
      %p133 = por %p131, %p132
      %p134 = scmp.ne.s32.totalorder %s120, %s121
      %p135 = scmp.eq.s32.totalorder %s23, 5
      %p136 = por %p134, %p135
      %p138 = scmp.ne.s32.totalorder %s121, %s137
      %p139 = scmp.eq.s32.totalorder %s23, 0
      %p140 = por %p138, %p139
      %s141 = ssub.s32 %s25, %s32
      %p142 = scmp.eq.s32.totalorder %s141, 0
      %s144 = sadd.s32 %s143, 1
      %s145 = scalar_select %p142, %s143, %s144
      %p148 = pneg %p142
      %p149 = scmp.eq.s32.totalorder %s17, 5
      %p150 = por %p148, %p149
      %p151 = scmp.ne.s32.totalorder %s143, %s146
      %p152 = scmp.eq.s32.totalorder %s17, 0
      %p153 = por %p151, %p152
      %p154 = scmp.ne.s32.totalorder %s143, %s146
      %p155 = scmp.eq.s32.totalorder %s22, 5
      %p156 = por %p154, %p155
      %p157 = scmp.ne.s32.totalorder %s146, %s147
      %p158 = scmp.eq.s32.totalorder %s22, 0
      %p159 = por %p157, %p158
      %p160 = scmp.ne.s32.totalorder %s146, %s147
      %p161 = scmp.eq.s32.totalorder %s23, 5
      %p162 = por %p160, %p161
      %p164 = scmp.ne.s32.totalorder %s147, %s163
      %p165 = scmp.eq.s32.totalorder %s23, 0
      %p166 = por %p164, %p165
      %s167 = ssub.s32 %s25, %s32
      %s168 = ssub.s32 %s24, %s36
      %s169 = sor.u32 %s167, %s168
      %p170 = scmp.eq.s32.totalorder %s169, 0
      %s172 = sadd.s32 %s171, 1
      %s173 = scalar_select %p170, %s171, %s172
      %p176 = pneg %p170
      %p177 = scmp.eq.s32.totalorder %s17, 5
      %p178 = por %p176, %p177
      %p179 = scmp.ne.s32.totalorder %s171, %s174
      %p180 = scmp.eq.s32.totalorder %s17, 0
      %p181 = por %p179, %p180
      %p182 = scmp.ne.s32.totalorder %s171, %s174
      %p183 = scmp.eq.s32.totalorder %s22, 5
      %p184 = por %p182, %p183
      %p185 = scmp.ne.s32.totalorder %s174, %s175
      %p186 = scmp.eq.s32.totalorder %s22, 0
      %p187 = por %p185, %p186
      %p188 = scmp.ne.s32.totalorder %s174, %s175
      %p189 = scmp.eq.s32.totalorder %s23, 5
      %p190 = por %p188, %p189
      %p192 = scmp.ne.s32.totalorder %s175, %s191
      %p193 = scmp.eq.s32.totalorder %s23, 0
      %p194 = por %p192, %p193
      %p195 = scmp.le.s32.totalorder 1, %s17
      %p196 = scmp.lt.s32.totalorder %s17, 7
      %p197 = pnand %p195, %p196
      %p198 = pneg %p197
      // Predicated region
      $region9: #{tpu_custom_call.1} parent=5 // pred_check
        _
      $region10: #{tpu_custom_call.1} parent=5 // pred_check_branch
        %200 = sbr.rel (%p197) target = $region12
      $region11: #{tpu_custom_call.1} parent=5 // pred_region
        %s201 = ssub.s32 %s17, 1
      $region12: #{tpu_custom_call.1} parent=5 // pred_fallthru
        _
      %p202 = scmp.lt.s32.totalorder %s17, 6
      // Predicated region
      $region13: #{tpu_custom_call.1} parent=5 // pred_check
        %p203 = pneg %p202
      $region14: #{tpu_custom_call.1} parent=5 // pred_check_branch
        %205 = sbr.rel (%p203) target = $region16
      $region15: #{tpu_custom_call.1} parent=5 // pred_region
        // Predicated region
        $region17: #{tpu_custom_call.1} parent=15 // pred_check
          %p206 = pneg %p49
        $region18: #{tpu_custom_call.1} parent=15 // pred_check_branch
          %208 = sbr.rel (%p206) target = $region20
        $region19: #{tpu_custom_call.1} parent=15 // pred_region
          %p209 = scmp.lt.s32.totalorder %s24, 1
          %s210 = scalar_select %p209, %s24, 1
          %s211 = smul.addr %s210, 2
          %s212 = smul.addr %s211, 8
          %s213 = scalar_lea.vmem %s0, %s212
        $region20: #{tpu_custom_call.1} parent=15 // pred_fallthru
          _
        // Predicated region
        $region21: #{tpu_custom_call.1} parent=15 // pred_check
          %p214 = pneg %p75
        $region22: #{tpu_custom_call.1} parent=15 // pred_check_branch
          %216 = sbr.rel (%p214) target = $region24
        $region23: #{tpu_custom_call.1} parent=15 // pred_region
          %p217 = scmp.lt.s32.totalorder %s25, 2
          %s218 = scalar_select %p217, %s25, 2
          %s219 = smul.addr %s218, 12
          %s220 = smul.addr %s219, 8
          %s221 = scalar_lea.vmem %s1, %s220
        $region24: #{tpu_custom_call.1} parent=15 // pred_fallthru
          _
        // Predicated region
        $region25: #{tpu_custom_call.1} parent=15 // pred_check
          %p222 = pneg %p101
        $region26: #{tpu_custom_call.1} parent=15 // pred_check_branch
          %224 = sbr.rel (%p222) target = $region28
        $region27: #{tpu_custom_call.1} parent=15 // pred_region
          %p225 = scmp.lt.s32.totalorder %s25, 2
          %s226 = scalar_select %p225, %s25, 2
          %s227 = smul.addr %s226, 12
          %s228 = smul.addr %s227, 8
          %s229 = scalar_lea.vmem %s2, %s228
        $region28: #{tpu_custom_call.1} parent=15 // pred_fallthru
          _
        // Predicated region
        $region29: #{tpu_custom_call.1} parent=15 // pred_check
          %p230 = pneg %p127
        $region30: #{tpu_custom_call.1} parent=15 // pred_check_branch
          %232 = sbr.rel (%p230) target = $region32
        $region31: #{tpu_custom_call.1} parent=15 // pred_region
          %p233 = scmp.lt.s32.totalorder %s25, 2
          %s234 = scalar_select %p233, %s25, 2
          %s235 = smul.addr %s234, 8
          %s236 = scalar_lea.vmem %s3, %s235
        $region32: #{tpu_custom_call.1} parent=15 // pred_fallthru
          _
        // Predicated region
        $region33: #{tpu_custom_call.1} parent=15 // pred_check
          %p237 = pneg %p153
        $region34: #{tpu_custom_call.1} parent=15 // pred_check_branch
          %239 = sbr.rel (%p237) target = $region36
        $region35: #{tpu_custom_call.1} parent=15 // pred_region
          %s240 = sand.u32 %s143, 1
          %s241 = scalar_lea.sflag [#allocation4], %s240
          %s242 = sand.u32 %s143, 1
          %s243 = smul.addr %s242, 512
          %s244 = scalar_lea.vmem [#allocation3], %s243
          %s246 = ssub.s32 8192, 8192
          %247 = vsyncadd %s241, %s246
          %s248 = smul.addr %s25, 64
          %s249 = smul.addr %s248, 128
          %s250 = scalar_lea.hbm %s4, %s249
          %s251 = sshll.u32 %s244, 4
          %s252 = int_to_ptr.vmem [resolvable:$true] %s251
          %257 = dma.hbm_to_vmem [thread:$0]  %s250, 8192, %s252, %s241, 256, 256, 16
        $region36: #{tpu_custom_call.1} parent=15 // pred_fallthru
          _
      $region16: #{tpu_custom_call.1} parent=5 // pred_fallthru
        _
      %p258 = scmp.le.s32.totalorder 1, %s17
      %p259 = scmp.lt.s32.totalorder %s17, 7
      %p260 = pnand %p258, %p259
      %p261 = pneg %p260
      // Predicated region
      $region37: #{tpu_custom_call.1} parent=5 // pred_check
        _
      $region38: #{tpu_custom_call.1} parent=5 // pred_check_branch
        %263 = sbr.rel (%p260) target = $region40
      $region39: #{tpu_custom_call.1} parent=5 // pred_region
        %s264 = ssub.s32 %s17, 1
        %s265 = sand.u32 %s146, 1
        %s266 = scalar_lea.sflag [#allocation4], %s265
        %s267 = sand.u32 %s146, 1
        %s268 = smul.addr %s267, 512
        %s269 = scalar_lea.vmem [#allocation3], %s268
        // Predicated region
        $region41: #{tpu_custom_call.1} parent=39 // pred_check
          %p270 = pneg %p159
        $region42: #{tpu_custom_call.1} parent=39 // pred_check_branch
          %272 = sbr.rel (%p270) target = $region44
        $region43: #{tpu_custom_call.1} parent=39 // pred_region
          %273 = dma.done %s266, 8192
        $region44: #{tpu_custom_call.1} parent=39 // pred_fallthru
          _
        %p274 = scmp.lt.s32.totalorder %s26, 1
        %s275 = scalar_select %p274, %s26, 1
        %s276 = smul.addr %s275, 2
        %s277 = smul.addr %s276, 8
        %s278 = scalar_lea.vmem %s0, %s277
        %p279 = pneg %p55
        %p280 = pneg %p52
        %p281 = scmp.lt.s32.totalorder %s27, 2
        %s282 = scalar_select %p281, %s27, 2
        %s283 = smul.addr %s282, 12
        %s284 = smul.addr %s283, 8
        %s285 = scalar_lea.vmem %s1, %s284
        %p286 = pneg %p81
        %p287 = pneg %p78
        %p288 = scmp.lt.s32.totalorder %s27, 2
        %s289 = scalar_select %p288, %s27, 2
        %s290 = smul.addr %s289, 12
        %s291 = smul.addr %s290, 8
        %s292 = scalar_lea.vmem %s2, %s291
        %p293 = pneg %p107
        %p294 = pneg %p104
        %p295 = scmp.lt.s32.totalorder %s27, 2
        %s296 = scalar_select %p295, %s27, 2
        %s297 = smul.addr %s296, 8
        %s298 = scalar_lea.vmem %s3, %s297
        %p299 = pneg %p133
        %p300 = pneg %p130
        %s301 = sand.u32 %s146, 1
        %s302 = scalar_lea.sflag [#allocation4], %s301
        %s303 = sand.u32 %s146, 1
        %s304 = smul.addr %s303, 512
        %s305 = scalar_lea.vmem [#allocation3], %s304
        %p306 = pneg %p159
        %p307 = pneg %p156
        %p308 = pneg %p187
        %p309 = pneg %p184
        %s310 = sand.u32 %s174, 1
        %s311 = scalar_lea.sflag [#allocation5], %s310
        %s312 = sand.u32 %s174, 1
        %s313 = smul.addr %s312, 16
        %s314 = scalar_lea.vmem [#allocation6], %s313
        %p315 = scmp.lt.s32.totalorder %s26, 1
        %s316 = scalar_select %p315, %s26, 1
        %s317 = smul.addr %s316, 2
        %s318 = smul.addr %s317, 8
        %s319 = scalar_lea.vmem %s0, %s318
        %p320 = scmp.lt.s32.totalorder %s27, 2
        %s321 = scalar_select %p320, %s27, 2
        %s322 = smul.addr %s321, 12
        %s323 = smul.addr %s322, 8
        %s324 = scalar_lea.vmem %s1, %s323
        %p325 = scmp.lt.s32.totalorder %s27, 2
        %s326 = scalar_select %p325, %s27, 2
        %s327 = smul.addr %s326, 12
        %s328 = smul.addr %s327, 8
        %s329 = scalar_lea.vmem %s2, %s328
        %p330 = scmp.lt.s32.totalorder %s27, 2
        %s331 = scalar_select %p330, %s27, 2
        %s332 = smul.addr %s331, 8
        %s333 = scalar_lea.vmem %s3, %s332
        %p334 = scmp.eq.s32.totalorder %s27, 0
        // Predicated region
        $region45: #{tpu_custom_call.1} parent=39 // pred_check
          %p335 = pneg %p334
        $region46: #{tpu_custom_call.1} parent=39 // pred_check_branch
          %337 = sbr.rel (%p335) target = $region48
        $region47: #{tpu_custom_call.1} parent=39 // pred_region
          %v338 = vld [vmem:[%s319] sm:$0xff]
          %v339 = vld [vmem:[%s319 + $0x8] sm:$0xff]
          %340 = vst [vmem:[#allocation2] sm:$0xff] %v338
          %341 = vst [vmem:[#allocation2 + $0x8] sm:$0xff] %v339
        $region48: #{tpu_custom_call.1} parent=39 // pred_fallthru
          _
        %v342 = vld [vmem:[%s324] sm:$0xff]
        %v343 = vld [vmem:[%s324 + $0x8] sm:$0xff]
        %v344 = vld [vmem:[%s324 + $0x10] sm:$0xff]
        %v345 = vld [vmem:[%s324 + $0x18] sm:$0xff]
        %v346 = vld [vmem:[%s324 + $0x20] sm:$0xff]
        %v347 = vld [vmem:[%s324 + $0x28] sm:$0xff]
        %v348 = vld [vmem:[%s324 + $0x30] sm:$0xff]
        %v349 = vld [vmem:[%s324 + $0x38] sm:$0xff]
        %v350 = vld [vmem:[%s324 + $0x40] sm:$0xff]
        %v351 = vld [vmem:[%s324 + $0x48] sm:$0xff]
        %v352 = vld [vmem:[%s324 + $0x50] sm:$0xff]
        %v353 = vld [vmem:[%s324 + $0x58] sm:$0xff]
        %v354 = vld [vmem:[%s333] sm:$0xff]
        %v355 = vld [vmem:[%s329] sm:$0xff]
        %v356 = vld [vmem:[%s329 + $0x8] sm:$0xff]
        %v357 = vld [vmem:[%s329 + $0x10] sm:$0xff]
        %v358 = vld [vmem:[%s329 + $0x18] sm:$0xff]
        %v359 = vld [vmem:[%s329 + $0x20] sm:$0xff]
        %v360 = vld [vmem:[%s329 + $0x28] sm:$0xff]
        %v361 = vld [vmem:[%s329 + $0x30] sm:$0xff]
        %v362 = vld [vmem:[%s329 + $0x38] sm:$0xff]
        %v363 = vld [vmem:[%s329 + $0x40] sm:$0xff]
        %v364 = vld [vmem:[%s329 + $0x48] sm:$0xff]
        %v365 = vld [vmem:[%s329 + $0x50] sm:$0xff]
        %v366 = vld [vmem:[%s329 + $0x58] sm:$0xff]
        %368 = vset.pattern.permute.xlu0 0
        %369 = vperm.xlu0 %368, %v355
        %v370 = vpop.permute.xlu0 %369
        %373 = vset.pattern.permute.xlu0 0
        %374 = vperm.xlu0 %373, %v356
        %v375 = vpop.permute.xlu0 %374
        %378 = vset.pattern.permute.xlu0 0
        %379 = vperm.xlu0 %378, %v357
        %v380 = vpop.permute.xlu0 %379
        %383 = vset.pattern.permute.xlu0 0
        %384 = vperm.xlu0 %383, %v358
        %v385 = vpop.permute.xlu0 %384
        %388 = vset.pattern.permute.xlu0 0
        %389 = vperm.xlu0 %388, %v359
        %v390 = vpop.permute.xlu0 %389
        %393 = vset.pattern.permute.xlu0 0
        %394 = vperm.xlu0 %393, %v360
        %v395 = vpop.permute.xlu0 %394
        %398 = vset.pattern.permute.xlu0 0
        %399 = vperm.xlu0 %398, %v361
        %v400 = vpop.permute.xlu0 %399
        %403 = vset.pattern.permute.xlu0 0
        %404 = vperm.xlu0 %403, %v362
        %v405 = vpop.permute.xlu0 %404
        %408 = vset.pattern.permute.xlu0 0
        %409 = vperm.xlu0 %408, %v363
        %v410 = vpop.permute.xlu0 %409
        %413 = vset.pattern.permute.xlu0 0
        %414 = vperm.xlu0 %413, %v364
        %v415 = vpop.permute.xlu0 %414
        %418 = vset.pattern.permute.xlu0 0
        %419 = vperm.xlu0 %418, %v365
        %v420 = vpop.permute.xlu0 %419
        %423 = vset.pattern.permute.xlu0 0
        %424 = vperm.xlu0 %423, %v366
        %v425 = vpop.permute.xlu0 %424
        %v427 = vlaneseq
        %v428 = vand.u32 %v427, 127
        %v429 = vadd.s32 %v428, 128
        %vm430 = vcmp.lt.s32.totalorder %v428, 0
        %v431 = vsub.s32 0, %v428
        %v432 = vsel %vm430, %v431, %v428
        %v433 = vshrl.u32 %v432, 4
        %v434 = vand.u32 %v432, 15
        %v435 = vsub.s32 0, %v434
        %v436 = vsel %vm430, %v435, %v434
        %vm437 = vcmp.lt.s32.totalorder %v429, 0
        %v438 = vsub.s32 0, %v429
        %v439 = vsel %vm437, %v438, %v429
        %v440 = vshrl.u32 %v439, 4
        %v441 = vand.u32 %v439, 15
        %v442 = vsub.s32 0, %v441
        %v443 = vsel %vm437, %v442, %v441
        %vm444 = vcmp.ne.s32.totalorder %v436, 0
        %vm445 = vcmp.ne.s32.totalorder %v443, 0
        %vm446 = vcmp.lt.s32.totalorder %v436, 0
        %vm447 = vcmp.lt.s32.totalorder %v443, 0
        %vm448 = vmand %vm446, %vm444
        %vm449 = vmand %vm447, %vm445
        %v450 = vadd.s32 %v436, 16
        %v451 = vadd.s32 %v443, 16
        %v452 = vsel %vm448, %v450, %v436
        %v453 = vsel %vm449, %v451, %v443
        %vm454 = vcmp.ne.s32.totalorder %v452, 0
        %vm455 = vcmp.ne.s32.totalorder %v453, 0
        %vm456 = vcmp.ne.s32.totalorder %v452, 15
        %vm457 = vcmp.ne.s32.totalorder %v453, 15
        loop: start=0, step=1, limit=3
        $region49: #{tpu_custom_call.1} parent=39 // loop_pre_header
          _
        $region50: #{tpu_custom_call.1} parent=39 // loop_header
          %s459 = sphi 0, %s463
          %p460 = scmp.ge.s32.totalorder %s459, 3
        $region51: #{tpu_custom_call.1} parent=39 // loop_header_branch
          %462 = sbr.rel (%p460) target = $region55
        $region52: #{tpu_custom_call.1} parent=39 // loop_body
          %v464 = vld [vmem:[#allocation2] sm:$0xff]
          %v465 = vld [vmem:[#allocation2 + $0x8] sm:$0xff]
          %467 = vrot.lane.b32.xlu0 %v465, 1
          %v468 = vpop.permute.xlu0 %467
          %471 = vrot.lane.b32.xlu0 %v464, 1
          %v472 = vpop.permute.xlu0 %471
          %vm473 = vcmask 7168
          %v474 = vsel %vm473, %v472, %v468
          %v477 = vsel %vm473, %v468, %v472
          %478 = vrot.lane.b32.xlu0 %v464, 113
          %v479 = vpop.permute.xlu0 %478
          %480 = vrot.lane.b32.xlu0 %v465, 113
          %v481 = vpop.permute.xlu0 %480
          %vm482 = vcmask 924672
          %v483 = vsel %vm482, %v479, %v481
          %v487 = vsel %vm482, %v481, %v479
          %v488 = vsel %vm454, %v477, %v483
          %v489 = vsel %vm455, %v474, %v487
          %490 = vrot.lane.b32.xlu0 %v464, 127
          %v491 = vpop.permute.xlu0 %490
          %492 = vrot.lane.b32.xlu0 %v465, 127
          %v493 = vpop.permute.xlu0 %492
          %vm494 = vcmask 1039360
          %v495 = vsel %vm494, %v491, %v493
          %v499 = vsel %vm494, %v493, %v491
          %500 = vrot.lane.b32.xlu0 %v465, 15
          %v501 = vpop.permute.xlu0 %500
          %503 = vrot.lane.b32.xlu0 %v464, 15
          %v504 = vpop.permute.xlu0 %503
          %vm505 = vcmask 121856
          %v506 = vsel %vm505, %v504, %v501
          %v509 = vsel %vm505, %v501, %v504
          %v510 = vsel %vm456, %v495, %v509
          %v511 = vsel %vm457, %v499, %v506
          %514 = vrot.lane.b32.xlu0 %v489, 16
          %v515 = vpop.permute.xlu0 %514
          %516 = vrot.lane.b32.xlu0 %v465, 16
          %v517 = vpop.permute.xlu0 %516
          %518 = vrot.lane.b32.xlu0 %v511, 16
          %v519 = vpop.permute.xlu0 %518
          %525 = vrot.lane.b32.xlu0 %v488, 16
          %v526 = vpop.permute.xlu0 %525
          %527 = vrot.lane.b32.xlu0 %v464, 16
          %v528 = vpop.permute.xlu0 %527
          %529 = vrot.lane.b32.xlu0 %v510, 16
          %v530 = vpop.permute.xlu0 %529
          %vm531 = vcmask 130048
          %v532 = vsel %vm531, %v526, %v515
          %v533 = vsel %vm531, %v528, %v517
          %v534 = vsel %vm531, %v530, %v519
          %v541 = vsel %vm531, %v515, %v526
          %v542 = vsel %vm531, %v517, %v528
          %v543 = vsel %vm531, %v519, %v530
          %544 = vrot.lane.b32.xlu0 %v488, 112
          %v545 = vpop.permute.xlu0 %544
          %546 = vrot.lane.b32.xlu0 %v489, 112
          %v547 = vpop.permute.xlu0 %546
          %548 = vrot.lane.b32.xlu0 %v464, 112
          %v549 = vpop.permute.xlu0 %548
          %550 = vrot.lane.b32.xlu0 %v465, 112
          %v551 = vpop.permute.xlu0 %550
          %552 = vrot.lane.b32.xlu0 %v510, 112
          %v553 = vpop.permute.xlu0 %552
          %554 = vrot.lane.b32.xlu0 %v511, 112
          %v555 = vpop.permute.xlu0 %554
          %vm556 = vcmask 916480
          %v557 = vsel %vm556, %v545, %v547
          %v558 = vsel %vm556, %v549, %v551
          %v559 = vsel %vm556, %v553, %v555
          %v569 = vsel %vm556, %v547, %v545
          %v570 = vsel %vm556, %v551, %v549
          %v571 = vsel %vm556, %v555, %v553
          %vm572 = vcmask 588800
          %v574 = vsel %vm572, %v342, 0
          %v577 = vsel %vm572, %v343, 0
          %v580 = vsel %vm572, %v344, 0
          %v583 = vsel %vm572, %v345, 0
          %v586 = vsel %vm572, %v346, 0
          %v589 = vsel %vm572, %v347, 0
          %v592 = vsel %vm572, %v348, 0
          %v595 = vsel %vm572, %v349, 0
          %v598 = vsel %vm572, %v350, 0
          %v601 = vsel %vm572, %v351, 0
          %v604 = vsel %vm572, %v352, 0
          %v607 = vsel %vm572, %v353, 0
          %609 = vmatprep.subr.mxu0 0.0
          %610 = vmatpush1.msra.mxu0 0.0
          %611 = vmatprep.subr.mxu0 0.0
          %612 = vmatpush1.msra.mxu0 0.0
          %613 = vmatprep.subr.mxu0 0.0
          %614 = vmatpush1.msra.mxu0 0.0
          %615 = vmatprep.subr.mxu0 0.0
          %616 = vmatpush1.msra.mxu0 0.0
          %617 = vmatprep.subr.mxu0 0.0
          %618 = vmatpush1.msra.mxu0 0.0
          %619 = vmatprep.subr.mxu0 0.0
          %620 = vmatpush1.msra.mxu0 0.0
          %621 = vmatprep.subr.mxu0 0.0
          %622 = vmatpush1.msra.mxu0 0.0
          %v623 = vand.u32 %v571, 4294901760
          %624 = vmatprep.subr.mxu0 %v623
          %v625 = vand.u32 %v559, 4294901760
          %626 = vmatpush1.msra.mxu0 %v625
          %v627 = vand.u32 %v570, 4294901760
          %628 = vmatprep.subr.mxu0 %v627
          %v629 = vand.u32 %v558, 4294901760
          %630 = vmatpush1.msra.mxu0 %v629
          %v631 = vand.u32 %v569, 4294901760
          %632 = vmatprep.subr.mxu0 %v631
          %v633 = vand.u32 %v557, 4294901760
          %634 = vmatpush1.msra.mxu0 %v633
          %v635 = vand.u32 %v511, 4294901760
          %636 = vmatprep.subr.mxu0 %v635
          %v637 = vand.u32 %v510, 4294901760
          %638 = vmatpush1.msra.mxu0 %v637
          %v639 = vand.u32 %v465, 4294901760
          %640 = vmatprep.subr.mxu0 %v639
          %v641 = vand.u32 %v464, 4294901760
          %642 = vmatpush1.msra.mxu0 %v641
          %v643 = vand.u32 %v489, 4294901760
          %644 = vmatprep.subr.mxu0 %v643
          %v645 = vand.u32 %v488, 4294901760
          %646 = vmatpush1.msra.mxu0 %v645
          %v647 = vand.u32 %v534, 4294901760
          %648 = vmatprep.subr.mxu0 %v647
          %v649 = vand.u32 %v543, 4294901760
          %650 = vmatpush1.msra.mxu0 %v649
          %v651 = vand.u32 %v533, 4294901760
          %652 = vmatprep.subr.mxu0 %v651
          %v653 = vand.u32 %v542, 4294901760
          %654 = vmatpush1.msra.mxu0 %v653
          %v655 = vand.u32 %v532, 4294901760
          %656 = vmatprep.subr.mxu0 %v655
          %v657 = vand.u32 %v541, 4294901760
          %658 = vmatpush1.msra.mxu0 %v657
          %659 = vmatprep.subr.mxu0 0.0
          %660 = vmatpush2.msra.mxu0 0.0
          %661 = vmatprep.subr.mxu0 0.0
          %662 = vmatpush2.msra.mxu0 0.0
          %663 = vmatprep.subr.mxu0 0.0
          %664 = vmatpush2.msra.mxu0 0.0
          %665 = vmatprep.subr.mxu0 0.0
          %666 = vmatpush2.msra.mxu0 0.0
          %667 = vmatprep.subr.mxu0 0.0
          %668 = vmatpush2.msra.mxu0 0.0
          %669 = vmatprep.subr.mxu0 0.0
          %670 = vmatpush2.msra.mxu0 0.0
          %671 = vmatprep.subr.mxu0 0.0
          %672 = vmatpush2.msra.mxu0 0.0
          %673 = vmatprep.subr.mxu0 0.0
          %674 = vmatpush2.msra.mxu0 0.0
          %675 = vmatprep.subr.mxu0 0.0
          %676 = vmatpush2.msra.mxu0 0.0
          %677 = vmatprep.subr.mxu0 0.0
          %678 = vmatpush2.msra.mxu0 0.0
          %679 = vmatprep.subr.mxu0 0.0
          %680 = vmatpush2.msra.mxu0 0.0
          %681 = vmatprep.subr.mxu0 0.0
          %682 = vmatpush2.msra.mxu0 0.0
          %683 = vmatprep.subr.mxu0 0.0
          %684 = vmatpush2.msra.mxu0 0.0
          %685 = vmatprep.subr.mxu0 0.0
          %686 = vmatpush2.msra.mxu0 0.0
          %687 = vmatprep.subr.mxu0 0.0
          %688 = vmatpush2.msra.mxu0 0.0
          %689 = vmatprep.subr.mxu0 0.0
          %690 = vmatpush2.msra.mxu0 0.0
          %691 = vmatprep.mubr.f32.mxu0 0.0
          %v692 = vand.u32 %v574, 4294901760
          %v693 = vsub.f32 %v574, %v692
          %v694 = vand.u32 %v693, 4294901760
          %v695 = vsub.f32 %v693, %v694
          %v696 = vand.u32 %v695, 4294901760
          %697 = vmatmul.mubr.f32.gmra.mxu0 %v696
          %v698 = vpop.f32.mrf.mxu0
          %v699 = vadd.f32 %v370, %v698
          %v700 = vpop.f32.mrf.mxu0
          %v701 = vadd.f32 %v370, %v700
          %702 = vmatprep.mubr.f32.mxu0 0.0
          %v703 = vand.u32 %v577, 4294901760
          %v704 = vsub.f32 %v577, %v703
          %v705 = vand.u32 %v704, 4294901760
          %v706 = vsub.f32 %v704, %v705
          %v707 = vand.u32 %v706, 4294901760
          %708 = vmatmul.mubr.f32.gmra.mxu0 %v707
          %v709 = vpop.f32.mrf.mxu0
          %v710 = vadd.f32 %v375, %v709
          %v711 = vpop.f32.mrf.mxu0
          %v712 = vadd.f32 %v375, %v711
          %713 = vmatprep.mubr.f32.mxu0 0.0
          %v714 = vand.u32 %v580, 4294901760
          %v715 = vsub.f32 %v580, %v714
          %v716 = vand.u32 %v715, 4294901760
          %v717 = vsub.f32 %v715, %v716
          %v718 = vand.u32 %v717, 4294901760
          %719 = vmatmul.mubr.f32.gmra.mxu0 %v718
          %v720 = vpop.f32.mrf.mxu0
          %v721 = vadd.f32 %v380, %v720
          %v722 = vpop.f32.mrf.mxu0
          %v723 = vadd.f32 %v380, %v722
          %724 = vmatprep.mubr.f32.mxu0 0.0
          %v725 = vand.u32 %v583, 4294901760
          %v726 = vsub.f32 %v583, %v725
          %v727 = vand.u32 %v726, 4294901760
          %v728 = vsub.f32 %v726, %v727
          %v729 = vand.u32 %v728, 4294901760
          %730 = vmatmul.mubr.f32.gmra.mxu0 %v729
          %v731 = vpop.f32.mrf.mxu0
          %v732 = vadd.f32 %v385, %v731
          %v733 = vpop.f32.mrf.mxu0
          %v734 = vadd.f32 %v385, %v733
          %735 = vmatprep.mubr.f32.mxu0 0.0
          %v736 = vand.u32 %v586, 4294901760
          %v737 = vsub.f32 %v586, %v736
          %v738 = vand.u32 %v737, 4294901760
          %v739 = vsub.f32 %v737, %v738
          %v740 = vand.u32 %v739, 4294901760
          %741 = vmatmul.mubr.f32.gmra.mxu0 %v740
          %v742 = vpop.f32.mrf.mxu0
          %v743 = vadd.f32 %v390, %v742
          %v744 = vpop.f32.mrf.mxu0
          %v745 = vadd.f32 %v390, %v744
          %746 = vmatprep.mubr.f32.mxu0 0.0
          %v747 = vand.u32 %v589, 4294901760
          %v748 = vsub.f32 %v589, %v747
          %v749 = vand.u32 %v748, 4294901760
          %v750 = vsub.f32 %v748, %v749
          %v751 = vand.u32 %v750, 4294901760
          %752 = vmatmul.mubr.f32.gmra.mxu0 %v751
          %v753 = vpop.f32.mrf.mxu0
          %v754 = vadd.f32 %v395, %v753
          %v755 = vpop.f32.mrf.mxu0
          %v756 = vadd.f32 %v395, %v755
          %757 = vmatprep.mubr.f32.mxu0 0.0
          %v758 = vand.u32 %v592, 4294901760
          %v759 = vsub.f32 %v592, %v758
          %v760 = vand.u32 %v759, 4294901760
          %v761 = vsub.f32 %v759, %v760
          %v762 = vand.u32 %v761, 4294901760
          %763 = vmatmul.mubr.f32.gmra.mxu0 %v762
          %v764 = vpop.f32.mrf.mxu0
          %v765 = vadd.f32 %v400, %v764
          %v766 = vpop.f32.mrf.mxu0
          %v767 = vadd.f32 %v400, %v766
          %768 = vmatprep.mubr.f32.mxu0 0.0
          %v769 = vand.u32 %v595, 4294901760
          %v770 = vsub.f32 %v595, %v769
          %v771 = vand.u32 %v770, 4294901760
          %v772 = vsub.f32 %v770, %v771
          %v773 = vand.u32 %v772, 4294901760
          %774 = vmatmul.mubr.f32.gmra.mxu0 %v773
          %v775 = vpop.f32.mrf.mxu0
          %v776 = vadd.f32 %v405, %v775
          %v777 = vpop.f32.mrf.mxu0
          %v778 = vadd.f32 %v405, %v777
          %779 = vmatprep.mubr.f32.mxu0 0.0
          %v780 = vand.u32 %v598, 4294901760
          %v781 = vsub.f32 %v598, %v780
          %v782 = vand.u32 %v781, 4294901760
          %v783 = vsub.f32 %v781, %v782
          %v784 = vand.u32 %v783, 4294901760
          %785 = vmatmul.mubr.f32.gmra.mxu0 %v784
          %v786 = vpop.f32.mrf.mxu0
          %v787 = vadd.f32 %v410, %v786
          %v788 = vpop.f32.mrf.mxu0
          %v789 = vadd.f32 %v410, %v788
          %790 = vmatprep.mubr.f32.mxu0 0.0
          %v791 = vand.u32 %v601, 4294901760
          %v792 = vsub.f32 %v601, %v791
          %v793 = vand.u32 %v792, 4294901760
          %v794 = vsub.f32 %v792, %v793
          %v795 = vand.u32 %v794, 4294901760
          %796 = vmatmul.mubr.f32.gmra.mxu0 %v795
          %v797 = vpop.f32.mrf.mxu0
          %v798 = vadd.f32 %v415, %v797
          %v799 = vpop.f32.mrf.mxu0
          %v800 = vadd.f32 %v415, %v799
          %801 = vmatprep.mubr.f32.mxu0 0.0
          %v802 = vand.u32 %v604, 4294901760
          %v803 = vsub.f32 %v604, %v802
          %v804 = vand.u32 %v803, 4294901760
          %v805 = vsub.f32 %v803, %v804
          %v806 = vand.u32 %v805, 4294901760
          %807 = vmatmul.mubr.f32.gmra.mxu0 %v806
          %v808 = vpop.f32.mrf.mxu0
          %v809 = vadd.f32 %v420, %v808
          %v810 = vpop.f32.mrf.mxu0
          %v811 = vadd.f32 %v420, %v810
          %812 = vmatprep.mubr.f32.mxu0 0.0
          %v813 = vand.u32 %v607, 4294901760
          %v814 = vsub.f32 %v607, %v813
          %v815 = vand.u32 %v814, 4294901760
          %v816 = vsub.f32 %v814, %v815
          %v817 = vand.u32 %v816, 4294901760
          %818 = vmatmul.mubr.f32.gmra.mxu0 %v817
          %v819 = vpop.f32.mrf.mxu0
          %v820 = vadd.f32 %v425, %v819
          %v821 = vpop.f32.mrf.mxu0
          %v822 = vadd.f32 %v425, %v821
          %823 = vdwg.mxu0
          %824 = vmatprep.subr.mxu0 0.0
          %825 = vmatpush1.msra.mxu0 0.0
          %826 = vmatprep.subr.mxu0 0.0
          %827 = vmatpush1.msra.mxu0 0.0
          %828 = vmatprep.subr.mxu0 0.0
          %829 = vmatpush1.msra.mxu0 0.0
          %830 = vmatprep.subr.mxu0 0.0
          %831 = vmatpush1.msra.mxu0 0.0
          %832 = vmatprep.subr.mxu0 0.0
          %833 = vmatpush1.msra.mxu0 0.0
          %834 = vmatprep.subr.mxu0 0.0
          %835 = vmatpush1.msra.mxu0 0.0
          %836 = vmatprep.subr.mxu0 0.0
          %837 = vmatpush1.msra.mxu0 0.0
          %v838 = vand.u32 %v571, 4294901760
          %v839 = vsub.f32 %v571, %v838
          %v840 = vand.u32 %v839, 4294901760
          %v841 = vsub.f32 %v839, %v840
          %v842 = vand.u32 %v841, 4294901760
          %843 = vmatprep.subr.mxu0 %v842
          %v844 = vand.u32 %v559, 4294901760
          %v845 = vsub.f32 %v559, %v844
          %v846 = vand.u32 %v845, 4294901760
          %v847 = vsub.f32 %v845, %v846
          %v848 = vand.u32 %v847, 4294901760
          %849 = vmatpush1.msra.mxu0 %v848
          %v850 = vand.u32 %v570, 4294901760
          %v851 = vsub.f32 %v570, %v850
          %v852 = vand.u32 %v851, 4294901760
          %v853 = vsub.f32 %v851, %v852
          %v854 = vand.u32 %v853, 4294901760
          %855 = vmatprep.subr.mxu0 %v854
          %v856 = vand.u32 %v558, 4294901760
          %v857 = vsub.f32 %v558, %v856
          %v858 = vand.u32 %v857, 4294901760
          %v859 = vsub.f32 %v857, %v858
          %v860 = vand.u32 %v859, 4294901760
          %861 = vmatpush1.msra.mxu0 %v860
          %v862 = vand.u32 %v569, 4294901760
          %v863 = vsub.f32 %v569, %v862
          %v864 = vand.u32 %v863, 4294901760
          %v865 = vsub.f32 %v863, %v864
          %v866 = vand.u32 %v865, 4294901760
          %867 = vmatprep.subr.mxu0 %v866
          %v868 = vand.u32 %v557, 4294901760
          %v869 = vsub.f32 %v557, %v868
          %v870 = vand.u32 %v869, 4294901760
          %v871 = vsub.f32 %v869, %v870
          %v872 = vand.u32 %v871, 4294901760
          %873 = vmatpush1.msra.mxu0 %v872
          %v874 = vand.u32 %v511, 4294901760
          %v875 = vsub.f32 %v511, %v874
          %v876 = vand.u32 %v875, 4294901760
          %v877 = vsub.f32 %v875, %v876
          %v878 = vand.u32 %v877, 4294901760
          %879 = vmatprep.subr.mxu0 %v878
          %v880 = vand.u32 %v510, 4294901760
          %v881 = vsub.f32 %v510, %v880
          %v882 = vand.u32 %v881, 4294901760
          %v883 = vsub.f32 %v881, %v882
          %v884 = vand.u32 %v883, 4294901760
          %885 = vmatpush1.msra.mxu0 %v884
          %v886 = vand.u32 %v465, 4294901760
          %v887 = vsub.f32 %v465, %v886
          %v888 = vand.u32 %v887, 4294901760
          %v889 = vsub.f32 %v887, %v888
          %v890 = vand.u32 %v889, 4294901760
          %891 = vmatprep.subr.mxu0 %v890
          %v892 = vand.u32 %v464, 4294901760
          %v893 = vsub.f32 %v464, %v892
          %v894 = vand.u32 %v893, 4294901760
          %v895 = vsub.f32 %v893, %v894
          %v896 = vand.u32 %v895, 4294901760
          %897 = vmatpush1.msra.mxu0 %v896
          %v898 = vand.u32 %v489, 4294901760
          %v899 = vsub.f32 %v489, %v898
          %v900 = vand.u32 %v899, 4294901760
          %v901 = vsub.f32 %v899, %v900
          %v902 = vand.u32 %v901, 4294901760
          %903 = vmatprep.subr.mxu0 %v902
          %v904 = vand.u32 %v488, 4294901760
          %v905 = vsub.f32 %v488, %v904
          %v906 = vand.u32 %v905, 4294901760
          %v907 = vsub.f32 %v905, %v906
          %v908 = vand.u32 %v907, 4294901760
          %909 = vmatpush1.msra.mxu0 %v908
          %v910 = vand.u32 %v534, 4294901760
          %v911 = vsub.f32 %v534, %v910
          %v912 = vand.u32 %v911, 4294901760
          %v913 = vsub.f32 %v911, %v912
          %v914 = vand.u32 %v913, 4294901760
          %915 = vmatprep.subr.mxu0 %v914
          %v916 = vand.u32 %v543, 4294901760
          %v917 = vsub.f32 %v543, %v916
          %v918 = vand.u32 %v917, 4294901760
          %v919 = vsub.f32 %v917, %v918
          %v920 = vand.u32 %v919, 4294901760
          %921 = vmatpush1.msra.mxu0 %v920
          %v922 = vand.u32 %v533, 4294901760
          %v923 = vsub.f32 %v533, %v922
          %v924 = vand.u32 %v923, 4294901760
          %v925 = vsub.f32 %v923, %v924
          %v926 = vand.u32 %v925, 4294901760
          %927 = vmatprep.subr.mxu0 %v926
          %v928 = vand.u32 %v542, 4294901760
          %v929 = vsub.f32 %v542, %v928
          %v930 = vand.u32 %v929, 4294901760
          %v931 = vsub.f32 %v929, %v930
          %v932 = vand.u32 %v931, 4294901760
          %933 = vmatpush1.msra.mxu0 %v932
          %v934 = vand.u32 %v532, 4294901760
          %v935 = vsub.f32 %v532, %v934
          %v936 = vand.u32 %v935, 4294901760
          %v937 = vsub.f32 %v935, %v936
          %v938 = vand.u32 %v937, 4294901760
          %939 = vmatprep.subr.mxu0 %v938
          %v940 = vand.u32 %v541, 4294901760
          %v941 = vsub.f32 %v541, %v940
          %v942 = vand.u32 %v941, 4294901760
          %v943 = vsub.f32 %v941, %v942
          %v944 = vand.u32 %v943, 4294901760
          %945 = vmatpush1.msra.mxu0 %v944
          %946 = vmatprep.subr.mxu0 0.0
          %947 = vmatpush2.msra.mxu0 0.0
          %948 = vmatprep.subr.mxu0 0.0
          %949 = vmatpush2.msra.mxu0 0.0
          %950 = vmatprep.subr.mxu0 0.0
          %951 = vmatpush2.msra.mxu0 0.0
          %952 = vmatprep.subr.mxu0 0.0
          %953 = vmatpush2.msra.mxu0 0.0
          %954 = vmatprep.subr.mxu0 0.0
          %955 = vmatpush2.msra.mxu0 0.0
          %956 = vmatprep.subr.mxu0 0.0
          %957 = vmatpush2.msra.mxu0 0.0
          %958 = vmatprep.subr.mxu0 0.0
          %959 = vmatpush2.msra.mxu0 0.0
          %960 = vmatprep.subr.mxu0 0.0
          %961 = vmatpush2.msra.mxu0 0.0
          %962 = vmatprep.subr.mxu0 0.0
          %963 = vmatpush2.msra.mxu0 0.0
          %964 = vmatprep.subr.mxu0 0.0
          %965 = vmatpush2.msra.mxu0 0.0
          %966 = vmatprep.subr.mxu0 0.0
          %967 = vmatpush2.msra.mxu0 0.0
          %968 = vmatprep.subr.mxu0 0.0
          %969 = vmatpush2.msra.mxu0 0.0
          %970 = vmatprep.subr.mxu0 0.0
          %971 = vmatpush2.msra.mxu0 0.0
          %972 = vmatprep.subr.mxu0 0.0
          %973 = vmatpush2.msra.mxu0 0.0
          %974 = vmatprep.subr.mxu0 0.0
          %975 = vmatpush2.msra.mxu0 0.0
          %976 = vmatprep.subr.mxu0 0.0
          %977 = vmatpush2.msra.mxu0 0.0
          %978 = vmatprep.mubr.f32.mxu0 0.0
          %v979 = vand.u32 %v574, 4294901760
          %980 = vmatmul.mubr.f32.gmra.mxu0 %v979
          %v981 = vpop.f32.mrf.mxu0
          %v982 = vadd.f32 %v699, %v981
          %v983 = vpop.f32.mrf.mxu0
          %v984 = vadd.f32 %v701, %v983
          %985 = vmatprep.mubr.f32.mxu0 0.0
          %v986 = vand.u32 %v577, 4294901760
          %987 = vmatmul.mubr.f32.gmra.mxu0 %v986
          %v988 = vpop.f32.mrf.mxu0
          %v989 = vadd.f32 %v710, %v988
          %v990 = vpop.f32.mrf.mxu0
          %v991 = vadd.f32 %v712, %v990
          %992 = vmatprep.mubr.f32.mxu0 0.0
          %v993 = vand.u32 %v580, 4294901760
          %994 = vmatmul.mubr.f32.gmra.mxu0 %v993
          %v995 = vpop.f32.mrf.mxu0
          %v996 = vadd.f32 %v721, %v995
          %v997 = vpop.f32.mrf.mxu0
          %v998 = vadd.f32 %v723, %v997
          %999 = vmatprep.mubr.f32.mxu0 0.0
          %v1000 = vand.u32 %v583, 4294901760
          %1001 = vmatmul.mubr.f32.gmra.mxu0 %v1000
          %v1002 = vpop.f32.mrf.mxu0
          %v1003 = vadd.f32 %v732, %v1002
          %v1004 = vpop.f32.mrf.mxu0
          %v1005 = vadd.f32 %v734, %v1004
          %1006 = vmatprep.mubr.f32.mxu0 0.0
          %v1007 = vand.u32 %v586, 4294901760
          %1008 = vmatmul.mubr.f32.gmra.mxu0 %v1007
          %v1009 = vpop.f32.mrf.mxu0
          %v1010 = vadd.f32 %v743, %v1009
          %v1011 = vpop.f32.mrf.mxu0
          %v1012 = vadd.f32 %v745, %v1011
          %1013 = vmatprep.mubr.f32.mxu0 0.0
          %v1014 = vand.u32 %v589, 4294901760
          %1015 = vmatmul.mubr.f32.gmra.mxu0 %v1014
          %v1016 = vpop.f32.mrf.mxu0
          %v1017 = vadd.f32 %v754, %v1016
          %v1018 = vpop.f32.mrf.mxu0
          %v1019 = vadd.f32 %v756, %v1018
          %1020 = vmatprep.mubr.f32.mxu0 0.0
          %v1021 = vand.u32 %v592, 4294901760
          %1022 = vmatmul.mubr.f32.gmra.mxu0 %v1021
          %v1023 = vpop.f32.mrf.mxu0
          %v1024 = vadd.f32 %v765, %v1023
          %v1025 = vpop.f32.mrf.mxu0
          %v1026 = vadd.f32 %v767, %v1025
          %1027 = vmatprep.mubr.f32.mxu0 0.0
          %v1028 = vand.u32 %v595, 4294901760
          %1029 = vmatmul.mubr.f32.gmra.mxu0 %v1028
          %v1030 = vpop.f32.mrf.mxu0
          %v1031 = vadd.f32 %v776, %v1030
          %v1032 = vpop.f32.mrf.mxu0
          %v1033 = vadd.f32 %v778, %v1032
          %1034 = vmatprep.mubr.f32.mxu0 0.0
          %v1035 = vand.u32 %v598, 4294901760
          %1036 = vmatmul.mubr.f32.gmra.mxu0 %v1035
          %v1037 = vpop.f32.mrf.mxu0
          %v1038 = vadd.f32 %v787, %v1037
          %v1039 = vpop.f32.mrf.mxu0
          %v1040 = vadd.f32 %v789, %v1039
          %1041 = vmatprep.mubr.f32.mxu0 0.0
          %v1042 = vand.u32 %v601, 4294901760
          %1043 = vmatmul.mubr.f32.gmra.mxu0 %v1042
          %v1044 = vpop.f32.mrf.mxu0
          %v1045 = vadd.f32 %v798, %v1044
          %v1046 = vpop.f32.mrf.mxu0
          %v1047 = vadd.f32 %v800, %v1046
          %1048 = vmatprep.mubr.f32.mxu0 0.0
          %v1049 = vand.u32 %v604, 4294901760
          %1050 = vmatmul.mubr.f32.gmra.mxu0 %v1049
          %v1051 = vpop.f32.mrf.mxu0
          %v1052 = vadd.f32 %v809, %v1051
          %v1053 = vpop.f32.mrf.mxu0
          %v1054 = vadd.f32 %v811, %v1053
          %1055 = vmatprep.mubr.f32.mxu0 0.0
          %v1056 = vand.u32 %v607, 4294901760
          %1057 = vmatmul.mubr.f32.gmra.mxu0 %v1056
          %v1058 = vpop.f32.mrf.mxu0
          %v1059 = vadd.f32 %v820, %v1058
          %v1060 = vpop.f32.mrf.mxu0
          %v1061 = vadd.f32 %v822, %v1060
          %1062 = vdwg.mxu0
          %1063 = vmatprep.subr.mxu0 0.0
          %1064 = vmatpush1.msra.mxu0 0.0
          %1065 = vmatprep.subr.mxu0 0.0
          %1066 = vmatpush1.msra.mxu0 0.0
          %1067 = vmatprep.subr.mxu0 0.0
          %1068 = vmatpush1.msra.mxu0 0.0
          %1069 = vmatprep.subr.mxu0 0.0
          %1070 = vmatpush1.msra.mxu0 0.0
          %1071 = vmatprep.subr.mxu0 0.0
          %1072 = vmatpush1.msra.mxu0 0.0
          %1073 = vmatprep.subr.mxu0 0.0
          %1074 = vmatpush1.msra.mxu0 0.0
          %1075 = vmatprep.subr.mxu0 0.0
          %1076 = vmatpush1.msra.mxu0 0.0
          %v1077 = vand.u32 %v571, 4294901760
          %v1078 = vsub.f32 %v571, %v1077
          %1079 = vmatprep.subr.mxu0 %v1078
          %v1080 = vand.u32 %v559, 4294901760
          %v1081 = vsub.f32 %v559, %v1080
          %1082 = vmatpush1.msra.mxu0 %v1081
          %v1083 = vand.u32 %v570, 4294901760
          %v1084 = vsub.f32 %v570, %v1083
          %1085 = vmatprep.subr.mxu0 %v1084
          %v1086 = vand.u32 %v558, 4294901760
          %v1087 = vsub.f32 %v558, %v1086
          %1088 = vmatpush1.msra.mxu0 %v1087
          %v1089 = vand.u32 %v569, 4294901760
          %v1090 = vsub.f32 %v569, %v1089
          %1091 = vmatprep.subr.mxu0 %v1090
          %v1092 = vand.u32 %v557, 4294901760
          %v1093 = vsub.f32 %v557, %v1092
          %1094 = vmatpush1.msra.mxu0 %v1093
          %v1095 = vand.u32 %v511, 4294901760
          %v1096 = vsub.f32 %v511, %v1095
          %1097 = vmatprep.subr.mxu0 %v1096
          %v1098 = vand.u32 %v510, 4294901760
          %v1099 = vsub.f32 %v510, %v1098
          %1100 = vmatpush1.msra.mxu0 %v1099
          %v1101 = vand.u32 %v465, 4294901760
          %v1102 = vsub.f32 %v465, %v1101
          %1103 = vmatprep.subr.mxu0 %v1102
          %v1104 = vand.u32 %v464, 4294901760
          %v1105 = vsub.f32 %v464, %v1104
          %1106 = vmatpush1.msra.mxu0 %v1105
          %v1107 = vand.u32 %v489, 4294901760
          %v1108 = vsub.f32 %v489, %v1107
          %1109 = vmatprep.subr.mxu0 %v1108
          %v1110 = vand.u32 %v488, 4294901760
          %v1111 = vsub.f32 %v488, %v1110
          %1112 = vmatpush1.msra.mxu0 %v1111
          %v1113 = vand.u32 %v534, 4294901760
          %v1114 = vsub.f32 %v534, %v1113
          %1115 = vmatprep.subr.mxu0 %v1114
          %v1116 = vand.u32 %v543, 4294901760
          %v1117 = vsub.f32 %v543, %v1116
          %1118 = vmatpush1.msra.mxu0 %v1117
          %v1119 = vand.u32 %v533, 4294901760
          %v1120 = vsub.f32 %v533, %v1119
          %1121 = vmatprep.subr.mxu0 %v1120
          %v1122 = vand.u32 %v542, 4294901760
          %v1123 = vsub.f32 %v542, %v1122
          %1124 = vmatpush1.msra.mxu0 %v1123
          %v1125 = vand.u32 %v532, 4294901760
          %v1126 = vsub.f32 %v532, %v1125
          %1127 = vmatprep.subr.mxu0 %v1126
          %v1128 = vand.u32 %v541, 4294901760
          %v1129 = vsub.f32 %v541, %v1128
          %1130 = vmatpush1.msra.mxu0 %v1129
          %1131 = vmatprep.subr.mxu0 0.0
          %1132 = vmatpush2.msra.mxu0 0.0
          %1133 = vmatprep.subr.mxu0 0.0
          %1134 = vmatpush2.msra.mxu0 0.0
          %1135 = vmatprep.subr.mxu0 0.0
          %1136 = vmatpush2.msra.mxu0 0.0
          %1137 = vmatprep.subr.mxu0 0.0
          %1138 = vmatpush2.msra.mxu0 0.0
          %1139 = vmatprep.subr.mxu0 0.0
          %1140 = vmatpush2.msra.mxu0 0.0
          %1141 = vmatprep.subr.mxu0 0.0
          %1142 = vmatpush2.msra.mxu0 0.0
          %1143 = vmatprep.subr.mxu0 0.0
          %1144 = vmatpush2.msra.mxu0 0.0
          %1145 = vmatprep.subr.mxu0 0.0
          %1146 = vmatpush2.msra.mxu0 0.0
          %1147 = vmatprep.subr.mxu0 0.0
          %1148 = vmatpush2.msra.mxu0 0.0
          %1149 = vmatprep.subr.mxu0 0.0
          %1150 = vmatpush2.msra.mxu0 0.0
          %1151 = vmatprep.subr.mxu0 0.0
          %1152 = vmatpush2.msra.mxu0 0.0
          %1153 = vmatprep.subr.mxu0 0.0
          %1154 = vmatpush2.msra.mxu0 0.0
          %1155 = vmatprep.subr.mxu0 0.0
          %1156 = vmatpush2.msra.mxu0 0.0
          %1157 = vmatprep.subr.mxu0 0.0
          %1158 = vmatpush2.msra.mxu0 0.0
          %1159 = vmatprep.subr.mxu0 0.0
          %1160 = vmatpush2.msra.mxu0 0.0
          %1161 = vmatprep.subr.mxu0 0.0
          %1162 = vmatpush2.msra.mxu0 0.0
          %1163 = vmatprep.mubr.f32.mxu0 0.0
          %v1164 = vand.u32 %v574, 4294901760
          %v1165 = vsub.f32 %v574, %v1164
          %1166 = vmatmul.mubr.f32.gmra.mxu0 %v1165
          %v1167 = vpop.f32.mrf.mxu0
          %v1168 = vadd.f32 %v982, %v1167
          %v1169 = vpop.f32.mrf.mxu0
          %v1170 = vadd.f32 %v984, %v1169
          %1171 = vmatprep.mubr.f32.mxu0 0.0
          %v1172 = vand.u32 %v577, 4294901760
          %v1173 = vsub.f32 %v577, %v1172
          %1174 = vmatmul.mubr.f32.gmra.mxu0 %v1173
          %v1175 = vpop.f32.mrf.mxu0
          %v1176 = vadd.f32 %v989, %v1175
          %v1177 = vpop.f32.mrf.mxu0
          %v1178 = vadd.f32 %v991, %v1177
          %1179 = vmatprep.mubr.f32.mxu0 0.0
          %v1180 = vand.u32 %v580, 4294901760
          %v1181 = vsub.f32 %v580, %v1180
          %1182 = vmatmul.mubr.f32.gmra.mxu0 %v1181
          %v1183 = vpop.f32.mrf.mxu0
          %v1184 = vadd.f32 %v996, %v1183
          %v1185 = vpop.f32.mrf.mxu0
          %v1186 = vadd.f32 %v998, %v1185
          %1187 = vmatprep.mubr.f32.mxu0 0.0
          %v1188 = vand.u32 %v583, 4294901760
          %v1189 = vsub.f32 %v583, %v1188
          %1190 = vmatmul.mubr.f32.gmra.mxu0 %v1189
          %v1191 = vpop.f32.mrf.mxu0
          %v1192 = vadd.f32 %v1003, %v1191
          %v1193 = vpop.f32.mrf.mxu0
          %v1194 = vadd.f32 %v1005, %v1193
          %1195 = vmatprep.mubr.f32.mxu0 0.0
          %v1196 = vand.u32 %v586, 4294901760
          %v1197 = vsub.f32 %v586, %v1196
          %1198 = vmatmul.mubr.f32.gmra.mxu0 %v1197
          %v1199 = vpop.f32.mrf.mxu0
          %v1200 = vadd.f32 %v1010, %v1199
          %v1201 = vpop.f32.mrf.mxu0
          %v1202 = vadd.f32 %v1012, %v1201
          %1203 = vmatprep.mubr.f32.mxu0 0.0
          %v1204 = vand.u32 %v589, 4294901760
          %v1205 = vsub.f32 %v589, %v1204
          %1206 = vmatmul.mubr.f32.gmra.mxu0 %v1205
          %v1207 = vpop.f32.mrf.mxu0
          %v1208 = vadd.f32 %v1017, %v1207
          %v1209 = vpop.f32.mrf.mxu0
          %v1210 = vadd.f32 %v1019, %v1209
          %1211 = vmatprep.mubr.f32.mxu0 0.0
          %v1212 = vand.u32 %v592, 4294901760
          %v1213 = vsub.f32 %v592, %v1212
          %1214 = vmatmul.mubr.f32.gmra.mxu0 %v1213
          %v1215 = vpop.f32.mrf.mxu0
          %v1216 = vadd.f32 %v1024, %v1215
          %v1217 = vpop.f32.mrf.mxu0
          %v1218 = vadd.f32 %v1026, %v1217
          %1219 = vmatprep.mubr.f32.mxu0 0.0
          %v1220 = vand.u32 %v595, 4294901760
          %v1221 = vsub.f32 %v595, %v1220
          %1222 = vmatmul.mubr.f32.gmra.mxu0 %v1221
          %v1223 = vpop.f32.mrf.mxu0
          %v1224 = vadd.f32 %v1031, %v1223
          %v1225 = vpop.f32.mrf.mxu0
          %v1226 = vadd.f32 %v1033, %v1225
          %1227 = vmatprep.mubr.f32.mxu0 0.0
          %v1228 = vand.u32 %v598, 4294901760
          %v1229 = vsub.f32 %v598, %v1228
          %1230 = vmatmul.mubr.f32.gmra.mxu0 %v1229
          %v1231 = vpop.f32.mrf.mxu0
          %v1232 = vadd.f32 %v1038, %v1231
          %v1233 = vpop.f32.mrf.mxu0
          %v1234 = vadd.f32 %v1040, %v1233
          %1235 = vmatprep.mubr.f32.mxu0 0.0
          %v1236 = vand.u32 %v601, 4294901760
          %v1237 = vsub.f32 %v601, %v1236
          %1238 = vmatmul.mubr.f32.gmra.mxu0 %v1237
          %v1239 = vpop.f32.mrf.mxu0
          %v1240 = vadd.f32 %v1045, %v1239
          %v1241 = vpop.f32.mrf.mxu0
          %v1242 = vadd.f32 %v1047, %v1241
          %1243 = vmatprep.mubr.f32.mxu0 0.0
          %v1244 = vand.u32 %v604, 4294901760
          %v1245 = vsub.f32 %v604, %v1244
          %1246 = vmatmul.mubr.f32.gmra.mxu0 %v1245
          %v1247 = vpop.f32.mrf.mxu0
          %v1248 = vadd.f32 %v1052, %v1247
          %v1249 = vpop.f32.mrf.mxu0
          %v1250 = vadd.f32 %v1054, %v1249
          %1251 = vmatprep.mubr.f32.mxu0 0.0
          %v1252 = vand.u32 %v607, 4294901760
          %v1253 = vsub.f32 %v607, %v1252
          %1254 = vmatmul.mubr.f32.gmra.mxu0 %v1253
          %v1255 = vpop.f32.mrf.mxu0
          %v1256 = vadd.f32 %v1059, %v1255
          %v1257 = vpop.f32.mrf.mxu0
          %v1258 = vadd.f32 %v1061, %v1257
          %1259 = vdwg.mxu0
          %1260 = vmatprep.subr.mxu0 0.0
          %1261 = vmatpush1.msra.mxu0 0.0
          %1262 = vmatprep.subr.mxu0 0.0
          %1263 = vmatpush1.msra.mxu0 0.0
          %1264 = vmatprep.subr.mxu0 0.0
          %1265 = vmatpush1.msra.mxu0 0.0
          %1266 = vmatprep.subr.mxu0 0.0
          %1267 = vmatpush1.msra.mxu0 0.0
          %1268 = vmatprep.subr.mxu0 0.0
          %1269 = vmatpush1.msra.mxu0 0.0
          %1270 = vmatprep.subr.mxu0 0.0
          %1271 = vmatpush1.msra.mxu0 0.0
          %1272 = vmatprep.subr.mxu0 0.0
          %1273 = vmatpush1.msra.mxu0 0.0
          %v1274 = vand.u32 %v571, 4294901760
          %1275 = vmatprep.subr.mxu0 %v1274
          %v1276 = vand.u32 %v559, 4294901760
          %1277 = vmatpush1.msra.mxu0 %v1276
          %v1278 = vand.u32 %v570, 4294901760
          %1279 = vmatprep.subr.mxu0 %v1278
          %v1280 = vand.u32 %v558, 4294901760
          %1281 = vmatpush1.msra.mxu0 %v1280
          %v1282 = vand.u32 %v569, 4294901760
          %1283 = vmatprep.subr.mxu0 %v1282
          %v1284 = vand.u32 %v557, 4294901760
          %1285 = vmatpush1.msra.mxu0 %v1284
          %v1286 = vand.u32 %v511, 4294901760
          %1287 = vmatprep.subr.mxu0 %v1286
          %v1288 = vand.u32 %v510, 4294901760
          %1289 = vmatpush1.msra.mxu0 %v1288
          %v1290 = vand.u32 %v465, 4294901760
          %1291 = vmatprep.subr.mxu0 %v1290
          %v1292 = vand.u32 %v464, 4294901760
          %1293 = vmatpush1.msra.mxu0 %v1292
          %v1294 = vand.u32 %v489, 4294901760
          %1295 = vmatprep.subr.mxu0 %v1294
          %v1296 = vand.u32 %v488, 4294901760
          %1297 = vmatpush1.msra.mxu0 %v1296
          %v1298 = vand.u32 %v534, 4294901760
          %1299 = vmatprep.subr.mxu0 %v1298
          %v1300 = vand.u32 %v543, 4294901760
          %1301 = vmatpush1.msra.mxu0 %v1300
          %v1302 = vand.u32 %v533, 4294901760
          %1303 = vmatprep.subr.mxu0 %v1302
          %v1304 = vand.u32 %v542, 4294901760
          %1305 = vmatpush1.msra.mxu0 %v1304
          %v1306 = vand.u32 %v532, 4294901760
          %1307 = vmatprep.subr.mxu0 %v1306
          %v1308 = vand.u32 %v541, 4294901760
          %1309 = vmatpush1.msra.mxu0 %v1308
          %1310 = vmatprep.subr.mxu0 0.0
          %1311 = vmatpush2.msra.mxu0 0.0
          %1312 = vmatprep.subr.mxu0 0.0
          %1313 = vmatpush2.msra.mxu0 0.0
          %1314 = vmatprep.subr.mxu0 0.0
          %1315 = vmatpush2.msra.mxu0 0.0
          %1316 = vmatprep.subr.mxu0 0.0
          %1317 = vmatpush2.msra.mxu0 0.0
          %1318 = vmatprep.subr.mxu0 0.0
          %1319 = vmatpush2.msra.mxu0 0.0
          %1320 = vmatprep.subr.mxu0 0.0
          %1321 = vmatpush2.msra.mxu0 0.0
          %1322 = vmatprep.subr.mxu0 0.0
          %1323 = vmatpush2.msra.mxu0 0.0
          %1324 = vmatprep.subr.mxu0 0.0
          %1325 = vmatpush2.msra.mxu0 0.0
          %1326 = vmatprep.subr.mxu0 0.0
          %1327 = vmatpush2.msra.mxu0 0.0
          %1328 = vmatprep.subr.mxu0 0.0
          %1329 = vmatpush2.msra.mxu0 0.0
          %1330 = vmatprep.subr.mxu0 0.0
          %1331 = vmatpush2.msra.mxu0 0.0
          %1332 = vmatprep.subr.mxu0 0.0
          %1333 = vmatpush2.msra.mxu0 0.0
          %1334 = vmatprep.subr.mxu0 0.0
          %1335 = vmatpush2.msra.mxu0 0.0
          %1336 = vmatprep.subr.mxu0 0.0
          %1337 = vmatpush2.msra.mxu0 0.0
          %1338 = vmatprep.subr.mxu0 0.0
          %1339 = vmatpush2.msra.mxu0 0.0
          %1340 = vmatprep.subr.mxu0 0.0
          %1341 = vmatpush2.msra.mxu0 0.0
          %1342 = vmatprep.mubr.f32.mxu0 0.0
          %v1343 = vand.u32 %v574, 4294901760
          %v1344 = vsub.f32 %v574, %v1343
          %v1345 = vand.u32 %v1344, 4294901760
          %1346 = vmatmul.mubr.f32.gmra.mxu0 %v1345
          %v1347 = vpop.f32.mrf.mxu0
          %v1348 = vadd.f32 %v1168, %v1347
          %v1349 = vpop.f32.mrf.mxu0
          %v1350 = vadd.f32 %v1170, %v1349
          %1351 = vmatprep.mubr.f32.mxu0 0.0
          %v1352 = vand.u32 %v577, 4294901760
          %v1353 = vsub.f32 %v577, %v1352
          %v1354 = vand.u32 %v1353, 4294901760
          %1355 = vmatmul.mubr.f32.gmra.mxu0 %v1354
          %v1356 = vpop.f32.mrf.mxu0
          %v1357 = vadd.f32 %v1176, %v1356
          %v1358 = vpop.f32.mrf.mxu0
          %v1359 = vadd.f32 %v1178, %v1358
          %1360 = vmatprep.mubr.f32.mxu0 0.0
          %v1361 = vand.u32 %v580, 4294901760
          %v1362 = vsub.f32 %v580, %v1361
          %v1363 = vand.u32 %v1362, 4294901760
          %1364 = vmatmul.mubr.f32.gmra.mxu0 %v1363
          %v1365 = vpop.f32.mrf.mxu0
          %v1366 = vadd.f32 %v1184, %v1365
          %v1367 = vpop.f32.mrf.mxu0
          %v1368 = vadd.f32 %v1186, %v1367
          %1369 = vmatprep.mubr.f32.mxu0 0.0
          %v1370 = vand.u32 %v583, 4294901760
          %v1371 = vsub.f32 %v583, %v1370
          %v1372 = vand.u32 %v1371, 4294901760
          %1373 = vmatmul.mubr.f32.gmra.mxu0 %v1372
          %v1374 = vpop.f32.mrf.mxu0
          %v1375 = vadd.f32 %v1192, %v1374
          %v1376 = vpop.f32.mrf.mxu0
          %v1377 = vadd.f32 %v1194, %v1376
          %1378 = vmatprep.mubr.f32.mxu0 0.0
          %v1379 = vand.u32 %v586, 4294901760
          %v1380 = vsub.f32 %v586, %v1379
          %v1381 = vand.u32 %v1380, 4294901760
          %1382 = vmatmul.mubr.f32.gmra.mxu0 %v1381
          %v1383 = vpop.f32.mrf.mxu0
          %v1384 = vadd.f32 %v1200, %v1383
          %v1385 = vpop.f32.mrf.mxu0
          %v1386 = vadd.f32 %v1202, %v1385
          %1387 = vmatprep.mubr.f32.mxu0 0.0
          %v1388 = vand.u32 %v589, 4294901760
          %v1389 = vsub.f32 %v589, %v1388
          %v1390 = vand.u32 %v1389, 4294901760
          %1391 = vmatmul.mubr.f32.gmra.mxu0 %v1390
          %v1392 = vpop.f32.mrf.mxu0
          %v1393 = vadd.f32 %v1208, %v1392
          %v1394 = vpop.f32.mrf.mxu0
          %v1395 = vadd.f32 %v1210, %v1394
          %1396 = vmatprep.mubr.f32.mxu0 0.0
          %v1397 = vand.u32 %v592, 4294901760
          %v1398 = vsub.f32 %v592, %v1397
          %v1399 = vand.u32 %v1398, 4294901760
          %1400 = vmatmul.mubr.f32.gmra.mxu0 %v1399
          %v1401 = vpop.f32.mrf.mxu0
          %v1402 = vadd.f32 %v1216, %v1401
          %v1403 = vpop.f32.mrf.mxu0
          %v1404 = vadd.f32 %v1218, %v1403
          %1405 = vmatprep.mubr.f32.mxu0 0.0
          %v1406 = vand.u32 %v595, 4294901760
          %v1407 = vsub.f32 %v595, %v1406
          %v1408 = vand.u32 %v1407, 4294901760
          %1409 = vmatmul.mubr.f32.gmra.mxu0 %v1408
          %v1410 = vpop.f32.mrf.mxu0
          %v1411 = vadd.f32 %v1224, %v1410
          %v1412 = vpop.f32.mrf.mxu0
          %v1413 = vadd.f32 %v1226, %v1412
          %1414 = vmatprep.mubr.f32.mxu0 0.0
          %v1415 = vand.u32 %v598, 4294901760
          %v1416 = vsub.f32 %v598, %v1415
          %v1417 = vand.u32 %v1416, 4294901760
          %1418 = vmatmul.mubr.f32.gmra.mxu0 %v1417
          %v1419 = vpop.f32.mrf.mxu0
          %v1420 = vadd.f32 %v1232, %v1419
          %v1421 = vpop.f32.mrf.mxu0
          %v1422 = vadd.f32 %v1234, %v1421
          %1423 = vmatprep.mubr.f32.mxu0 0.0
          %v1424 = vand.u32 %v601, 4294901760
          %v1425 = vsub.f32 %v601, %v1424
          %v1426 = vand.u32 %v1425, 4294901760
          %1427 = vmatmul.mubr.f32.gmra.mxu0 %v1426
          %v1428 = vpop.f32.mrf.mxu0
          %v1429 = vadd.f32 %v1240, %v1428
          %v1430 = vpop.f32.mrf.mxu0
          %v1431 = vadd.f32 %v1242, %v1430
          %1432 = vmatprep.mubr.f32.mxu0 0.0
          %v1433 = vand.u32 %v604, 4294901760
          %v1434 = vsub.f32 %v604, %v1433
          %v1435 = vand.u32 %v1434, 4294901760
          %1436 = vmatmul.mubr.f32.gmra.mxu0 %v1435
          %v1437 = vpop.f32.mrf.mxu0
          %v1438 = vadd.f32 %v1248, %v1437
          %v1439 = vpop.f32.mrf.mxu0
          %v1440 = vadd.f32 %v1250, %v1439
          %1441 = vmatprep.mubr.f32.mxu0 0.0
          %v1442 = vand.u32 %v607, 4294901760
          %v1443 = vsub.f32 %v607, %v1442
          %v1444 = vand.u32 %v1443, 4294901760
          %1445 = vmatmul.mubr.f32.gmra.mxu0 %v1444
          %v1446 = vpop.f32.mrf.mxu0
          %v1447 = vadd.f32 %v1256, %v1446
          %v1448 = vpop.f32.mrf.mxu0
          %v1449 = vadd.f32 %v1258, %v1448
          %1450 = vdwg.mxu0
          %1451 = vmatprep.subr.mxu0 0.0
          %1452 = vmatpush1.msra.mxu0 0.0
          %1453 = vmatprep.subr.mxu0 0.0
          %1454 = vmatpush1.msra.mxu0 0.0
          %1455 = vmatprep.subr.mxu0 0.0
          %1456 = vmatpush1.msra.mxu0 0.0
          %1457 = vmatprep.subr.mxu0 0.0
          %1458 = vmatpush1.msra.mxu0 0.0
          %1459 = vmatprep.subr.mxu0 0.0
          %1460 = vmatpush1.msra.mxu0 0.0
          %1461 = vmatprep.subr.mxu0 0.0
          %1462 = vmatpush1.msra.mxu0 0.0
          %1463 = vmatprep.subr.mxu0 0.0
          %1464 = vmatpush1.msra.mxu0 0.0
          %v1465 = vand.u32 %v571, 4294901760
          %v1466 = vsub.f32 %v571, %v1465
          %v1467 = vand.u32 %v1466, 4294901760
          %1468 = vmatprep.subr.mxu0 %v1467
          %v1469 = vand.u32 %v559, 4294901760
          %v1470 = vsub.f32 %v559, %v1469
          %v1471 = vand.u32 %v1470, 4294901760
          %1472 = vmatpush1.msra.mxu0 %v1471
          %v1473 = vand.u32 %v570, 4294901760
          %v1474 = vsub.f32 %v570, %v1473
          %v1475 = vand.u32 %v1474, 4294901760
          %1476 = vmatprep.subr.mxu0 %v1475
          %v1477 = vand.u32 %v558, 4294901760
          %v1478 = vsub.f32 %v558, %v1477
          %v1479 = vand.u32 %v1478, 4294901760
          %1480 = vmatpush1.msra.mxu0 %v1479
          %v1481 = vand.u32 %v569, 4294901760
          %v1482 = vsub.f32 %v569, %v1481
          %v1483 = vand.u32 %v1482, 4294901760
          %1484 = vmatprep.subr.mxu0 %v1483
          %v1485 = vand.u32 %v557, 4294901760
          %v1486 = vsub.f32 %v557, %v1485
          %v1487 = vand.u32 %v1486, 4294901760
          %1488 = vmatpush1.msra.mxu0 %v1487
          %v1489 = vand.u32 %v511, 4294901760
          %v1490 = vsub.f32 %v511, %v1489
          %v1491 = vand.u32 %v1490, 4294901760
          %1492 = vmatprep.subr.mxu0 %v1491
          %v1493 = vand.u32 %v510, 4294901760
          %v1494 = vsub.f32 %v510, %v1493
          %v1495 = vand.u32 %v1494, 4294901760
          %1496 = vmatpush1.msra.mxu0 %v1495
          %v1497 = vand.u32 %v465, 4294901760
          %v1498 = vsub.f32 %v465, %v1497
          %v1499 = vand.u32 %v1498, 4294901760
          %1500 = vmatprep.subr.mxu0 %v1499
          %v1501 = vand.u32 %v464, 4294901760
          %v1502 = vsub.f32 %v464, %v1501
          %v1503 = vand.u32 %v1502, 4294901760
          %1504 = vmatpush1.msra.mxu0 %v1503
          %v1505 = vand.u32 %v489, 4294901760
          %v1506 = vsub.f32 %v489, %v1505
          %v1507 = vand.u32 %v1506, 4294901760
          %1508 = vmatprep.subr.mxu0 %v1507
          %v1509 = vand.u32 %v488, 4294901760
          %v1510 = vsub.f32 %v488, %v1509
          %v1511 = vand.u32 %v1510, 4294901760
          %1512 = vmatpush1.msra.mxu0 %v1511
          %v1513 = vand.u32 %v534, 4294901760
          %v1514 = vsub.f32 %v534, %v1513
          %v1515 = vand.u32 %v1514, 4294901760
          %1516 = vmatprep.subr.mxu0 %v1515
          %v1517 = vand.u32 %v543, 4294901760
          %v1518 = vsub.f32 %v543, %v1517
          %v1519 = vand.u32 %v1518, 4294901760
          %1520 = vmatpush1.msra.mxu0 %v1519
          %v1521 = vand.u32 %v533, 4294901760
          %v1522 = vsub.f32 %v533, %v1521
          %v1523 = vand.u32 %v1522, 4294901760
          %1524 = vmatprep.subr.mxu0 %v1523
          %v1525 = vand.u32 %v542, 4294901760
          %v1526 = vsub.f32 %v542, %v1525
          %v1527 = vand.u32 %v1526, 4294901760
          %1528 = vmatpush1.msra.mxu0 %v1527
          %v1529 = vand.u32 %v532, 4294901760
          %v1530 = vsub.f32 %v532, %v1529
          %v1531 = vand.u32 %v1530, 4294901760
          %1532 = vmatprep.subr.mxu0 %v1531
          %v1533 = vand.u32 %v541, 4294901760
          %v1534 = vsub.f32 %v541, %v1533
          %v1535 = vand.u32 %v1534, 4294901760
          %1536 = vmatpush1.msra.mxu0 %v1535
          %1537 = vmatprep.subr.mxu0 0.0
          %1538 = vmatpush2.msra.mxu0 0.0
          %1539 = vmatprep.subr.mxu0 0.0
          %1540 = vmatpush2.msra.mxu0 0.0
          %1541 = vmatprep.subr.mxu0 0.0
          %1542 = vmatpush2.msra.mxu0 0.0
          %1543 = vmatprep.subr.mxu0 0.0
          %1544 = vmatpush2.msra.mxu0 0.0
          %1545 = vmatprep.subr.mxu0 0.0
          %1546 = vmatpush2.msra.mxu0 0.0
          %1547 = vmatprep.subr.mxu0 0.0
          %1548 = vmatpush2.msra.mxu0 0.0
          %1549 = vmatprep.subr.mxu0 0.0
          %1550 = vmatpush2.msra.mxu0 0.0
          %1551 = vmatprep.subr.mxu0 0.0
          %1552 = vmatpush2.msra.mxu0 0.0
          %1553 = vmatprep.subr.mxu0 0.0
          %1554 = vmatpush2.msra.mxu0 0.0
          %1555 = vmatprep.subr.mxu0 0.0
          %1556 = vmatpush2.msra.mxu0 0.0
          %1557 = vmatprep.subr.mxu0 0.0
          %1558 = vmatpush2.msra.mxu0 0.0
          %1559 = vmatprep.subr.mxu0 0.0
          %1560 = vmatpush2.msra.mxu0 0.0
          %1561 = vmatprep.subr.mxu0 0.0
          %1562 = vmatpush2.msra.mxu0 0.0
          %1563 = vmatprep.subr.mxu0 0.0
          %1564 = vmatpush2.msra.mxu0 0.0
          %1565 = vmatprep.subr.mxu0 0.0
          %1566 = vmatpush2.msra.mxu0 0.0
          %1567 = vmatprep.subr.mxu0 0.0
          %1568 = vmatpush2.msra.mxu0 0.0
          %1569 = vmatprep.mubr.f32.mxu0 0.0
          %v1570 = vand.u32 %v574, 4294901760
          %1571 = vmatmul.mubr.f32.gmra.mxu0 %v1570
          %v1572 = vpop.f32.mrf.mxu0
          %v1573 = vadd.f32 %v1348, %v1572
          %v1574 = vpop.f32.mrf.mxu0
          %v1575 = vadd.f32 %v1350, %v1574
          %1576 = vmatprep.mubr.f32.mxu0 0.0
          %v1577 = vand.u32 %v577, 4294901760
          %1578 = vmatmul.mubr.f32.gmra.mxu0 %v1577
          %v1579 = vpop.f32.mrf.mxu0
          %v1580 = vadd.f32 %v1357, %v1579
          %v1581 = vpop.f32.mrf.mxu0
          %v1582 = vadd.f32 %v1359, %v1581
          %1583 = vmatprep.mubr.f32.mxu0 0.0
          %v1584 = vand.u32 %v580, 4294901760
          %1585 = vmatmul.mubr.f32.gmra.mxu0 %v1584
          %v1586 = vpop.f32.mrf.mxu0
          %v1587 = vadd.f32 %v1366, %v1586
          %v1588 = vpop.f32.mrf.mxu0
          %v1589 = vadd.f32 %v1368, %v1588
          %1590 = vmatprep.mubr.f32.mxu0 0.0
          %v1591 = vand.u32 %v583, 4294901760
          %1592 = vmatmul.mubr.f32.gmra.mxu0 %v1591
          %v1593 = vpop.f32.mrf.mxu0
          %v1594 = vadd.f32 %v1375, %v1593
          %v1595 = vpop.f32.mrf.mxu0
          %v1596 = vadd.f32 %v1377, %v1595
          %1597 = vmatprep.mubr.f32.mxu0 0.0
          %v1598 = vand.u32 %v586, 4294901760
          %1599 = vmatmul.mubr.f32.gmra.mxu0 %v1598
          %v1600 = vpop.f32.mrf.mxu0
          %v1601 = vadd.f32 %v1384, %v1600
          %v1602 = vpop.f32.mrf.mxu0
          %v1603 = vadd.f32 %v1386, %v1602
          %1604 = vmatprep.mubr.f32.mxu0 0.0
          %v1605 = vand.u32 %v589, 4294901760
          %1606 = vmatmul.mubr.f32.gmra.mxu0 %v1605
          %v1607 = vpop.f32.mrf.mxu0
          %v1608 = vadd.f32 %v1393, %v1607
          %v1609 = vpop.f32.mrf.mxu0
          %v1610 = vadd.f32 %v1395, %v1609
          %1611 = vmatprep.mubr.f32.mxu0 0.0
          %v1612 = vand.u32 %v592, 4294901760
          %1613 = vmatmul.mubr.f32.gmra.mxu0 %v1612
          %v1614 = vpop.f32.mrf.mxu0
          %v1615 = vadd.f32 %v1402, %v1614
          %v1616 = vpop.f32.mrf.mxu0
          %v1617 = vadd.f32 %v1404, %v1616
          %1618 = vmatprep.mubr.f32.mxu0 0.0
          %v1619 = vand.u32 %v595, 4294901760
          %1620 = vmatmul.mubr.f32.gmra.mxu0 %v1619
          %v1621 = vpop.f32.mrf.mxu0
          %v1622 = vadd.f32 %v1411, %v1621
          %v1623 = vpop.f32.mrf.mxu0
          %v1624 = vadd.f32 %v1413, %v1623
          %1625 = vmatprep.mubr.f32.mxu0 0.0
          %v1626 = vand.u32 %v598, 4294901760
          %1627 = vmatmul.mubr.f32.gmra.mxu0 %v1626
          %v1628 = vpop.f32.mrf.mxu0
          %v1629 = vadd.f32 %v1420, %v1628
          %v1630 = vpop.f32.mrf.mxu0
          %v1631 = vadd.f32 %v1422, %v1630
          %1632 = vmatprep.mubr.f32.mxu0 0.0
          %v1633 = vand.u32 %v601, 4294901760
          %1634 = vmatmul.mubr.f32.gmra.mxu0 %v1633
          %v1635 = vpop.f32.mrf.mxu0
          %v1636 = vadd.f32 %v1429, %v1635
          %v1637 = vpop.f32.mrf.mxu0
          %v1638 = vadd.f32 %v1431, %v1637
          %1639 = vmatprep.mubr.f32.mxu0 0.0
          %v1640 = vand.u32 %v604, 4294901760
          %1641 = vmatmul.mubr.f32.gmra.mxu0 %v1640
          %v1642 = vpop.f32.mrf.mxu0
          %v1643 = vadd.f32 %v1438, %v1642
          %v1644 = vpop.f32.mrf.mxu0
          %v1645 = vadd.f32 %v1440, %v1644
          %1646 = vmatprep.mubr.f32.mxu0 0.0
          %v1647 = vand.u32 %v607, 4294901760
          %1648 = vmatmul.mubr.f32.gmra.mxu0 %v1647
          %v1649 = vpop.f32.mrf.mxu0
          %v1650 = vadd.f32 %v1447, %v1649
          %v1651 = vpop.f32.mrf.mxu0
          %v1652 = vadd.f32 %v1449, %v1651
          %1653 = vdwg.mxu0
          %1654 = vmatprep.subr.mxu0 0.0
          %1655 = vmatpush1.msra.mxu0 0.0
          %1656 = vmatprep.subr.mxu0 0.0
          %1657 = vmatpush1.msra.mxu0 0.0
          %1658 = vmatprep.subr.mxu0 0.0
          %1659 = vmatpush1.msra.mxu0 0.0
          %1660 = vmatprep.subr.mxu0 0.0
          %1661 = vmatpush1.msra.mxu0 0.0
          %1662 = vmatprep.subr.mxu0 0.0
          %1663 = vmatpush1.msra.mxu0 0.0
          %1664 = vmatprep.subr.mxu0 0.0
          %1665 = vmatpush1.msra.mxu0 0.0
          %1666 = vmatprep.subr.mxu0 0.0
          %1667 = vmatpush1.msra.mxu0 0.0
          %v1668 = vand.u32 %v571, 4294901760
          %1669 = vmatprep.subr.mxu0 %v1668
          %v1670 = vand.u32 %v559, 4294901760
          %1671 = vmatpush1.msra.mxu0 %v1670
          %v1672 = vand.u32 %v570, 4294901760
          %1673 = vmatprep.subr.mxu0 %v1672
          %v1674 = vand.u32 %v558, 4294901760
          %1675 = vmatpush1.msra.mxu0 %v1674
          %v1676 = vand.u32 %v569, 4294901760
          %1677 = vmatprep.subr.mxu0 %v1676
          %v1678 = vand.u32 %v557, 4294901760
          %1679 = vmatpush1.msra.mxu0 %v1678
          %v1680 = vand.u32 %v511, 4294901760
          %1681 = vmatprep.subr.mxu0 %v1680
          %v1682 = vand.u32 %v510, 4294901760
          %1683 = vmatpush1.msra.mxu0 %v1682
          %v1684 = vand.u32 %v465, 4294901760
          %1685 = vmatprep.subr.mxu0 %v1684
          %v1686 = vand.u32 %v464, 4294901760
          %1687 = vmatpush1.msra.mxu0 %v1686
          %v1688 = vand.u32 %v489, 4294901760
          %1689 = vmatprep.subr.mxu0 %v1688
          %v1690 = vand.u32 %v488, 4294901760
          %1691 = vmatpush1.msra.mxu0 %v1690
          %v1692 = vand.u32 %v534, 4294901760
          %1693 = vmatprep.subr.mxu0 %v1692
          %v1694 = vand.u32 %v543, 4294901760
          %1695 = vmatpush1.msra.mxu0 %v1694
          %v1696 = vand.u32 %v533, 4294901760
          %1697 = vmatprep.subr.mxu0 %v1696
          %v1698 = vand.u32 %v542, 4294901760
          %1699 = vmatpush1.msra.mxu0 %v1698
          %v1700 = vand.u32 %v532, 4294901760
          %1701 = vmatprep.subr.mxu0 %v1700
          %v1702 = vand.u32 %v541, 4294901760
          %1703 = vmatpush1.msra.mxu0 %v1702
          %1704 = vmatprep.subr.mxu0 0.0
          %1705 = vmatpush2.msra.mxu0 0.0
          %1706 = vmatprep.subr.mxu0 0.0
          %1707 = vmatpush2.msra.mxu0 0.0
          %1708 = vmatprep.subr.mxu0 0.0
          %1709 = vmatpush2.msra.mxu0 0.0
          %1710 = vmatprep.subr.mxu0 0.0
          %1711 = vmatpush2.msra.mxu0 0.0
          %1712 = vmatprep.subr.mxu0 0.0
          %1713 = vmatpush2.msra.mxu0 0.0
          %1714 = vmatprep.subr.mxu0 0.0
          %1715 = vmatpush2.msra.mxu0 0.0
          %1716 = vmatprep.subr.mxu0 0.0
          %1717 = vmatpush2.msra.mxu0 0.0
          %1718 = vmatprep.subr.mxu0 0.0
          %1719 = vmatpush2.msra.mxu0 0.0
          %1720 = vmatprep.subr.mxu0 0.0
          %1721 = vmatpush2.msra.mxu0 0.0
          %1722 = vmatprep.subr.mxu0 0.0
          %1723 = vmatpush2.msra.mxu0 0.0
          %1724 = vmatprep.subr.mxu0 0.0
          %1725 = vmatpush2.msra.mxu0 0.0
          %1726 = vmatprep.subr.mxu0 0.0
          %1727 = vmatpush2.msra.mxu0 0.0
          %1728 = vmatprep.subr.mxu0 0.0
          %1729 = vmatpush2.msra.mxu0 0.0
          %1730 = vmatprep.subr.mxu0 0.0
          %1731 = vmatpush2.msra.mxu0 0.0
          %1732 = vmatprep.subr.mxu0 0.0
          %1733 = vmatpush2.msra.mxu0 0.0
          %1734 = vmatprep.subr.mxu0 0.0
          %1735 = vmatpush2.msra.mxu0 0.0
          %1736 = vmatprep.mubr.f32.mxu0 0.0
          %v1737 = vand.u32 %v574, 4294901760
          %1738 = vmatmul.mubr.f32.gmra.mxu0 %v1737
          %v1739 = vpop.f32.mrf.mxu0
          %v1740 = vadd.f32 %v1573, %v1739
          %v1741 = vpop.f32.mrf.mxu0
          %v1742 = vadd.f32 %v1575, %v1741
          %1743 = vmatprep.mubr.f32.mxu0 0.0
          %v1744 = vand.u32 %v577, 4294901760
          %1745 = vmatmul.mubr.f32.gmra.mxu0 %v1744
          %v1746 = vpop.f32.mrf.mxu0
          %v1747 = vadd.f32 %v1580, %v1746
          %v1748 = vpop.f32.mrf.mxu0
          %v1749 = vadd.f32 %v1582, %v1748
          %1750 = vmatprep.mubr.f32.mxu0 0.0
          %v1751 = vand.u32 %v580, 4294901760
          %1752 = vmatmul.mubr.f32.gmra.mxu0 %v1751
          %v1753 = vpop.f32.mrf.mxu0
          %v1754 = vadd.f32 %v1587, %v1753
          %v1755 = vpop.f32.mrf.mxu0
          %v1756 = vadd.f32 %v1589, %v1755
          %1757 = vmatprep.mubr.f32.mxu0 0.0
          %v1758 = vand.u32 %v583, 4294901760
          %1759 = vmatmul.mubr.f32.gmra.mxu0 %v1758
          %v1760 = vpop.f32.mrf.mxu0
          %v1761 = vadd.f32 %v1594, %v1760
          %v1762 = vpop.f32.mrf.mxu0
          %v1763 = vadd.f32 %v1596, %v1762
          %1764 = vmatprep.mubr.f32.mxu0 0.0
          %v1765 = vand.u32 %v586, 4294901760
          %1766 = vmatmul.mubr.f32.gmra.mxu0 %v1765
          %v1767 = vpop.f32.mrf.mxu0
          %v1768 = vadd.f32 %v1601, %v1767
          %v1769 = vpop.f32.mrf.mxu0
          %v1770 = vadd.f32 %v1603, %v1769
          %1771 = vmatprep.mubr.f32.mxu0 0.0
          %v1772 = vand.u32 %v589, 4294901760
          %1773 = vmatmul.mubr.f32.gmra.mxu0 %v1772
          %v1774 = vpop.f32.mrf.mxu0
          %v1775 = vadd.f32 %v1608, %v1774
          %v1776 = vpop.f32.mrf.mxu0
          %v1777 = vadd.f32 %v1610, %v1776
          %1778 = vmatprep.mubr.f32.mxu0 0.0
          %v1779 = vand.u32 %v592, 4294901760
          %1780 = vmatmul.mubr.f32.gmra.mxu0 %v1779
          %v1781 = vpop.f32.mrf.mxu0
          %v1782 = vadd.f32 %v1615, %v1781
          %v1783 = vpop.f32.mrf.mxu0
          %v1784 = vadd.f32 %v1617, %v1783
          %1785 = vmatprep.mubr.f32.mxu0 0.0
          %v1786 = vand.u32 %v595, 4294901760
          %1787 = vmatmul.mubr.f32.gmra.mxu0 %v1786
          %v1788 = vpop.f32.mrf.mxu0
          %v1789 = vadd.f32 %v1622, %v1788
          %v1790 = vpop.f32.mrf.mxu0
          %v1791 = vadd.f32 %v1624, %v1790
          %1792 = vmatprep.mubr.f32.mxu0 0.0
          %v1793 = vand.u32 %v598, 4294901760
          %1794 = vmatmul.mubr.f32.gmra.mxu0 %v1793
          %v1795 = vpop.f32.mrf.mxu0
          %v1796 = vadd.f32 %v1629, %v1795
          %v1797 = vpop.f32.mrf.mxu0
          %v1798 = vadd.f32 %v1631, %v1797
          %1799 = vmatprep.mubr.f32.mxu0 0.0
          %v1800 = vand.u32 %v601, 4294901760
          %1801 = vmatmul.mubr.f32.gmra.mxu0 %v1800
          %v1802 = vpop.f32.mrf.mxu0
          %v1803 = vadd.f32 %v1636, %v1802
          %v1804 = vpop.f32.mrf.mxu0
          %v1805 = vadd.f32 %v1638, %v1804
          %1806 = vmatprep.mubr.f32.mxu0 0.0
          %v1807 = vand.u32 %v604, 4294901760
          %1808 = vmatmul.mubr.f32.gmra.mxu0 %v1807
          %v1809 = vpop.f32.mrf.mxu0
          %v1810 = vadd.f32 %v1643, %v1809
          %v1811 = vpop.f32.mrf.mxu0
          %v1812 = vadd.f32 %v1645, %v1811
          %1813 = vmatprep.mubr.f32.mxu0 0.0
          %v1814 = vand.u32 %v607, 4294901760
          %1815 = vmatmul.mubr.f32.gmra.mxu0 %v1814
          %v1816 = vpop.f32.mrf.mxu0
          %v1817 = vadd.f32 %v1650, %v1816
          %v1818 = vpop.f32.mrf.mxu0
          %v1819 = vadd.f32 %v1652, %v1818
          %1820 = vdwg.mxu0
          %v1821 = vmax.f32 %v1740, 0.0
          %v1822 = vmax.f32 %v1742, 0.0
          %v1823 = vmax.f32 %v1747, 0.0
          %v1824 = vmax.f32 %v1749, 0.0
          %v1825 = vmax.f32 %v1754, 0.0
          %v1826 = vmax.f32 %v1756, 0.0
          %v1827 = vmax.f32 %v1761, 0.0
          %v1828 = vmax.f32 %v1763, 0.0
          %v1829 = vmax.f32 %v1768, 0.0
          %v1830 = vmax.f32 %v1770, 0.0
          %v1831 = vmax.f32 %v1775, 0.0
          %v1832 = vmax.f32 %v1777, 0.0
          %v1833 = vmax.f32 %v1782, 0.0
          %v1834 = vmax.f32 %v1784, 0.0
          %v1835 = vmax.f32 %v1789, 0.0
          %v1836 = vmax.f32 %v1791, 0.0
          %v1837 = vmax.f32 %v1796, 0.0
          %v1838 = vmax.f32 %v1798, 0.0
          %v1839 = vmax.f32 %v1803, 0.0
          %v1840 = vmax.f32 %v1805, 0.0
          %v1841 = vmax.f32 %v1810, 0.0
          %v1842 = vmax.f32 %v1812, 0.0
          %v1843 = vmax.f32 %v1817, 0.0
          %v1844 = vmax.f32 %v1819, 0.0
          %vm1845 = vcmask 785408
          %v1847 = vsel %vm1845, %v354, 0
          %1849 = vmatprep.subr.mxu0 0.0
          %1850 = vmatpush1.msra.mxu0 0.0
          %1851 = vmatprep.subr.mxu0 0.0
          %1852 = vmatpush1.msra.mxu0 0.0
          %1853 = vmatprep.subr.mxu0 0.0
          %1854 = vmatpush1.msra.mxu0 0.0
          %1855 = vmatprep.subr.mxu0 0.0
          %1856 = vmatpush1.msra.mxu0 0.0
          %v1857 = vand.u32 %v1844, 4294901760
          %1858 = vmatprep.subr.mxu0 %v1857
          %v1859 = vand.u32 %v1843, 4294901760
          %1860 = vmatpush1.msra.mxu0 %v1859
          %v1861 = vand.u32 %v1842, 4294901760
          %1862 = vmatprep.subr.mxu0 %v1861
          %v1863 = vand.u32 %v1841, 4294901760
          %1864 = vmatpush1.msra.mxu0 %v1863
          %v1865 = vand.u32 %v1840, 4294901760
          %1866 = vmatprep.subr.mxu0 %v1865
          %v1867 = vand.u32 %v1839, 4294901760
          %1868 = vmatpush1.msra.mxu0 %v1867
          %v1869 = vand.u32 %v1838, 4294901760
          %1870 = vmatprep.subr.mxu0 %v1869
          %v1871 = vand.u32 %v1837, 4294901760
          %1872 = vmatpush1.msra.mxu0 %v1871
          %v1873 = vand.u32 %v1836, 4294901760
          %1874 = vmatprep.subr.mxu0 %v1873
          %v1875 = vand.u32 %v1835, 4294901760
          %1876 = vmatpush1.msra.mxu0 %v1875
          %v1877 = vand.u32 %v1834, 4294901760
          %1878 = vmatprep.subr.mxu0 %v1877
          %v1879 = vand.u32 %v1833, 4294901760
          %1880 = vmatpush1.msra.mxu0 %v1879
          %v1881 = vand.u32 %v1832, 4294901760
          %1882 = vmatprep.subr.mxu0 %v1881
          %v1883 = vand.u32 %v1831, 4294901760
          %1884 = vmatpush1.msra.mxu0 %v1883
          %v1885 = vand.u32 %v1830, 4294901760
          %1886 = vmatprep.subr.mxu0 %v1885
          %v1887 = vand.u32 %v1829, 4294901760
          %1888 = vmatpush1.msra.mxu0 %v1887
          %v1889 = vand.u32 %v1828, 4294901760
          %1890 = vmatprep.subr.mxu0 %v1889
          %v1891 = vand.u32 %v1827, 4294901760
          %1892 = vmatpush1.msra.mxu0 %v1891
          %v1893 = vand.u32 %v1826, 4294901760
          %1894 = vmatprep.subr.mxu0 %v1893
          %v1895 = vand.u32 %v1825, 4294901760
          %1896 = vmatpush1.msra.mxu0 %v1895
          %v1897 = vand.u32 %v1824, 4294901760
          %1898 = vmatprep.subr.mxu0 %v1897
          %v1899 = vand.u32 %v1823, 4294901760
          %1900 = vmatpush1.msra.mxu0 %v1899
          %v1901 = vand.u32 %v1822, 4294901760
          %1902 = vmatprep.subr.mxu0 %v1901
          %v1903 = vand.u32 %v1821, 4294901760
          %1904 = vmatpush1.msra.mxu0 %v1903
          %1905 = vmatprep.subr.mxu0 0.0
          %1906 = vmatpush2.msra.mxu0 0.0
          %1907 = vmatprep.subr.mxu0 0.0
          %1908 = vmatpush2.msra.mxu0 0.0
          %1909 = vmatprep.subr.mxu0 0.0
          %1910 = vmatpush2.msra.mxu0 0.0
          %1911 = vmatprep.subr.mxu0 0.0
          %1912 = vmatpush2.msra.mxu0 0.0
          %1913 = vmatprep.subr.mxu0 0.0
          %1914 = vmatpush2.msra.mxu0 0.0
          %1915 = vmatprep.subr.mxu0 0.0
          %1916 = vmatpush2.msra.mxu0 0.0
          %1917 = vmatprep.subr.mxu0 0.0
          %1918 = vmatpush2.msra.mxu0 0.0
          %1919 = vmatprep.subr.mxu0 0.0
          %1920 = vmatpush2.msra.mxu0 0.0
          %1921 = vmatprep.subr.mxu0 0.0
          %1922 = vmatpush2.msra.mxu0 0.0
          %1923 = vmatprep.subr.mxu0 0.0
          %1924 = vmatpush2.msra.mxu0 0.0
          %1925 = vmatprep.subr.mxu0 0.0
          %1926 = vmatpush2.msra.mxu0 0.0
          %1927 = vmatprep.subr.mxu0 0.0
          %1928 = vmatpush2.msra.mxu0 0.0
          %1929 = vmatprep.subr.mxu0 0.0
          %1930 = vmatpush2.msra.mxu0 0.0
          %1931 = vmatprep.subr.mxu0 0.0
          %1932 = vmatpush2.msra.mxu0 0.0
          %1933 = vmatprep.subr.mxu0 0.0
          %1934 = vmatpush2.msra.mxu0 0.0
          %1935 = vmatprep.subr.mxu0 0.0
          %1936 = vmatpush2.msra.mxu0 0.0
          %1937 = vmatprep.mubr.f32.mxu0 0.0
          %v1938 = vand.u32 %v1847, 4294901760
          %v1939 = vsub.f32 %v1847, %v1938
          %v1940 = vand.u32 %v1939, 4294901760
          %v1941 = vsub.f32 %v1939, %v1940
          %v1942 = vand.u32 %v1941, 4294901760
          %1943 = vmatmul.mubr.f32.gmra.mxu0 %v1942
          %v1944 = vpop.f32.mrf.mxu0
          %v1945 = vadd.f32 0.0, %v1944
          %v1946 = vpop.f32.mrf.mxu0
          %v1947 = vadd.f32 0.0, %v1946
          %1948 = vdwg.mxu0
          %1949 = vmatprep.subr.mxu0 0.0
          %1950 = vmatpush1.msra.mxu0 0.0
          %1951 = vmatprep.subr.mxu0 0.0
          %1952 = vmatpush1.msra.mxu0 0.0
          %1953 = vmatprep.subr.mxu0 0.0
          %1954 = vmatpush1.msra.mxu0 0.0
          %1955 = vmatprep.subr.mxu0 0.0
          %1956 = vmatpush1.msra.mxu0 0.0
          %v1957 = vand.u32 %v1844, 4294901760
          %v1958 = vsub.f32 %v1844, %v1957
          %v1959 = vand.u32 %v1958, 4294901760
          %v1960 = vsub.f32 %v1958, %v1959
          %v1961 = vand.u32 %v1960, 4294901760
          %1962 = vmatprep.subr.mxu0 %v1961
          %v1963 = vand.u32 %v1843, 4294901760
          %v1964 = vsub.f32 %v1843, %v1963
          %v1965 = vand.u32 %v1964, 4294901760
          %v1966 = vsub.f32 %v1964, %v1965
          %v1967 = vand.u32 %v1966, 4294901760
          %1968 = vmatpush1.msra.mxu0 %v1967
          %v1969 = vand.u32 %v1842, 4294901760
          %v1970 = vsub.f32 %v1842, %v1969
          %v1971 = vand.u32 %v1970, 4294901760
          %v1972 = vsub.f32 %v1970, %v1971
          %v1973 = vand.u32 %v1972, 4294901760
          %1974 = vmatprep.subr.mxu0 %v1973
          %v1975 = vand.u32 %v1841, 4294901760
          %v1976 = vsub.f32 %v1841, %v1975
          %v1977 = vand.u32 %v1976, 4294901760
          %v1978 = vsub.f32 %v1976, %v1977
          %v1979 = vand.u32 %v1978, 4294901760
          %1980 = vmatpush1.msra.mxu0 %v1979
          %v1981 = vand.u32 %v1840, 4294901760
          %v1982 = vsub.f32 %v1840, %v1981
          %v1983 = vand.u32 %v1982, 4294901760
          %v1984 = vsub.f32 %v1982, %v1983
          %v1985 = vand.u32 %v1984, 4294901760
          %1986 = vmatprep.subr.mxu0 %v1985
          %v1987 = vand.u32 %v1839, 4294901760
          %v1988 = vsub.f32 %v1839, %v1987
          %v1989 = vand.u32 %v1988, 4294901760
          %v1990 = vsub.f32 %v1988, %v1989
          %v1991 = vand.u32 %v1990, 4294901760
          %1992 = vmatpush1.msra.mxu0 %v1991
          %v1993 = vand.u32 %v1838, 4294901760
          %v1994 = vsub.f32 %v1838, %v1993
          %v1995 = vand.u32 %v1994, 4294901760
          %v1996 = vsub.f32 %v1994, %v1995
          %v1997 = vand.u32 %v1996, 4294901760
          %1998 = vmatprep.subr.mxu0 %v1997
          %v1999 = vand.u32 %v1837, 4294901760
          %v2000 = vsub.f32 %v1837, %v1999
          %v2001 = vand.u32 %v2000, 4294901760
          %v2002 = vsub.f32 %v2000, %v2001
          %v2003 = vand.u32 %v2002, 4294901760
          %2004 = vmatpush1.msra.mxu0 %v2003
          %v2005 = vand.u32 %v1836, 4294901760
          %v2006 = vsub.f32 %v1836, %v2005
          %v2007 = vand.u32 %v2006, 4294901760
          %v2008 = vsub.f32 %v2006, %v2007
          %v2009 = vand.u32 %v2008, 4294901760
          %2010 = vmatprep.subr.mxu0 %v2009
          %v2011 = vand.u32 %v1835, 4294901760
          %v2012 = vsub.f32 %v1835, %v2011
          %v2013 = vand.u32 %v2012, 4294901760
          %v2014 = vsub.f32 %v2012, %v2013
          %v2015 = vand.u32 %v2014, 4294901760
          %2016 = vmatpush1.msra.mxu0 %v2015
          %v2017 = vand.u32 %v1834, 4294901760
          %v2018 = vsub.f32 %v1834, %v2017
          %v2019 = vand.u32 %v2018, 4294901760
          %v2020 = vsub.f32 %v2018, %v2019
          %v2021 = vand.u32 %v2020, 4294901760
          %2022 = vmatprep.subr.mxu0 %v2021
          %v2023 = vand.u32 %v1833, 4294901760
          %v2024 = vsub.f32 %v1833, %v2023
          %v2025 = vand.u32 %v2024, 4294901760
          %v2026 = vsub.f32 %v2024, %v2025
          %v2027 = vand.u32 %v2026, 4294901760
          %2028 = vmatpush1.msra.mxu0 %v2027
          %v2029 = vand.u32 %v1832, 4294901760
          %v2030 = vsub.f32 %v1832, %v2029
          %v2031 = vand.u32 %v2030, 4294901760
          %v2032 = vsub.f32 %v2030, %v2031
          %v2033 = vand.u32 %v2032, 4294901760
          %2034 = vmatprep.subr.mxu0 %v2033
          %v2035 = vand.u32 %v1831, 4294901760
          %v2036 = vsub.f32 %v1831, %v2035
          %v2037 = vand.u32 %v2036, 4294901760
          %v2038 = vsub.f32 %v2036, %v2037
          %v2039 = vand.u32 %v2038, 4294901760
          %2040 = vmatpush1.msra.mxu0 %v2039
          %v2041 = vand.u32 %v1830, 4294901760
          %v2042 = vsub.f32 %v1830, %v2041
          %v2043 = vand.u32 %v2042, 4294901760
          %v2044 = vsub.f32 %v2042, %v2043
          %v2045 = vand.u32 %v2044, 4294901760
          %2046 = vmatprep.subr.mxu0 %v2045
          %v2047 = vand.u32 %v1829, 4294901760
          %v2048 = vsub.f32 %v1829, %v2047
          %v2049 = vand.u32 %v2048, 4294901760
          %v2050 = vsub.f32 %v2048, %v2049
          %v2051 = vand.u32 %v2050, 4294901760
          %2052 = vmatpush1.msra.mxu0 %v2051
          %v2053 = vand.u32 %v1828, 4294901760
          %v2054 = vsub.f32 %v1828, %v2053
          %v2055 = vand.u32 %v2054, 4294901760
          %v2056 = vsub.f32 %v2054, %v2055
          %v2057 = vand.u32 %v2056, 4294901760
          %2058 = vmatprep.subr.mxu0 %v2057
          %v2059 = vand.u32 %v1827, 4294901760
          %v2060 = vsub.f32 %v1827, %v2059
          %v2061 = vand.u32 %v2060, 4294901760
          %v2062 = vsub.f32 %v2060, %v2061
          %v2063 = vand.u32 %v2062, 4294901760
          %2064 = vmatpush1.msra.mxu0 %v2063
          %v2065 = vand.u32 %v1826, 4294901760
          %v2066 = vsub.f32 %v1826, %v2065
          %v2067 = vand.u32 %v2066, 4294901760
          %v2068 = vsub.f32 %v2066, %v2067
          %v2069 = vand.u32 %v2068, 4294901760
          %2070 = vmatprep.subr.mxu0 %v2069
          %v2071 = vand.u32 %v1825, 4294901760
          %v2072 = vsub.f32 %v1825, %v2071
          %v2073 = vand.u32 %v2072, 4294901760
          %v2074 = vsub.f32 %v2072, %v2073
          %v2075 = vand.u32 %v2074, 4294901760
          %2076 = vmatpush1.msra.mxu0 %v2075
          %v2077 = vand.u32 %v1824, 4294901760
          %v2078 = vsub.f32 %v1824, %v2077
          %v2079 = vand.u32 %v2078, 4294901760
          %v2080 = vsub.f32 %v2078, %v2079
          %v2081 = vand.u32 %v2080, 4294901760
          %2082 = vmatprep.subr.mxu0 %v2081
          %v2083 = vand.u32 %v1823, 4294901760
          %v2084 = vsub.f32 %v1823, %v2083
          %v2085 = vand.u32 %v2084, 4294901760
          %v2086 = vsub.f32 %v2084, %v2085
          %v2087 = vand.u32 %v2086, 4294901760
          %2088 = vmatpush1.msra.mxu0 %v2087
          %v2089 = vand.u32 %v1822, 4294901760
          %v2090 = vsub.f32 %v1822, %v2089
          %v2091 = vand.u32 %v2090, 4294901760
          %v2092 = vsub.f32 %v2090, %v2091
          %v2093 = vand.u32 %v2092, 4294901760
          %2094 = vmatprep.subr.mxu0 %v2093
          %v2095 = vand.u32 %v1821, 4294901760
          %v2096 = vsub.f32 %v1821, %v2095
          %v2097 = vand.u32 %v2096, 4294901760
          %v2098 = vsub.f32 %v2096, %v2097
          %v2099 = vand.u32 %v2098, 4294901760
          %2100 = vmatpush1.msra.mxu0 %v2099
          %2101 = vmatprep.subr.mxu0 0.0
          %2102 = vmatpush2.msra.mxu0 0.0
          %2103 = vmatprep.subr.mxu0 0.0
          %2104 = vmatpush2.msra.mxu0 0.0
          %2105 = vmatprep.subr.mxu0 0.0
          %2106 = vmatpush2.msra.mxu0 0.0
          %2107 = vmatprep.subr.mxu0 0.0
          %2108 = vmatpush2.msra.mxu0 0.0
          %2109 = vmatprep.subr.mxu0 0.0
          %2110 = vmatpush2.msra.mxu0 0.0
          %2111 = vmatprep.subr.mxu0 0.0
          %2112 = vmatpush2.msra.mxu0 0.0
          %2113 = vmatprep.subr.mxu0 0.0
          %2114 = vmatpush2.msra.mxu0 0.0
          %2115 = vmatprep.subr.mxu0 0.0
          %2116 = vmatpush2.msra.mxu0 0.0
          %2117 = vmatprep.subr.mxu0 0.0
          %2118 = vmatpush2.msra.mxu0 0.0
          %2119 = vmatprep.subr.mxu0 0.0
          %2120 = vmatpush2.msra.mxu0 0.0
          %2121 = vmatprep.subr.mxu0 0.0
          %2122 = vmatpush2.msra.mxu0 0.0
          %2123 = vmatprep.subr.mxu0 0.0
          %2124 = vmatpush2.msra.mxu0 0.0
          %2125 = vmatprep.subr.mxu0 0.0
          %2126 = vmatpush2.msra.mxu0 0.0
          %2127 = vmatprep.subr.mxu0 0.0
          %2128 = vmatpush2.msra.mxu0 0.0
          %2129 = vmatprep.subr.mxu0 0.0
          %2130 = vmatpush2.msra.mxu0 0.0
          %2131 = vmatprep.subr.mxu0 0.0
          %2132 = vmatpush2.msra.mxu0 0.0
          %2133 = vmatprep.mubr.f32.mxu0 0.0
          %v2134 = vand.u32 %v1847, 4294901760
          %2135 = vmatmul.mubr.f32.gmra.mxu0 %v2134
          %v2136 = vpop.f32.mrf.mxu0
          %v2137 = vadd.f32 %v1945, %v2136
          %v2138 = vpop.f32.mrf.mxu0
          %v2139 = vadd.f32 %v1947, %v2138
          %2140 = vdwg.mxu0
          %2141 = vmatprep.subr.mxu0 0.0
          %2142 = vmatpush1.msra.mxu0 0.0
          %2143 = vmatprep.subr.mxu0 0.0
          %2144 = vmatpush1.msra.mxu0 0.0
          %2145 = vmatprep.subr.mxu0 0.0
          %2146 = vmatpush1.msra.mxu0 0.0
          %2147 = vmatprep.subr.mxu0 0.0
          %2148 = vmatpush1.msra.mxu0 0.0
          %v2149 = vand.u32 %v1844, 4294901760
          %v2150 = vsub.f32 %v1844, %v2149
          %2151 = vmatprep.subr.mxu0 %v2150
          %v2152 = vand.u32 %v1843, 4294901760
          %v2153 = vsub.f32 %v1843, %v2152
          %2154 = vmatpush1.msra.mxu0 %v2153
          %v2155 = vand.u32 %v1842, 4294901760
          %v2156 = vsub.f32 %v1842, %v2155
          %2157 = vmatprep.subr.mxu0 %v2156
          %v2158 = vand.u32 %v1841, 4294901760
          %v2159 = vsub.f32 %v1841, %v2158
          %2160 = vmatpush1.msra.mxu0 %v2159
          %v2161 = vand.u32 %v1840, 4294901760
          %v2162 = vsub.f32 %v1840, %v2161
          %2163 = vmatprep.subr.mxu0 %v2162
          %v2164 = vand.u32 %v1839, 4294901760
          %v2165 = vsub.f32 %v1839, %v2164
          %2166 = vmatpush1.msra.mxu0 %v2165
          %v2167 = vand.u32 %v1838, 4294901760
          %v2168 = vsub.f32 %v1838, %v2167
          %2169 = vmatprep.subr.mxu0 %v2168
          %v2170 = vand.u32 %v1837, 4294901760
          %v2171 = vsub.f32 %v1837, %v2170
          %2172 = vmatpush1.msra.mxu0 %v2171
          %v2173 = vand.u32 %v1836, 4294901760
          %v2174 = vsub.f32 %v1836, %v2173
          %2175 = vmatprep.subr.mxu0 %v2174
          %v2176 = vand.u32 %v1835, 4294901760
          %v2177 = vsub.f32 %v1835, %v2176
          %2178 = vmatpush1.msra.mxu0 %v2177
          %v2179 = vand.u32 %v1834, 4294901760
          %v2180 = vsub.f32 %v1834, %v2179
          %2181 = vmatprep.subr.mxu0 %v2180
          %v2182 = vand.u32 %v1833, 4294901760
          %v2183 = vsub.f32 %v1833, %v2182
          %2184 = vmatpush1.msra.mxu0 %v2183
          %v2185 = vand.u32 %v1832, 4294901760
          %v2186 = vsub.f32 %v1832, %v2185
          %2187 = vmatprep.subr.mxu0 %v2186
          %v2188 = vand.u32 %v1831, 4294901760
          %v2189 = vsub.f32 %v1831, %v2188
          %2190 = vmatpush1.msra.mxu0 %v2189
          %v2191 = vand.u32 %v1830, 4294901760
          %v2192 = vsub.f32 %v1830, %v2191
          %2193 = vmatprep.subr.mxu0 %v2192
          %v2194 = vand.u32 %v1829, 4294901760
          %v2195 = vsub.f32 %v1829, %v2194
          %2196 = vmatpush1.msra.mxu0 %v2195
          %v2197 = vand.u32 %v1828, 4294901760
          %v2198 = vsub.f32 %v1828, %v2197
          %2199 = vmatprep.subr.mxu0 %v2198
          %v2200 = vand.u32 %v1827, 4294901760
          %v2201 = vsub.f32 %v1827, %v2200
          %2202 = vmatpush1.msra.mxu0 %v2201
          %v2203 = vand.u32 %v1826, 4294901760
          %v2204 = vsub.f32 %v1826, %v2203
          %2205 = vmatprep.subr.mxu0 %v2204
          %v2206 = vand.u32 %v1825, 4294901760
          %v2207 = vsub.f32 %v1825, %v2206
          %2208 = vmatpush1.msra.mxu0 %v2207
          %v2209 = vand.u32 %v1824, 4294901760
          %v2210 = vsub.f32 %v1824, %v2209
          %2211 = vmatprep.subr.mxu0 %v2210
          %v2212 = vand.u32 %v1823, 4294901760
          %v2213 = vsub.f32 %v1823, %v2212
          %2214 = vmatpush1.msra.mxu0 %v2213
          %v2215 = vand.u32 %v1822, 4294901760
          %v2216 = vsub.f32 %v1822, %v2215
          %2217 = vmatprep.subr.mxu0 %v2216
          %v2218 = vand.u32 %v1821, 4294901760
          %v2219 = vsub.f32 %v1821, %v2218
          %2220 = vmatpush1.msra.mxu0 %v2219
          %2221 = vmatprep.subr.mxu0 0.0
          %2222 = vmatpush2.msra.mxu0 0.0
          %2223 = vmatprep.subr.mxu0 0.0
          %2224 = vmatpush2.msra.mxu0 0.0
          %2225 = vmatprep.subr.mxu0 0.0
          %2226 = vmatpush2.msra.mxu0 0.0
          %2227 = vmatprep.subr.mxu0 0.0
          %2228 = vmatpush2.msra.mxu0 0.0
          %2229 = vmatprep.subr.mxu0 0.0
          %2230 = vmatpush2.msra.mxu0 0.0
          %2231 = vmatprep.subr.mxu0 0.0
          %2232 = vmatpush2.msra.mxu0 0.0
          %2233 = vmatprep.subr.mxu0 0.0
          %2234 = vmatpush2.msra.mxu0 0.0
          %2235 = vmatprep.subr.mxu0 0.0
          %2236 = vmatpush2.msra.mxu0 0.0
          %2237 = vmatprep.subr.mxu0 0.0
          %2238 = vmatpush2.msra.mxu0 0.0
          %2239 = vmatprep.subr.mxu0 0.0
          %2240 = vmatpush2.msra.mxu0 0.0
          %2241 = vmatprep.subr.mxu0 0.0
          %2242 = vmatpush2.msra.mxu0 0.0
          %2243 = vmatprep.subr.mxu0 0.0
          %2244 = vmatpush2.msra.mxu0 0.0
          %2245 = vmatprep.subr.mxu0 0.0
          %2246 = vmatpush2.msra.mxu0 0.0
          %2247 = vmatprep.subr.mxu0 0.0
          %2248 = vmatpush2.msra.mxu0 0.0
          %2249 = vmatprep.subr.mxu0 0.0
          %2250 = vmatpush2.msra.mxu0 0.0
          %2251 = vmatprep.subr.mxu0 0.0
          %2252 = vmatpush2.msra.mxu0 0.0
          %2253 = vmatprep.mubr.f32.mxu0 0.0
          %v2254 = vand.u32 %v1847, 4294901760
          %v2255 = vsub.f32 %v1847, %v2254
          %2256 = vmatmul.mubr.f32.gmra.mxu0 %v2255
          %v2257 = vpop.f32.mrf.mxu0
          %v2258 = vadd.f32 %v2137, %v2257
          %v2259 = vpop.f32.mrf.mxu0
          %v2260 = vadd.f32 %v2139, %v2259
          %2261 = vdwg.mxu0
          %2262 = vmatprep.subr.mxu0 0.0
          %2263 = vmatpush1.msra.mxu0 0.0
          %2264 = vmatprep.subr.mxu0 0.0
          %2265 = vmatpush1.msra.mxu0 0.0
          %2266 = vmatprep.subr.mxu0 0.0
          %2267 = vmatpush1.msra.mxu0 0.0
          %2268 = vmatprep.subr.mxu0 0.0
          %2269 = vmatpush1.msra.mxu0 0.0
          %v2270 = vand.u32 %v1844, 4294901760
          %2271 = vmatprep.subr.mxu0 %v2270
          %v2272 = vand.u32 %v1843, 4294901760
          %2273 = vmatpush1.msra.mxu0 %v2272
          %v2274 = vand.u32 %v1842, 4294901760
          %2275 = vmatprep.subr.mxu0 %v2274
          %v2276 = vand.u32 %v1841, 4294901760
          %2277 = vmatpush1.msra.mxu0 %v2276
          %v2278 = vand.u32 %v1840, 4294901760
          %2279 = vmatprep.subr.mxu0 %v2278
          %v2280 = vand.u32 %v1839, 4294901760
          %2281 = vmatpush1.msra.mxu0 %v2280
          %v2282 = vand.u32 %v1838, 4294901760
          %2283 = vmatprep.subr.mxu0 %v2282
          %v2284 = vand.u32 %v1837, 4294901760
          %2285 = vmatpush1.msra.mxu0 %v2284
          %v2286 = vand.u32 %v1836, 4294901760
          %2287 = vmatprep.subr.mxu0 %v2286
          %v2288 = vand.u32 %v1835, 4294901760
          %2289 = vmatpush1.msra.mxu0 %v2288
          %v2290 = vand.u32 %v1834, 4294901760
          %2291 = vmatprep.subr.mxu0 %v2290
          %v2292 = vand.u32 %v1833, 4294901760
          %2293 = vmatpush1.msra.mxu0 %v2292
          %v2294 = vand.u32 %v1832, 4294901760
          %2295 = vmatprep.subr.mxu0 %v2294
          %v2296 = vand.u32 %v1831, 4294901760
          %2297 = vmatpush1.msra.mxu0 %v2296
          %v2298 = vand.u32 %v1830, 4294901760
          %2299 = vmatprep.subr.mxu0 %v2298
          %v2300 = vand.u32 %v1829, 4294901760
          %2301 = vmatpush1.msra.mxu0 %v2300
          %v2302 = vand.u32 %v1828, 4294901760
          %2303 = vmatprep.subr.mxu0 %v2302
          %v2304 = vand.u32 %v1827, 4294901760
          %2305 = vmatpush1.msra.mxu0 %v2304
          %v2306 = vand.u32 %v1826, 4294901760
          %2307 = vmatprep.subr.mxu0 %v2306
          %v2308 = vand.u32 %v1825, 4294901760
          %2309 = vmatpush1.msra.mxu0 %v2308
          %v2310 = vand.u32 %v1824, 4294901760
          %2311 = vmatprep.subr.mxu0 %v2310
          %v2312 = vand.u32 %v1823, 4294901760
          %2313 = vmatpush1.msra.mxu0 %v2312
          %v2314 = vand.u32 %v1822, 4294901760
          %2315 = vmatprep.subr.mxu0 %v2314
          %v2316 = vand.u32 %v1821, 4294901760
          %2317 = vmatpush1.msra.mxu0 %v2316
          %2318 = vmatprep.subr.mxu0 0.0
          %2319 = vmatpush2.msra.mxu0 0.0
          %2320 = vmatprep.subr.mxu0 0.0
          %2321 = vmatpush2.msra.mxu0 0.0
          %2322 = vmatprep.subr.mxu0 0.0
          %2323 = vmatpush2.msra.mxu0 0.0
          %2324 = vmatprep.subr.mxu0 0.0
          %2325 = vmatpush2.msra.mxu0 0.0
          %2326 = vmatprep.subr.mxu0 0.0
          %2327 = vmatpush2.msra.mxu0 0.0
          %2328 = vmatprep.subr.mxu0 0.0
          %2329 = vmatpush2.msra.mxu0 0.0
          %2330 = vmatprep.subr.mxu0 0.0
          %2331 = vmatpush2.msra.mxu0 0.0
          %2332 = vmatprep.subr.mxu0 0.0
          %2333 = vmatpush2.msra.mxu0 0.0
          %2334 = vmatprep.subr.mxu0 0.0
          %2335 = vmatpush2.msra.mxu0 0.0
          %2336 = vmatprep.subr.mxu0 0.0
          %2337 = vmatpush2.msra.mxu0 0.0
          %2338 = vmatprep.subr.mxu0 0.0
          %2339 = vmatpush2.msra.mxu0 0.0
          %2340 = vmatprep.subr.mxu0 0.0
          %2341 = vmatpush2.msra.mxu0 0.0
          %2342 = vmatprep.subr.mxu0 0.0
          %2343 = vmatpush2.msra.mxu0 0.0
          %2344 = vmatprep.subr.mxu0 0.0
          %2345 = vmatpush2.msra.mxu0 0.0
          %2346 = vmatprep.subr.mxu0 0.0
          %2347 = vmatpush2.msra.mxu0 0.0
          %2348 = vmatprep.subr.mxu0 0.0
          %2349 = vmatpush2.msra.mxu0 0.0
          %2350 = vmatprep.mubr.f32.mxu0 0.0
          %v2351 = vand.u32 %v1847, 4294901760
          %v2352 = vsub.f32 %v1847, %v2351
          %v2353 = vand.u32 %v2352, 4294901760
          %2354 = vmatmul.mubr.f32.gmra.mxu0 %v2353
          %v2355 = vpop.f32.mrf.mxu0
          %v2356 = vadd.f32 %v2258, %v2355
          %v2357 = vpop.f32.mrf.mxu0
          %v2358 = vadd.f32 %v2260, %v2357
          %2359 = vdwg.mxu0
          %2360 = vmatprep.subr.mxu0 0.0
          %2361 = vmatpush1.msra.mxu0 0.0
          %2362 = vmatprep.subr.mxu0 0.0
          %2363 = vmatpush1.msra.mxu0 0.0
          %2364 = vmatprep.subr.mxu0 0.0
          %2365 = vmatpush1.msra.mxu0 0.0
          %2366 = vmatprep.subr.mxu0 0.0
          %2367 = vmatpush1.msra.mxu0 0.0
          %v2368 = vand.u32 %v1844, 4294901760
          %v2369 = vsub.f32 %v1844, %v2368
          %v2370 = vand.u32 %v2369, 4294901760
          %2371 = vmatprep.subr.mxu0 %v2370
          %v2372 = vand.u32 %v1843, 4294901760
          %v2373 = vsub.f32 %v1843, %v2372
          %v2374 = vand.u32 %v2373, 4294901760
          %2375 = vmatpush1.msra.mxu0 %v2374
          %v2376 = vand.u32 %v1842, 4294901760
          %v2377 = vsub.f32 %v1842, %v2376
          %v2378 = vand.u32 %v2377, 4294901760
          %2379 = vmatprep.subr.mxu0 %v2378
          %v2380 = vand.u32 %v1841, 4294901760
          %v2381 = vsub.f32 %v1841, %v2380
          %v2382 = vand.u32 %v2381, 4294901760
          %2383 = vmatpush1.msra.mxu0 %v2382
          %v2384 = vand.u32 %v1840, 4294901760
          %v2385 = vsub.f32 %v1840, %v2384
          %v2386 = vand.u32 %v2385, 4294901760
          %2387 = vmatprep.subr.mxu0 %v2386
          %v2388 = vand.u32 %v1839, 4294901760
          %v2389 = vsub.f32 %v1839, %v2388
          %v2390 = vand.u32 %v2389, 4294901760
          %2391 = vmatpush1.msra.mxu0 %v2390
          %v2392 = vand.u32 %v1838, 4294901760
          %v2393 = vsub.f32 %v1838, %v2392
          %v2394 = vand.u32 %v2393, 4294901760
          %2395 = vmatprep.subr.mxu0 %v2394
          %v2396 = vand.u32 %v1837, 4294901760
          %v2397 = vsub.f32 %v1837, %v2396
          %v2398 = vand.u32 %v2397, 4294901760
          %2399 = vmatpush1.msra.mxu0 %v2398
          %v2400 = vand.u32 %v1836, 4294901760
          %v2401 = vsub.f32 %v1836, %v2400
          %v2402 = vand.u32 %v2401, 4294901760
          %2403 = vmatprep.subr.mxu0 %v2402
          %v2404 = vand.u32 %v1835, 4294901760
          %v2405 = vsub.f32 %v1835, %v2404
          %v2406 = vand.u32 %v2405, 4294901760
          %2407 = vmatpush1.msra.mxu0 %v2406
          %v2408 = vand.u32 %v1834, 4294901760
          %v2409 = vsub.f32 %v1834, %v2408
          %v2410 = vand.u32 %v2409, 4294901760
          %2411 = vmatprep.subr.mxu0 %v2410
          %v2412 = vand.u32 %v1833, 4294901760
          %v2413 = vsub.f32 %v1833, %v2412
          %v2414 = vand.u32 %v2413, 4294901760
          %2415 = vmatpush1.msra.mxu0 %v2414
          %v2416 = vand.u32 %v1832, 4294901760
          %v2417 = vsub.f32 %v1832, %v2416
          %v2418 = vand.u32 %v2417, 4294901760
          %2419 = vmatprep.subr.mxu0 %v2418
          %v2420 = vand.u32 %v1831, 4294901760
          %v2421 = vsub.f32 %v1831, %v2420
          %v2422 = vand.u32 %v2421, 4294901760
          %2423 = vmatpush1.msra.mxu0 %v2422
          %v2424 = vand.u32 %v1830, 4294901760
          %v2425 = vsub.f32 %v1830, %v2424
          %v2426 = vand.u32 %v2425, 4294901760
          %2427 = vmatprep.subr.mxu0 %v2426
          %v2428 = vand.u32 %v1829, 4294901760
          %v2429 = vsub.f32 %v1829, %v2428
          %v2430 = vand.u32 %v2429, 4294901760
          %2431 = vmatpush1.msra.mxu0 %v2430
          %v2432 = vand.u32 %v1828, 4294901760
          %v2433 = vsub.f32 %v1828, %v2432
          %v2434 = vand.u32 %v2433, 4294901760
          %2435 = vmatprep.subr.mxu0 %v2434
          %v2436 = vand.u32 %v1827, 4294901760
          %v2437 = vsub.f32 %v1827, %v2436
          %v2438 = vand.u32 %v2437, 4294901760
          %2439 = vmatpush1.msra.mxu0 %v2438
          %v2440 = vand.u32 %v1826, 4294901760
          %v2441 = vsub.f32 %v1826, %v2440
          %v2442 = vand.u32 %v2441, 4294901760
          %2443 = vmatprep.subr.mxu0 %v2442
          %v2444 = vand.u32 %v1825, 4294901760
          %v2445 = vsub.f32 %v1825, %v2444
          %v2446 = vand.u32 %v2445, 4294901760
          %2447 = vmatpush1.msra.mxu0 %v2446
          %v2448 = vand.u32 %v1824, 4294901760
          %v2449 = vsub.f32 %v1824, %v2448
          %v2450 = vand.u32 %v2449, 4294901760
          %2451 = vmatprep.subr.mxu0 %v2450
          %v2452 = vand.u32 %v1823, 4294901760
          %v2453 = vsub.f32 %v1823, %v2452
          %v2454 = vand.u32 %v2453, 4294901760
          %2455 = vmatpush1.msra.mxu0 %v2454
          %v2456 = vand.u32 %v1822, 4294901760
          %v2457 = vsub.f32 %v1822, %v2456
          %v2458 = vand.u32 %v2457, 4294901760
          %2459 = vmatprep.subr.mxu0 %v2458
          %v2460 = vand.u32 %v1821, 4294901760
          %v2461 = vsub.f32 %v1821, %v2460
          %v2462 = vand.u32 %v2461, 4294901760
          %2463 = vmatpush1.msra.mxu0 %v2462
          %2464 = vmatprep.subr.mxu0 0.0
          %2465 = vmatpush2.msra.mxu0 0.0
          %2466 = vmatprep.subr.mxu0 0.0
          %2467 = vmatpush2.msra.mxu0 0.0
          %2468 = vmatprep.subr.mxu0 0.0
          %2469 = vmatpush2.msra.mxu0 0.0
          %2470 = vmatprep.subr.mxu0 0.0
          %2471 = vmatpush2.msra.mxu0 0.0
          %2472 = vmatprep.subr.mxu0 0.0
          %2473 = vmatpush2.msra.mxu0 0.0
          %2474 = vmatprep.subr.mxu0 0.0
          %2475 = vmatpush2.msra.mxu0 0.0
          %2476 = vmatprep.subr.mxu0 0.0
          %2477 = vmatpush2.msra.mxu0 0.0
          %2478 = vmatprep.subr.mxu0 0.0
          %2479 = vmatpush2.msra.mxu0 0.0
          %2480 = vmatprep.subr.mxu0 0.0
          %2481 = vmatpush2.msra.mxu0 0.0
          %2482 = vmatprep.subr.mxu0 0.0
          %2483 = vmatpush2.msra.mxu0 0.0
          %2484 = vmatprep.subr.mxu0 0.0
          %2485 = vmatpush2.msra.mxu0 0.0
          %2486 = vmatprep.subr.mxu0 0.0
          %2487 = vmatpush2.msra.mxu0 0.0
          %2488 = vmatprep.subr.mxu0 0.0
          %2489 = vmatpush2.msra.mxu0 0.0
          %2490 = vmatprep.subr.mxu0 0.0
          %2491 = vmatpush2.msra.mxu0 0.0
          %2492 = vmatprep.subr.mxu0 0.0
          %2493 = vmatpush2.msra.mxu0 0.0
          %2494 = vmatprep.subr.mxu0 0.0
          %2495 = vmatpush2.msra.mxu0 0.0
          %2496 = vmatprep.mubr.f32.mxu0 0.0
          %v2497 = vand.u32 %v1847, 4294901760
          %2498 = vmatmul.mubr.f32.gmra.mxu0 %v2497
          %v2499 = vpop.f32.mrf.mxu0
          %v2500 = vadd.f32 %v2356, %v2499
          %v2501 = vpop.f32.mrf.mxu0
          %v2502 = vadd.f32 %v2358, %v2501
          %2503 = vdwg.mxu0
          %2504 = vmatprep.subr.mxu0 0.0
          %2505 = vmatpush1.msra.mxu0 0.0
          %2506 = vmatprep.subr.mxu0 0.0
          %2507 = vmatpush1.msra.mxu0 0.0
          %2508 = vmatprep.subr.mxu0 0.0
          %2509 = vmatpush1.msra.mxu0 0.0
          %2510 = vmatprep.subr.mxu0 0.0
          %2511 = vmatpush1.msra.mxu0 0.0
          %v2512 = vand.u32 %v1844, 4294901760
          %2513 = vmatprep.subr.mxu0 %v2512
          %v2514 = vand.u32 %v1843, 4294901760
          %2515 = vmatpush1.msra.mxu0 %v2514
          %v2516 = vand.u32 %v1842, 4294901760
          %2517 = vmatprep.subr.mxu0 %v2516
          %v2518 = vand.u32 %v1841, 4294901760
          %2519 = vmatpush1.msra.mxu0 %v2518
          %v2520 = vand.u32 %v1840, 4294901760
          %2521 = vmatprep.subr.mxu0 %v2520
          %v2522 = vand.u32 %v1839, 4294901760
          %2523 = vmatpush1.msra.mxu0 %v2522
          %v2524 = vand.u32 %v1838, 4294901760
          %2525 = vmatprep.subr.mxu0 %v2524
          %v2526 = vand.u32 %v1837, 4294901760
          %2527 = vmatpush1.msra.mxu0 %v2526
          %v2528 = vand.u32 %v1836, 4294901760
          %2529 = vmatprep.subr.mxu0 %v2528
          %v2530 = vand.u32 %v1835, 4294901760
          %2531 = vmatpush1.msra.mxu0 %v2530
          %v2532 = vand.u32 %v1834, 4294901760
          %2533 = vmatprep.subr.mxu0 %v2532
          %v2534 = vand.u32 %v1833, 4294901760
          %2535 = vmatpush1.msra.mxu0 %v2534
          %v2536 = vand.u32 %v1832, 4294901760
          %2537 = vmatprep.subr.mxu0 %v2536
          %v2538 = vand.u32 %v1831, 4294901760
          %2539 = vmatpush1.msra.mxu0 %v2538
          %v2540 = vand.u32 %v1830, 4294901760
          %2541 = vmatprep.subr.mxu0 %v2540
          %v2542 = vand.u32 %v1829, 4294901760
          %2543 = vmatpush1.msra.mxu0 %v2542
          %v2544 = vand.u32 %v1828, 4294901760
          %2545 = vmatprep.subr.mxu0 %v2544
          %v2546 = vand.u32 %v1827, 4294901760
          %2547 = vmatpush1.msra.mxu0 %v2546
          %v2548 = vand.u32 %v1826, 4294901760
          %2549 = vmatprep.subr.mxu0 %v2548
          %v2550 = vand.u32 %v1825, 4294901760
          %2551 = vmatpush1.msra.mxu0 %v2550
          %v2552 = vand.u32 %v1824, 4294901760
          %2553 = vmatprep.subr.mxu0 %v2552
          %v2554 = vand.u32 %v1823, 4294901760
          %2555 = vmatpush1.msra.mxu0 %v2554
          %v2556 = vand.u32 %v1822, 4294901760
          %2557 = vmatprep.subr.mxu0 %v2556
          %v2558 = vand.u32 %v1821, 4294901760
          %2559 = vmatpush1.msra.mxu0 %v2558
          %2560 = vmatprep.subr.mxu0 0.0
          %2561 = vmatpush2.msra.mxu0 0.0
          %2562 = vmatprep.subr.mxu0 0.0
          %2563 = vmatpush2.msra.mxu0 0.0
          %2564 = vmatprep.subr.mxu0 0.0
          %2565 = vmatpush2.msra.mxu0 0.0
          %2566 = vmatprep.subr.mxu0 0.0
          %2567 = vmatpush2.msra.mxu0 0.0
          %2568 = vmatprep.subr.mxu0 0.0
          %2569 = vmatpush2.msra.mxu0 0.0
          %2570 = vmatprep.subr.mxu0 0.0
          %2571 = vmatpush2.msra.mxu0 0.0
          %2572 = vmatprep.subr.mxu0 0.0
          %2573 = vmatpush2.msra.mxu0 0.0
          %2574 = vmatprep.subr.mxu0 0.0
          %2575 = vmatpush2.msra.mxu0 0.0
          %2576 = vmatprep.subr.mxu0 0.0
          %2577 = vmatpush2.msra.mxu0 0.0
          %2578 = vmatprep.subr.mxu0 0.0
          %2579 = vmatpush2.msra.mxu0 0.0
          %2580 = vmatprep.subr.mxu0 0.0
          %2581 = vmatpush2.msra.mxu0 0.0
          %2582 = vmatprep.subr.mxu0 0.0
          %2583 = vmatpush2.msra.mxu0 0.0
          %2584 = vmatprep.subr.mxu0 0.0
          %2585 = vmatpush2.msra.mxu0 0.0
          %2586 = vmatprep.subr.mxu0 0.0
          %2587 = vmatpush2.msra.mxu0 0.0
          %2588 = vmatprep.subr.mxu0 0.0
          %2589 = vmatpush2.msra.mxu0 0.0
          %2590 = vmatprep.subr.mxu0 0.0
          %2591 = vmatpush2.msra.mxu0 0.0
          %2592 = vmatprep.mubr.f32.mxu0 0.0
          %v2593 = vand.u32 %v1847, 4294901760
          %2594 = vmatmul.mubr.f32.gmra.mxu0 %v2593
          %v2595 = vpop.f32.mrf.mxu0
          %v2596 = vadd.f32 %v2500, %v2595
          %v2597 = vpop.f32.mrf.mxu0
          %v2598 = vadd.f32 %v2502, %v2597
          %2599 = vdwg.mxu0
          %v2600 = vadd.f32 %v464, %v2596
          %v2601 = vadd.f32 %v465, %v2598
          %2602 = vst [vmem:[#allocation2] sm:$0xff] %v2600
          %2603 = vst [vmem:[#allocation2 + $0x8] sm:$0xff] %v2601
        $region53: #{tpu_custom_call.1} parent=39 // loop_footer
          %s463 = sadd.s32 1, %s459
        $region54: #{tpu_custom_call.1} parent=39 // loop_footer_branch
          %458 = sbr.rel target = $region50
        $region55: #{tpu_custom_call.1} parent=39 // loop_exit
          _
        %v2604 = vld [vmem:[#allocation2] sm:$0xff]
        %v2605 = vld [vmem:[#allocation2 + $0x8] sm:$0xff]
        %2606 = vst [vmem:[%s314] sm:$0xff] %v2604
        %2607 = vst [vmem:[%s314 + $0x8] sm:$0xff] %v2605
        %p2608 = scmp.lt.s32.totalorder %s27, 2
        // Predicated region
        $region56: #{tpu_custom_call.1} parent=39 // pred_check
          %p2609 = pneg %p2608
        $region57: #{tpu_custom_call.1} parent=39 // pred_check_branch
          %2611 = sbr.rel (%p2609) target = $region59
        $region58: #{tpu_custom_call.1} parent=39 // pred_region
          %v2612 = vld [vmem:[#allocation2] sm:$0xff]
          %v2613 = vld [vmem:[#allocation2 + $0x8] sm:$0xff]
          %v2614 = vld [vmem:[%s269] sm:$0xff]
          %v2615 = vld [vmem:[%s269 + $0x8] sm:$0xff]
          %v2616 = vld [vmem:[%s269 + $0x10] sm:$0xff]
          %v2617 = vld [vmem:[%s269 + $0x18] sm:$0xff]
          %v2618 = vld [vmem:[%s269 + $0x20] sm:$0xff]
          %v2619 = vld [vmem:[%s269 + $0x28] sm:$0xff]
          %v2620 = vld [vmem:[%s269 + $0x30] sm:$0xff]
          %v2621 = vld [vmem:[%s269 + $0x38] sm:$0xff]
          %v2622 = vld [vmem:[%s269 + $0x40] sm:$0xff]
          %v2623 = vld [vmem:[%s269 + $0x48] sm:$0xff]
          %v2624 = vld [vmem:[%s269 + $0x50] sm:$0xff]
          %v2625 = vld [vmem:[%s269 + $0x58] sm:$0xff]
          %v2626 = vld [vmem:[%s269 + $0x60] sm:$0xff]
          %v2627 = vld [vmem:[%s269 + $0x68] sm:$0xff]
          %v2628 = vld [vmem:[%s269 + $0x70] sm:$0xff]
          %v2629 = vld [vmem:[%s269 + $0x78] sm:$0xff]
          %v2630 = vld [vmem:[%s269 + $0x80] sm:$0xff]
          %v2631 = vld [vmem:[%s269 + $0x88] sm:$0xff]
          %v2632 = vld [vmem:[%s269 + $0x90] sm:$0xff]
          %v2633 = vld [vmem:[%s269 + $0x98] sm:$0xff]
          %v2634 = vld [vmem:[%s269 + $0xa0] sm:$0xff]
          %v2635 = vld [vmem:[%s269 + $0xa8] sm:$0xff]
          %v2636 = vld [vmem:[%s269 + $0xb0] sm:$0xff]
          %v2637 = vld [vmem:[%s269 + $0xb8] sm:$0xff]
          %v2638 = vld [vmem:[%s269 + $0xc0] sm:$0xff]
          %v2639 = vld [vmem:[%s269 + $0xc8] sm:$0xff]
          %v2640 = vld [vmem:[%s269 + $0xd0] sm:$0xff]
          %v2641 = vld [vmem:[%s269 + $0xd8] sm:$0xff]
          %v2642 = vld [vmem:[%s269 + $0xe0] sm:$0xff]
          %v2643 = vld [vmem:[%s269 + $0xe8] sm:$0xff]
          %v2644 = vld [vmem:[%s269 + $0xf0] sm:$0xff]
          %v2645 = vld [vmem:[%s269 + $0xf8] sm:$0xff]
          %v2646 = vld [vmem:[%s269 + $0x100] sm:$0xff]
          %v2647 = vld [vmem:[%s269 + $0x108] sm:$0xff]
          %v2648 = vld [vmem:[%s269 + $0x110] sm:$0xff]
          %v2649 = vld [vmem:[%s269 + $0x118] sm:$0xff]
          %v2650 = vld [vmem:[%s269 + $0x120] sm:$0xff]
          %v2651 = vld [vmem:[%s269 + $0x128] sm:$0xff]
          %v2652 = vld [vmem:[%s269 + $0x130] sm:$0xff]
          %v2653 = vld [vmem:[%s269 + $0x138] sm:$0xff]
          %v2654 = vld [vmem:[%s269 + $0x140] sm:$0xff]
          %v2655 = vld [vmem:[%s269 + $0x148] sm:$0xff]
          %v2656 = vld [vmem:[%s269 + $0x150] sm:$0xff]
          %v2657 = vld [vmem:[%s269 + $0x158] sm:$0xff]
          %v2658 = vld [vmem:[%s269 + $0x160] sm:$0xff]
          %v2659 = vld [vmem:[%s269 + $0x168] sm:$0xff]
          %v2660 = vld [vmem:[%s269 + $0x170] sm:$0xff]
          %v2661 = vld [vmem:[%s269 + $0x178] sm:$0xff]
          %v2662 = vld [vmem:[%s269 + $0x180] sm:$0xff]
          %v2663 = vld [vmem:[%s269 + $0x188] sm:$0xff]
          %v2664 = vld [vmem:[%s269 + $0x190] sm:$0xff]
          %v2665 = vld [vmem:[%s269 + $0x198] sm:$0xff]
          %v2666 = vld [vmem:[%s269 + $0x1a0] sm:$0xff]
          %v2667 = vld [vmem:[%s269 + $0x1a8] sm:$0xff]
          %v2668 = vld [vmem:[%s269 + $0x1b0] sm:$0xff]
          %v2669 = vld [vmem:[%s269 + $0x1b8] sm:$0xff]
          %v2670 = vld [vmem:[%s269 + $0x1c0] sm:$0xff]
          %v2671 = vld [vmem:[%s269 + $0x1c8] sm:$0xff]
          %v2672 = vld [vmem:[%s269 + $0x1d0] sm:$0xff]
          %v2673 = vld [vmem:[%s269 + $0x1d8] sm:$0xff]
          %v2674 = vld [vmem:[%s269 + $0x1e0] sm:$0xff]
          %v2675 = vld [vmem:[%s269 + $0x1e8] sm:$0xff]
          %v2676 = vld [vmem:[%s269 + $0x1f0] sm:$0xff]
          %v2677 = vld [vmem:[%s269 + $0x1f8] sm:$0xff]
          %v2678 = vand.u32 %v2645, 4294901760
          %2679 = vmatprep.subr.mxu0 %v2678
          %v2680 = vand.u32 %v2644, 4294901760
          %2681 = vmatpush1.msra.mxu0 %v2680
          %v2682 = vand.u32 %v2643, 4294901760
          %2683 = vmatprep.subr.mxu0 %v2682
          %v2684 = vand.u32 %v2642, 4294901760
          %2685 = vmatpush1.msra.mxu0 %v2684
          %v2686 = vand.u32 %v2641, 4294901760
          %2687 = vmatprep.subr.mxu0 %v2686
          %v2688 = vand.u32 %v2640, 4294901760
          %2689 = vmatpush1.msra.mxu0 %v2688
          %v2690 = vand.u32 %v2639, 4294901760
          %2691 = vmatprep.subr.mxu0 %v2690
          %v2692 = vand.u32 %v2638, 4294901760
          %2693 = vmatpush1.msra.mxu0 %v2692
          %v2694 = vand.u32 %v2637, 4294901760
          %2695 = vmatprep.subr.mxu0 %v2694
          %v2696 = vand.u32 %v2636, 4294901760
          %2697 = vmatpush1.msra.mxu0 %v2696
          %v2698 = vand.u32 %v2635, 4294901760
          %2699 = vmatprep.subr.mxu0 %v2698
          %v2700 = vand.u32 %v2634, 4294901760
          %2701 = vmatpush1.msra.mxu0 %v2700
          %v2702 = vand.u32 %v2633, 4294901760
          %2703 = vmatprep.subr.mxu0 %v2702
          %v2704 = vand.u32 %v2632, 4294901760
          %2705 = vmatpush1.msra.mxu0 %v2704
          %v2706 = vand.u32 %v2631, 4294901760
          %2707 = vmatprep.subr.mxu0 %v2706
          %v2708 = vand.u32 %v2630, 4294901760
          %2709 = vmatpush1.msra.mxu0 %v2708
          %v2710 = vand.u32 %v2629, 4294901760
          %2711 = vmatprep.subr.mxu0 %v2710
          %v2712 = vand.u32 %v2628, 4294901760
          %2713 = vmatpush1.msra.mxu0 %v2712
          %v2714 = vand.u32 %v2627, 4294901760
          %2715 = vmatprep.subr.mxu0 %v2714
          %v2716 = vand.u32 %v2626, 4294901760
          %2717 = vmatpush1.msra.mxu0 %v2716
          %v2718 = vand.u32 %v2625, 4294901760
          %2719 = vmatprep.subr.mxu0 %v2718
          %v2720 = vand.u32 %v2624, 4294901760
          %2721 = vmatpush1.msra.mxu0 %v2720
          %v2722 = vand.u32 %v2623, 4294901760
          %2723 = vmatprep.subr.mxu0 %v2722
          %v2724 = vand.u32 %v2622, 4294901760
          %2725 = vmatpush1.msra.mxu0 %v2724
          %v2726 = vand.u32 %v2621, 4294901760
          %2727 = vmatprep.subr.mxu0 %v2726
          %v2728 = vand.u32 %v2620, 4294901760
          %2729 = vmatpush1.msra.mxu0 %v2728
          %v2730 = vand.u32 %v2619, 4294901760
          %2731 = vmatprep.subr.mxu0 %v2730
          %v2732 = vand.u32 %v2618, 4294901760
          %2733 = vmatpush1.msra.mxu0 %v2732
          %v2734 = vand.u32 %v2617, 4294901760
          %2735 = vmatprep.subr.mxu0 %v2734
          %v2736 = vand.u32 %v2616, 4294901760
          %2737 = vmatpush1.msra.mxu0 %v2736
          %v2738 = vand.u32 %v2615, 4294901760
          %2739 = vmatprep.subr.mxu0 %v2738
          %v2740 = vand.u32 %v2614, 4294901760
          %2741 = vmatpush1.msra.mxu0 %v2740
          %v2742 = vand.u32 %v2677, 4294901760
          %2743 = vmatprep.subr.mxu0 %v2742
          %v2744 = vand.u32 %v2676, 4294901760
          %2745 = vmatpush2.msra.mxu0 %v2744
          %v2746 = vand.u32 %v2675, 4294901760
          %2747 = vmatprep.subr.mxu0 %v2746
          %v2748 = vand.u32 %v2674, 4294901760
          %2749 = vmatpush2.msra.mxu0 %v2748
          %v2750 = vand.u32 %v2673, 4294901760
          %2751 = vmatprep.subr.mxu0 %v2750
          %v2752 = vand.u32 %v2672, 4294901760
          %2753 = vmatpush2.msra.mxu0 %v2752
          %v2754 = vand.u32 %v2671, 4294901760
          %2755 = vmatprep.subr.mxu0 %v2754
          %v2756 = vand.u32 %v2670, 4294901760
          %2757 = vmatpush2.msra.mxu0 %v2756
          %v2758 = vand.u32 %v2669, 4294901760
          %2759 = vmatprep.subr.mxu0 %v2758
          %v2760 = vand.u32 %v2668, 4294901760
          %2761 = vmatpush2.msra.mxu0 %v2760
          %v2762 = vand.u32 %v2667, 4294901760
          %2763 = vmatprep.subr.mxu0 %v2762
          %v2764 = vand.u32 %v2666, 4294901760
          %2765 = vmatpush2.msra.mxu0 %v2764
          %v2766 = vand.u32 %v2665, 4294901760
          %2767 = vmatprep.subr.mxu0 %v2766
          %v2768 = vand.u32 %v2664, 4294901760
          %2769 = vmatpush2.msra.mxu0 %v2768
          %v2770 = vand.u32 %v2663, 4294901760
          %2771 = vmatprep.subr.mxu0 %v2770
          %v2772 = vand.u32 %v2662, 4294901760
          %2773 = vmatpush2.msra.mxu0 %v2772
          %v2774 = vand.u32 %v2661, 4294901760
          %2775 = vmatprep.subr.mxu0 %v2774
          %v2776 = vand.u32 %v2660, 4294901760
          %2777 = vmatpush2.msra.mxu0 %v2776
          %v2778 = vand.u32 %v2659, 4294901760
          %2779 = vmatprep.subr.mxu0 %v2778
          %v2780 = vand.u32 %v2658, 4294901760
          %2781 = vmatpush2.msra.mxu0 %v2780
          %v2782 = vand.u32 %v2657, 4294901760
          %2783 = vmatprep.subr.mxu0 %v2782
          %v2784 = vand.u32 %v2656, 4294901760
          %2785 = vmatpush2.msra.mxu0 %v2784
          %v2786 = vand.u32 %v2655, 4294901760
          %2787 = vmatprep.subr.mxu0 %v2786
          %v2788 = vand.u32 %v2654, 4294901760
          %2789 = vmatpush2.msra.mxu0 %v2788
          %v2790 = vand.u32 %v2653, 4294901760
          %2791 = vmatprep.subr.mxu0 %v2790
          %v2792 = vand.u32 %v2652, 4294901760
          %2793 = vmatpush2.msra.mxu0 %v2792
          %v2794 = vand.u32 %v2651, 4294901760
          %2795 = vmatprep.subr.mxu0 %v2794
          %v2796 = vand.u32 %v2650, 4294901760
          %2797 = vmatpush2.msra.mxu0 %v2796
          %v2798 = vand.u32 %v2649, 4294901760
          %2799 = vmatprep.subr.mxu0 %v2798
          %v2800 = vand.u32 %v2648, 4294901760
          %2801 = vmatpush2.msra.mxu0 %v2800
          %v2802 = vand.u32 %v2647, 4294901760
          %2803 = vmatprep.subr.mxu0 %v2802
          %v2804 = vand.u32 %v2646, 4294901760
          %2805 = vmatpush2.msra.mxu0 %v2804
          %v2806 = vand.u32 %v2613, 4294901760
          %v2807 = vsub.f32 %v2613, %v2806
          %v2808 = vand.u32 %v2807, 4294901760
          %v2809 = vsub.f32 %v2807, %v2808
          %v2810 = vand.u32 %v2809, 4294901760
          %2811 = vmatprep.mubr.f32.mxu0 %v2810
          %v2812 = vand.u32 %v2612, 4294901760
          %v2813 = vsub.f32 %v2612, %v2812
          %v2814 = vand.u32 %v2813, 4294901760
          %v2815 = vsub.f32 %v2813, %v2814
          %v2816 = vand.u32 %v2815, 4294901760
          %2817 = vmatmul.mubr.f32.gmra.mxu0 %v2816
          %v2818 = vpop.f32.mrf.mxu0
          %v2819 = vadd.f32 0.0, %v2818
          %v2820 = vpop.f32.mrf.mxu0
          %v2821 = vadd.f32 0.0, %v2820
          %2822 = vdwg.mxu0
          %v2823 = vand.u32 %v2645, 4294901760
          %v2824 = vsub.f32 %v2645, %v2823
          %v2825 = vand.u32 %v2824, 4294901760
          %v2826 = vsub.f32 %v2824, %v2825
          %v2827 = vand.u32 %v2826, 4294901760
          %2828 = vmatprep.subr.mxu0 %v2827
          %v2829 = vand.u32 %v2644, 4294901760
          %v2830 = vsub.f32 %v2644, %v2829
          %v2831 = vand.u32 %v2830, 4294901760
          %v2832 = vsub.f32 %v2830, %v2831
          %v2833 = vand.u32 %v2832, 4294901760
          %2834 = vmatpush1.msra.mxu0 %v2833
          %v2835 = vand.u32 %v2643, 4294901760
          %v2836 = vsub.f32 %v2643, %v2835
          %v2837 = vand.u32 %v2836, 4294901760
          %v2838 = vsub.f32 %v2836, %v2837
          %v2839 = vand.u32 %v2838, 4294901760
          %2840 = vmatprep.subr.mxu0 %v2839
          %v2841 = vand.u32 %v2642, 4294901760
          %v2842 = vsub.f32 %v2642, %v2841
          %v2843 = vand.u32 %v2842, 4294901760
          %v2844 = vsub.f32 %v2842, %v2843
          %v2845 = vand.u32 %v2844, 4294901760
          %2846 = vmatpush1.msra.mxu0 %v2845
          %v2847 = vand.u32 %v2641, 4294901760
          %v2848 = vsub.f32 %v2641, %v2847
          %v2849 = vand.u32 %v2848, 4294901760
          %v2850 = vsub.f32 %v2848, %v2849
          %v2851 = vand.u32 %v2850, 4294901760
          %2852 = vmatprep.subr.mxu0 %v2851
          %v2853 = vand.u32 %v2640, 4294901760
          %v2854 = vsub.f32 %v2640, %v2853
          %v2855 = vand.u32 %v2854, 4294901760
          %v2856 = vsub.f32 %v2854, %v2855
          %v2857 = vand.u32 %v2856, 4294901760
          %2858 = vmatpush1.msra.mxu0 %v2857
          %v2859 = vand.u32 %v2639, 4294901760
          %v2860 = vsub.f32 %v2639, %v2859
          %v2861 = vand.u32 %v2860, 4294901760
          %v2862 = vsub.f32 %v2860, %v2861
          %v2863 = vand.u32 %v2862, 4294901760
          %2864 = vmatprep.subr.mxu0 %v2863
          %v2865 = vand.u32 %v2638, 4294901760
          %v2866 = vsub.f32 %v2638, %v2865
          %v2867 = vand.u32 %v2866, 4294901760
          %v2868 = vsub.f32 %v2866, %v2867
          %v2869 = vand.u32 %v2868, 4294901760
          %2870 = vmatpush1.msra.mxu0 %v2869
          %v2871 = vand.u32 %v2637, 4294901760
          %v2872 = vsub.f32 %v2637, %v2871
          %v2873 = vand.u32 %v2872, 4294901760
          %v2874 = vsub.f32 %v2872, %v2873
          %v2875 = vand.u32 %v2874, 4294901760
          %2876 = vmatprep.subr.mxu0 %v2875
          %v2877 = vand.u32 %v2636, 4294901760
          %v2878 = vsub.f32 %v2636, %v2877
          %v2879 = vand.u32 %v2878, 4294901760
          %v2880 = vsub.f32 %v2878, %v2879
          %v2881 = vand.u32 %v2880, 4294901760
          %2882 = vmatpush1.msra.mxu0 %v2881
          %v2883 = vand.u32 %v2635, 4294901760
          %v2884 = vsub.f32 %v2635, %v2883
          %v2885 = vand.u32 %v2884, 4294901760
          %v2886 = vsub.f32 %v2884, %v2885
          %v2887 = vand.u32 %v2886, 4294901760
          %2888 = vmatprep.subr.mxu0 %v2887
          %v2889 = vand.u32 %v2634, 4294901760
          %v2890 = vsub.f32 %v2634, %v2889
          %v2891 = vand.u32 %v2890, 4294901760
          %v2892 = vsub.f32 %v2890, %v2891
          %v2893 = vand.u32 %v2892, 4294901760
          %2894 = vmatpush1.msra.mxu0 %v2893
          %v2895 = vand.u32 %v2633, 4294901760
          %v2896 = vsub.f32 %v2633, %v2895
          %v2897 = vand.u32 %v2896, 4294901760
          %v2898 = vsub.f32 %v2896, %v2897
          %v2899 = vand.u32 %v2898, 4294901760
          %2900 = vmatprep.subr.mxu0 %v2899
          %v2901 = vand.u32 %v2632, 4294901760
          %v2902 = vsub.f32 %v2632, %v2901
          %v2903 = vand.u32 %v2902, 4294901760
          %v2904 = vsub.f32 %v2902, %v2903
          %v2905 = vand.u32 %v2904, 4294901760
          %2906 = vmatpush1.msra.mxu0 %v2905
          %v2907 = vand.u32 %v2631, 4294901760
          %v2908 = vsub.f32 %v2631, %v2907
          %v2909 = vand.u32 %v2908, 4294901760
          %v2910 = vsub.f32 %v2908, %v2909
          %v2911 = vand.u32 %v2910, 4294901760
          %2912 = vmatprep.subr.mxu0 %v2911
          %v2913 = vand.u32 %v2630, 4294901760
          %v2914 = vsub.f32 %v2630, %v2913
          %v2915 = vand.u32 %v2914, 4294901760
          %v2916 = vsub.f32 %v2914, %v2915
          %v2917 = vand.u32 %v2916, 4294901760
          %2918 = vmatpush1.msra.mxu0 %v2917
          %v2919 = vand.u32 %v2629, 4294901760
          %v2920 = vsub.f32 %v2629, %v2919
          %v2921 = vand.u32 %v2920, 4294901760
          %v2922 = vsub.f32 %v2920, %v2921
          %v2923 = vand.u32 %v2922, 4294901760
          %2924 = vmatprep.subr.mxu0 %v2923
          %v2925 = vand.u32 %v2628, 4294901760
          %v2926 = vsub.f32 %v2628, %v2925
          %v2927 = vand.u32 %v2926, 4294901760
          %v2928 = vsub.f32 %v2926, %v2927
          %v2929 = vand.u32 %v2928, 4294901760
          %2930 = vmatpush1.msra.mxu0 %v2929
          %v2931 = vand.u32 %v2627, 4294901760
          %v2932 = vsub.f32 %v2627, %v2931
          %v2933 = vand.u32 %v2932, 4294901760
          %v2934 = vsub.f32 %v2932, %v2933
          %v2935 = vand.u32 %v2934, 4294901760
          %2936 = vmatprep.subr.mxu0 %v2935
          %v2937 = vand.u32 %v2626, 4294901760
          %v2938 = vsub.f32 %v2626, %v2937
          %v2939 = vand.u32 %v2938, 4294901760
          %v2940 = vsub.f32 %v2938, %v2939
          %v2941 = vand.u32 %v2940, 4294901760
          %2942 = vmatpush1.msra.mxu0 %v2941
          %v2943 = vand.u32 %v2625, 4294901760
          %v2944 = vsub.f32 %v2625, %v2943
          %v2945 = vand.u32 %v2944, 4294901760
          %v2946 = vsub.f32 %v2944, %v2945
          %v2947 = vand.u32 %v2946, 4294901760
          %2948 = vmatprep.subr.mxu0 %v2947
          %v2949 = vand.u32 %v2624, 4294901760
          %v2950 = vsub.f32 %v2624, %v2949
          %v2951 = vand.u32 %v2950, 4294901760
          %v2952 = vsub.f32 %v2950, %v2951
          %v2953 = vand.u32 %v2952, 4294901760
          %2954 = vmatpush1.msra.mxu0 %v2953
          %v2955 = vand.u32 %v2623, 4294901760
          %v2956 = vsub.f32 %v2623, %v2955
          %v2957 = vand.u32 %v2956, 4294901760
          %v2958 = vsub.f32 %v2956, %v2957
          %v2959 = vand.u32 %v2958, 4294901760
          %2960 = vmatprep.subr.mxu0 %v2959
          %v2961 = vand.u32 %v2622, 4294901760
          %v2962 = vsub.f32 %v2622, %v2961
          %v2963 = vand.u32 %v2962, 4294901760
          %v2964 = vsub.f32 %v2962, %v2963
          %v2965 = vand.u32 %v2964, 4294901760
          %2966 = vmatpush1.msra.mxu0 %v2965
          %v2967 = vand.u32 %v2621, 4294901760
          %v2968 = vsub.f32 %v2621, %v2967
          %v2969 = vand.u32 %v2968, 4294901760
          %v2970 = vsub.f32 %v2968, %v2969
          %v2971 = vand.u32 %v2970, 4294901760
          %2972 = vmatprep.subr.mxu0 %v2971
          %v2973 = vand.u32 %v2620, 4294901760
          %v2974 = vsub.f32 %v2620, %v2973
          %v2975 = vand.u32 %v2974, 4294901760
          %v2976 = vsub.f32 %v2974, %v2975
          %v2977 = vand.u32 %v2976, 4294901760
          %2978 = vmatpush1.msra.mxu0 %v2977
          %v2979 = vand.u32 %v2619, 4294901760
          %v2980 = vsub.f32 %v2619, %v2979
          %v2981 = vand.u32 %v2980, 4294901760
          %v2982 = vsub.f32 %v2980, %v2981
          %v2983 = vand.u32 %v2982, 4294901760
          %2984 = vmatprep.subr.mxu0 %v2983
          %v2985 = vand.u32 %v2618, 4294901760
          %v2986 = vsub.f32 %v2618, %v2985
          %v2987 = vand.u32 %v2986, 4294901760
          %v2988 = vsub.f32 %v2986, %v2987
          %v2989 = vand.u32 %v2988, 4294901760
          %2990 = vmatpush1.msra.mxu0 %v2989
          %v2991 = vand.u32 %v2617, 4294901760
          %v2992 = vsub.f32 %v2617, %v2991
          %v2993 = vand.u32 %v2992, 4294901760
          %v2994 = vsub.f32 %v2992, %v2993
          %v2995 = vand.u32 %v2994, 4294901760
          %2996 = vmatprep.subr.mxu0 %v2995
          %v2997 = vand.u32 %v2616, 4294901760
          %v2998 = vsub.f32 %v2616, %v2997
          %v2999 = vand.u32 %v2998, 4294901760
          %v3000 = vsub.f32 %v2998, %v2999
          %v3001 = vand.u32 %v3000, 4294901760
          %3002 = vmatpush1.msra.mxu0 %v3001
          %v3003 = vand.u32 %v2615, 4294901760
          %v3004 = vsub.f32 %v2615, %v3003
          %v3005 = vand.u32 %v3004, 4294901760
          %v3006 = vsub.f32 %v3004, %v3005
          %v3007 = vand.u32 %v3006, 4294901760
          %3008 = vmatprep.subr.mxu0 %v3007
          %v3009 = vand.u32 %v2614, 4294901760
          %v3010 = vsub.f32 %v2614, %v3009
          %v3011 = vand.u32 %v3010, 4294901760
          %v3012 = vsub.f32 %v3010, %v3011
          %v3013 = vand.u32 %v3012, 4294901760
          %3014 = vmatpush1.msra.mxu0 %v3013
          %v3015 = vand.u32 %v2677, 4294901760
          %v3016 = vsub.f32 %v2677, %v3015
          %v3017 = vand.u32 %v3016, 4294901760
          %v3018 = vsub.f32 %v3016, %v3017
          %v3019 = vand.u32 %v3018, 4294901760
          %3020 = vmatprep.subr.mxu0 %v3019
          %v3021 = vand.u32 %v2676, 4294901760
          %v3022 = vsub.f32 %v2676, %v3021
          %v3023 = vand.u32 %v3022, 4294901760
          %v3024 = vsub.f32 %v3022, %v3023
          %v3025 = vand.u32 %v3024, 4294901760
          %3026 = vmatpush2.msra.mxu0 %v3025
          %v3027 = vand.u32 %v2675, 4294901760
          %v3028 = vsub.f32 %v2675, %v3027
          %v3029 = vand.u32 %v3028, 4294901760
          %v3030 = vsub.f32 %v3028, %v3029
          %v3031 = vand.u32 %v3030, 4294901760
          %3032 = vmatprep.subr.mxu0 %v3031
          %v3033 = vand.u32 %v2674, 4294901760
          %v3034 = vsub.f32 %v2674, %v3033
          %v3035 = vand.u32 %v3034, 4294901760
          %v3036 = vsub.f32 %v3034, %v3035
          %v3037 = vand.u32 %v3036, 4294901760
          %3038 = vmatpush2.msra.mxu0 %v3037
          %v3039 = vand.u32 %v2673, 4294901760
          %v3040 = vsub.f32 %v2673, %v3039
          %v3041 = vand.u32 %v3040, 4294901760
          %v3042 = vsub.f32 %v3040, %v3041
          %v3043 = vand.u32 %v3042, 4294901760
          %3044 = vmatprep.subr.mxu0 %v3043
          %v3045 = vand.u32 %v2672, 4294901760
          %v3046 = vsub.f32 %v2672, %v3045
          %v3047 = vand.u32 %v3046, 4294901760
          %v3048 = vsub.f32 %v3046, %v3047
          %v3049 = vand.u32 %v3048, 4294901760
          %3050 = vmatpush2.msra.mxu0 %v3049
          %v3051 = vand.u32 %v2671, 4294901760
          %v3052 = vsub.f32 %v2671, %v3051
          %v3053 = vand.u32 %v3052, 4294901760
          %v3054 = vsub.f32 %v3052, %v3053
          %v3055 = vand.u32 %v3054, 4294901760
          %3056 = vmatprep.subr.mxu0 %v3055
          %v3057 = vand.u32 %v2670, 4294901760
          %v3058 = vsub.f32 %v2670, %v3057
          %v3059 = vand.u32 %v3058, 4294901760
          %v3060 = vsub.f32 %v3058, %v3059
          %v3061 = vand.u32 %v3060, 4294901760
          %3062 = vmatpush2.msra.mxu0 %v3061
          %v3063 = vand.u32 %v2669, 4294901760
          %v3064 = vsub.f32 %v2669, %v3063
          %v3065 = vand.u32 %v3064, 4294901760
          %v3066 = vsub.f32 %v3064, %v3065
          %v3067 = vand.u32 %v3066, 4294901760
          %3068 = vmatprep.subr.mxu0 %v3067
          %v3069 = vand.u32 %v2668, 4294901760
          %v3070 = vsub.f32 %v2668, %v3069
          %v3071 = vand.u32 %v3070, 4294901760
          %v3072 = vsub.f32 %v3070, %v3071
          %v3073 = vand.u32 %v3072, 4294901760
          %3074 = vmatpush2.msra.mxu0 %v3073
          %v3075 = vand.u32 %v2667, 4294901760
          %v3076 = vsub.f32 %v2667, %v3075
          %v3077 = vand.u32 %v3076, 4294901760
          %v3078 = vsub.f32 %v3076, %v3077
          %v3079 = vand.u32 %v3078, 4294901760
          %3080 = vmatprep.subr.mxu0 %v3079
          %v3081 = vand.u32 %v2666, 4294901760
          %v3082 = vsub.f32 %v2666, %v3081
          %v3083 = vand.u32 %v3082, 4294901760
          %v3084 = vsub.f32 %v3082, %v3083
          %v3085 = vand.u32 %v3084, 4294901760
          %3086 = vmatpush2.msra.mxu0 %v3085
          %v3087 = vand.u32 %v2665, 4294901760
          %v3088 = vsub.f32 %v2665, %v3087
          %v3089 = vand.u32 %v3088, 4294901760
          %v3090 = vsub.f32 %v3088, %v3089
          %v3091 = vand.u32 %v3090, 4294901760
          %3092 = vmatprep.subr.mxu0 %v3091
          %v3093 = vand.u32 %v2664, 4294901760
          %v3094 = vsub.f32 %v2664, %v3093
          %v3095 = vand.u32 %v3094, 4294901760
          %v3096 = vsub.f32 %v3094, %v3095
          %v3097 = vand.u32 %v3096, 4294901760
          %3098 = vmatpush2.msra.mxu0 %v3097
          %v3099 = vand.u32 %v2663, 4294901760
          %v3100 = vsub.f32 %v2663, %v3099
          %v3101 = vand.u32 %v3100, 4294901760
          %v3102 = vsub.f32 %v3100, %v3101
          %v3103 = vand.u32 %v3102, 4294901760
          %3104 = vmatprep.subr.mxu0 %v3103
          %v3105 = vand.u32 %v2662, 4294901760
          %v3106 = vsub.f32 %v2662, %v3105
          %v3107 = vand.u32 %v3106, 4294901760
          %v3108 = vsub.f32 %v3106, %v3107
          %v3109 = vand.u32 %v3108, 4294901760
          %3110 = vmatpush2.msra.mxu0 %v3109
          %v3111 = vand.u32 %v2661, 4294901760
          %v3112 = vsub.f32 %v2661, %v3111
          %v3113 = vand.u32 %v3112, 4294901760
          %v3114 = vsub.f32 %v3112, %v3113
          %v3115 = vand.u32 %v3114, 4294901760
          %3116 = vmatprep.subr.mxu0 %v3115
          %v3117 = vand.u32 %v2660, 4294901760
          %v3118 = vsub.f32 %v2660, %v3117
          %v3119 = vand.u32 %v3118, 4294901760
          %v3120 = vsub.f32 %v3118, %v3119
          %v3121 = vand.u32 %v3120, 4294901760
          %3122 = vmatpush2.msra.mxu0 %v3121
          %v3123 = vand.u32 %v2659, 4294901760
          %v3124 = vsub.f32 %v2659, %v3123
          %v3125 = vand.u32 %v3124, 4294901760
          %v3126 = vsub.f32 %v3124, %v3125
          %v3127 = vand.u32 %v3126, 4294901760
          %3128 = vmatprep.subr.mxu0 %v3127
          %v3129 = vand.u32 %v2658, 4294901760
          %v3130 = vsub.f32 %v2658, %v3129
          %v3131 = vand.u32 %v3130, 4294901760
          %v3132 = vsub.f32 %v3130, %v3131
          %v3133 = vand.u32 %v3132, 4294901760
          %3134 = vmatpush2.msra.mxu0 %v3133
          %v3135 = vand.u32 %v2657, 4294901760
          %v3136 = vsub.f32 %v2657, %v3135
          %v3137 = vand.u32 %v3136, 4294901760
          %v3138 = vsub.f32 %v3136, %v3137
          %v3139 = vand.u32 %v3138, 4294901760
          %3140 = vmatprep.subr.mxu0 %v3139
          %v3141 = vand.u32 %v2656, 4294901760
          %v3142 = vsub.f32 %v2656, %v3141
          %v3143 = vand.u32 %v3142, 4294901760
          %v3144 = vsub.f32 %v3142, %v3143
          %v3145 = vand.u32 %v3144, 4294901760
          %3146 = vmatpush2.msra.mxu0 %v3145
          %v3147 = vand.u32 %v2655, 4294901760
          %v3148 = vsub.f32 %v2655, %v3147
          %v3149 = vand.u32 %v3148, 4294901760
          %v3150 = vsub.f32 %v3148, %v3149
          %v3151 = vand.u32 %v3150, 4294901760
          %3152 = vmatprep.subr.mxu0 %v3151
          %v3153 = vand.u32 %v2654, 4294901760
          %v3154 = vsub.f32 %v2654, %v3153
          %v3155 = vand.u32 %v3154, 4294901760
          %v3156 = vsub.f32 %v3154, %v3155
          %v3157 = vand.u32 %v3156, 4294901760
          %3158 = vmatpush2.msra.mxu0 %v3157
          %v3159 = vand.u32 %v2653, 4294901760
          %v3160 = vsub.f32 %v2653, %v3159
          %v3161 = vand.u32 %v3160, 4294901760
          %v3162 = vsub.f32 %v3160, %v3161
          %v3163 = vand.u32 %v3162, 4294901760
          %3164 = vmatprep.subr.mxu0 %v3163
          %v3165 = vand.u32 %v2652, 4294901760
          %v3166 = vsub.f32 %v2652, %v3165
          %v3167 = vand.u32 %v3166, 4294901760
          %v3168 = vsub.f32 %v3166, %v3167
          %v3169 = vand.u32 %v3168, 4294901760
          %3170 = vmatpush2.msra.mxu0 %v3169
          %v3171 = vand.u32 %v2651, 4294901760
          %v3172 = vsub.f32 %v2651, %v3171
          %v3173 = vand.u32 %v3172, 4294901760
          %v3174 = vsub.f32 %v3172, %v3173
          %v3175 = vand.u32 %v3174, 4294901760
          %3176 = vmatprep.subr.mxu0 %v3175
          %v3177 = vand.u32 %v2650, 4294901760
          %v3178 = vsub.f32 %v2650, %v3177
          %v3179 = vand.u32 %v3178, 4294901760
          %v3180 = vsub.f32 %v3178, %v3179
          %v3181 = vand.u32 %v3180, 4294901760
          %3182 = vmatpush2.msra.mxu0 %v3181
          %v3183 = vand.u32 %v2649, 4294901760
          %v3184 = vsub.f32 %v2649, %v3183
          %v3185 = vand.u32 %v3184, 4294901760
          %v3186 = vsub.f32 %v3184, %v3185
          %v3187 = vand.u32 %v3186, 4294901760
          %3188 = vmatprep.subr.mxu0 %v3187
          %v3189 = vand.u32 %v2648, 4294901760
          %v3190 = vsub.f32 %v2648, %v3189
          %v3191 = vand.u32 %v3190, 4294901760
          %v3192 = vsub.f32 %v3190, %v3191
          %v3193 = vand.u32 %v3192, 4294901760
          %3194 = vmatpush2.msra.mxu0 %v3193
          %v3195 = vand.u32 %v2647, 4294901760
          %v3196 = vsub.f32 %v2647, %v3195
          %v3197 = vand.u32 %v3196, 4294901760
          %v3198 = vsub.f32 %v3196, %v3197
          %v3199 = vand.u32 %v3198, 4294901760
          %3200 = vmatprep.subr.mxu0 %v3199
          %v3201 = vand.u32 %v2646, 4294901760
          %v3202 = vsub.f32 %v2646, %v3201
          %v3203 = vand.u32 %v3202, 4294901760
          %v3204 = vsub.f32 %v3202, %v3203
          %v3205 = vand.u32 %v3204, 4294901760
          %3206 = vmatpush2.msra.mxu0 %v3205
          %v3207 = vand.u32 %v2613, 4294901760
          %3208 = vmatprep.mubr.f32.mxu0 %v3207
          %v3209 = vand.u32 %v2612, 4294901760
          %3210 = vmatmul.mubr.f32.gmra.mxu0 %v3209
          %v3211 = vpop.f32.mrf.mxu0
          %v3212 = vadd.f32 %v2819, %v3211
          %v3213 = vpop.f32.mrf.mxu0
          %v3214 = vadd.f32 %v2821, %v3213
          %3215 = vdwg.mxu0
          %v3216 = vand.u32 %v2645, 4294901760
          %v3217 = vsub.f32 %v2645, %v3216
          %3218 = vmatprep.subr.mxu0 %v3217
          %v3219 = vand.u32 %v2644, 4294901760
          %v3220 = vsub.f32 %v2644, %v3219
          %3221 = vmatpush1.msra.mxu0 %v3220
          %v3222 = vand.u32 %v2643, 4294901760
          %v3223 = vsub.f32 %v2643, %v3222
          %3224 = vmatprep.subr.mxu0 %v3223
          %v3225 = vand.u32 %v2642, 4294901760
          %v3226 = vsub.f32 %v2642, %v3225
          %3227 = vmatpush1.msra.mxu0 %v3226
          %v3228 = vand.u32 %v2641, 4294901760
          %v3229 = vsub.f32 %v2641, %v3228
          %3230 = vmatprep.subr.mxu0 %v3229
          %v3231 = vand.u32 %v2640, 4294901760
          %v3232 = vsub.f32 %v2640, %v3231
          %3233 = vmatpush1.msra.mxu0 %v3232
          %v3234 = vand.u32 %v2639, 4294901760
          %v3235 = vsub.f32 %v2639, %v3234
          %3236 = vmatprep.subr.mxu0 %v3235
          %v3237 = vand.u32 %v2638, 4294901760
          %v3238 = vsub.f32 %v2638, %v3237
          %3239 = vmatpush1.msra.mxu0 %v3238
          %v3240 = vand.u32 %v2637, 4294901760
          %v3241 = vsub.f32 %v2637, %v3240
          %3242 = vmatprep.subr.mxu0 %v3241
          %v3243 = vand.u32 %v2636, 4294901760
          %v3244 = vsub.f32 %v2636, %v3243
          %3245 = vmatpush1.msra.mxu0 %v3244
          %v3246 = vand.u32 %v2635, 4294901760
          %v3247 = vsub.f32 %v2635, %v3246
          %3248 = vmatprep.subr.mxu0 %v3247
          %v3249 = vand.u32 %v2634, 4294901760
          %v3250 = vsub.f32 %v2634, %v3249
          %3251 = vmatpush1.msra.mxu0 %v3250
          %v3252 = vand.u32 %v2633, 4294901760
          %v3253 = vsub.f32 %v2633, %v3252
          %3254 = vmatprep.subr.mxu0 %v3253
          %v3255 = vand.u32 %v2632, 4294901760
          %v3256 = vsub.f32 %v2632, %v3255
          %3257 = vmatpush1.msra.mxu0 %v3256
          %v3258 = vand.u32 %v2631, 4294901760
          %v3259 = vsub.f32 %v2631, %v3258
          %3260 = vmatprep.subr.mxu0 %v3259
          %v3261 = vand.u32 %v2630, 4294901760
          %v3262 = vsub.f32 %v2630, %v3261
          %3263 = vmatpush1.msra.mxu0 %v3262
          %v3264 = vand.u32 %v2629, 4294901760
          %v3265 = vsub.f32 %v2629, %v3264
          %3266 = vmatprep.subr.mxu0 %v3265
          %v3267 = vand.u32 %v2628, 4294901760
          %v3268 = vsub.f32 %v2628, %v3267
          %3269 = vmatpush1.msra.mxu0 %v3268
          %v3270 = vand.u32 %v2627, 4294901760
          %v3271 = vsub.f32 %v2627, %v3270
          %3272 = vmatprep.subr.mxu0 %v3271
          %v3273 = vand.u32 %v2626, 4294901760
          %v3274 = vsub.f32 %v2626, %v3273
          %3275 = vmatpush1.msra.mxu0 %v3274
          %v3276 = vand.u32 %v2625, 4294901760
          %v3277 = vsub.f32 %v2625, %v3276
          %3278 = vmatprep.subr.mxu0 %v3277
          %v3279 = vand.u32 %v2624, 4294901760
          %v3280 = vsub.f32 %v2624, %v3279
          %3281 = vmatpush1.msra.mxu0 %v3280
          %v3282 = vand.u32 %v2623, 4294901760
          %v3283 = vsub.f32 %v2623, %v3282
          %3284 = vmatprep.subr.mxu0 %v3283
          %v3285 = vand.u32 %v2622, 4294901760
          %v3286 = vsub.f32 %v2622, %v3285
          %3287 = vmatpush1.msra.mxu0 %v3286
          %v3288 = vand.u32 %v2621, 4294901760
          %v3289 = vsub.f32 %v2621, %v3288
          %3290 = vmatprep.subr.mxu0 %v3289
          %v3291 = vand.u32 %v2620, 4294901760
          %v3292 = vsub.f32 %v2620, %v3291
          %3293 = vmatpush1.msra.mxu0 %v3292
          %v3294 = vand.u32 %v2619, 4294901760
          %v3295 = vsub.f32 %v2619, %v3294
          %3296 = vmatprep.subr.mxu0 %v3295
          %v3297 = vand.u32 %v2618, 4294901760
          %v3298 = vsub.f32 %v2618, %v3297
          %3299 = vmatpush1.msra.mxu0 %v3298
          %v3300 = vand.u32 %v2617, 4294901760
          %v3301 = vsub.f32 %v2617, %v3300
          %3302 = vmatprep.subr.mxu0 %v3301
          %v3303 = vand.u32 %v2616, 4294901760
          %v3304 = vsub.f32 %v2616, %v3303
          %3305 = vmatpush1.msra.mxu0 %v3304
          %v3306 = vand.u32 %v2615, 4294901760
          %v3307 = vsub.f32 %v2615, %v3306
          %3308 = vmatprep.subr.mxu0 %v3307
          %v3309 = vand.u32 %v2614, 4294901760
          %v3310 = vsub.f32 %v2614, %v3309
          %3311 = vmatpush1.msra.mxu0 %v3310
          %v3312 = vand.u32 %v2677, 4294901760
          %v3313 = vsub.f32 %v2677, %v3312
          %3314 = vmatprep.subr.mxu0 %v3313
          %v3315 = vand.u32 %v2676, 4294901760
          %v3316 = vsub.f32 %v2676, %v3315
          %3317 = vmatpush2.msra.mxu0 %v3316
          %v3318 = vand.u32 %v2675, 4294901760
          %v3319 = vsub.f32 %v2675, %v3318
          %3320 = vmatprep.subr.mxu0 %v3319
          %v3321 = vand.u32 %v2674, 4294901760
          %v3322 = vsub.f32 %v2674, %v3321
          %3323 = vmatpush2.msra.mxu0 %v3322
          %v3324 = vand.u32 %v2673, 4294901760
          %v3325 = vsub.f32 %v2673, %v3324
          %3326 = vmatprep.subr.mxu0 %v3325
          %v3327 = vand.u32 %v2672, 4294901760
          %v3328 = vsub.f32 %v2672, %v3327
          %3329 = vmatpush2.msra.mxu0 %v3328
          %v3330 = vand.u32 %v2671, 4294901760
          %v3331 = vsub.f32 %v2671, %v3330
          %3332 = vmatprep.subr.mxu0 %v3331
          %v3333 = vand.u32 %v2670, 4294901760
          %v3334 = vsub.f32 %v2670, %v3333
          %3335 = vmatpush2.msra.mxu0 %v3334
          %v3336 = vand.u32 %v2669, 4294901760
          %v3337 = vsub.f32 %v2669, %v3336
          %3338 = vmatprep.subr.mxu0 %v3337
          %v3339 = vand.u32 %v2668, 4294901760
          %v3340 = vsub.f32 %v2668, %v3339
          %3341 = vmatpush2.msra.mxu0 %v3340
          %v3342 = vand.u32 %v2667, 4294901760
          %v3343 = vsub.f32 %v2667, %v3342
          %3344 = vmatprep.subr.mxu0 %v3343
          %v3345 = vand.u32 %v2666, 4294901760
          %v3346 = vsub.f32 %v2666, %v3345
          %3347 = vmatpush2.msra.mxu0 %v3346
          %v3348 = vand.u32 %v2665, 4294901760
          %v3349 = vsub.f32 %v2665, %v3348
          %3350 = vmatprep.subr.mxu0 %v3349
          %v3351 = vand.u32 %v2664, 4294901760
          %v3352 = vsub.f32 %v2664, %v3351
          %3353 = vmatpush2.msra.mxu0 %v3352
          %v3354 = vand.u32 %v2663, 4294901760
          %v3355 = vsub.f32 %v2663, %v3354
          %3356 = vmatprep.subr.mxu0 %v3355
          %v3357 = vand.u32 %v2662, 4294901760
          %v3358 = vsub.f32 %v2662, %v3357
          %3359 = vmatpush2.msra.mxu0 %v3358
          %v3360 = vand.u32 %v2661, 4294901760
          %v3361 = vsub.f32 %v2661, %v3360
          %3362 = vmatprep.subr.mxu0 %v3361
          %v3363 = vand.u32 %v2660, 4294901760
          %v3364 = vsub.f32 %v2660, %v3363
          %3365 = vmatpush2.msra.mxu0 %v3364
          %v3366 = vand.u32 %v2659, 4294901760
          %v3367 = vsub.f32 %v2659, %v3366
          %3368 = vmatprep.subr.mxu0 %v3367
          %v3369 = vand.u32 %v2658, 4294901760
          %v3370 = vsub.f32 %v2658, %v3369
          %3371 = vmatpush2.msra.mxu0 %v3370
          %v3372 = vand.u32 %v2657, 4294901760
          %v3373 = vsub.f32 %v2657, %v3372
          %3374 = vmatprep.subr.mxu0 %v3373
          %v3375 = vand.u32 %v2656, 4294901760
          %v3376 = vsub.f32 %v2656, %v3375
          %3377 = vmatpush2.msra.mxu0 %v3376
          %v3378 = vand.u32 %v2655, 4294901760
          %v3379 = vsub.f32 %v2655, %v3378
          %3380 = vmatprep.subr.mxu0 %v3379
          %v3381 = vand.u32 %v2654, 4294901760
          %v3382 = vsub.f32 %v2654, %v3381
          %3383 = vmatpush2.msra.mxu0 %v3382
          %v3384 = vand.u32 %v2653, 4294901760
          %v3385 = vsub.f32 %v2653, %v3384
          %3386 = vmatprep.subr.mxu0 %v3385
          %v3387 = vand.u32 %v2652, 4294901760
          %v3388 = vsub.f32 %v2652, %v3387
          %3389 = vmatpush2.msra.mxu0 %v3388
          %v3390 = vand.u32 %v2651, 4294901760
          %v3391 = vsub.f32 %v2651, %v3390
          %3392 = vmatprep.subr.mxu0 %v3391
          %v3393 = vand.u32 %v2650, 4294901760
          %v3394 = vsub.f32 %v2650, %v3393
          %3395 = vmatpush2.msra.mxu0 %v3394
          %v3396 = vand.u32 %v2649, 4294901760
          %v3397 = vsub.f32 %v2649, %v3396
          %3398 = vmatprep.subr.mxu0 %v3397
          %v3399 = vand.u32 %v2648, 4294901760
          %v3400 = vsub.f32 %v2648, %v3399
          %3401 = vmatpush2.msra.mxu0 %v3400
          %v3402 = vand.u32 %v2647, 4294901760
          %v3403 = vsub.f32 %v2647, %v3402
          %3404 = vmatprep.subr.mxu0 %v3403
          %v3405 = vand.u32 %v2646, 4294901760
          %v3406 = vsub.f32 %v2646, %v3405
          %3407 = vmatpush2.msra.mxu0 %v3406
          %v3408 = vand.u32 %v2613, 4294901760
          %v3409 = vsub.f32 %v2613, %v3408
          %3410 = vmatprep.mubr.f32.mxu0 %v3409
          %v3411 = vand.u32 %v2612, 4294901760
          %v3412 = vsub.f32 %v2612, %v3411
          %3413 = vmatmul.mubr.f32.gmra.mxu0 %v3412
          %v3414 = vpop.f32.mrf.mxu0
          %v3415 = vadd.f32 %v3212, %v3414
          %v3416 = vpop.f32.mrf.mxu0
          %v3417 = vadd.f32 %v3214, %v3416
          %3418 = vdwg.mxu0
          %v3419 = vand.u32 %v2645, 4294901760
          %3420 = vmatprep.subr.mxu0 %v3419
          %v3421 = vand.u32 %v2644, 4294901760
          %3422 = vmatpush1.msra.mxu0 %v3421
          %v3423 = vand.u32 %v2643, 4294901760
          %3424 = vmatprep.subr.mxu0 %v3423
          %v3425 = vand.u32 %v2642, 4294901760
          %3426 = vmatpush1.msra.mxu0 %v3425
          %v3427 = vand.u32 %v2641, 4294901760
          %3428 = vmatprep.subr.mxu0 %v3427
          %v3429 = vand.u32 %v2640, 4294901760
          %3430 = vmatpush1.msra.mxu0 %v3429
          %v3431 = vand.u32 %v2639, 4294901760
          %3432 = vmatprep.subr.mxu0 %v3431
          %v3433 = vand.u32 %v2638, 4294901760
          %3434 = vmatpush1.msra.mxu0 %v3433
          %v3435 = vand.u32 %v2637, 4294901760
          %3436 = vmatprep.subr.mxu0 %v3435
          %v3437 = vand.u32 %v2636, 4294901760
          %3438 = vmatpush1.msra.mxu0 %v3437
          %v3439 = vand.u32 %v2635, 4294901760
          %3440 = vmatprep.subr.mxu0 %v3439
          %v3441 = vand.u32 %v2634, 4294901760
          %3442 = vmatpush1.msra.mxu0 %v3441
          %v3443 = vand.u32 %v2633, 4294901760
          %3444 = vmatprep.subr.mxu0 %v3443
          %v3445 = vand.u32 %v2632, 4294901760
          %3446 = vmatpush1.msra.mxu0 %v3445
          %v3447 = vand.u32 %v2631, 4294901760
          %3448 = vmatprep.subr.mxu0 %v3447
          %v3449 = vand.u32 %v2630, 4294901760
          %3450 = vmatpush1.msra.mxu0 %v3449
          %v3451 = vand.u32 %v2629, 4294901760
          %3452 = vmatprep.subr.mxu0 %v3451
          %v3453 = vand.u32 %v2628, 4294901760
          %3454 = vmatpush1.msra.mxu0 %v3453
          %v3455 = vand.u32 %v2627, 4294901760
          %3456 = vmatprep.subr.mxu0 %v3455
          %v3457 = vand.u32 %v2626, 4294901760
          %3458 = vmatpush1.msra.mxu0 %v3457
          %v3459 = vand.u32 %v2625, 4294901760
          %3460 = vmatprep.subr.mxu0 %v3459
          %v3461 = vand.u32 %v2624, 4294901760
          %3462 = vmatpush1.msra.mxu0 %v3461
          %v3463 = vand.u32 %v2623, 4294901760
          %3464 = vmatprep.subr.mxu0 %v3463
          %v3465 = vand.u32 %v2622, 4294901760
          %3466 = vmatpush1.msra.mxu0 %v3465
          %v3467 = vand.u32 %v2621, 4294901760
          %3468 = vmatprep.subr.mxu0 %v3467
          %v3469 = vand.u32 %v2620, 4294901760
          %3470 = vmatpush1.msra.mxu0 %v3469
          %v3471 = vand.u32 %v2619, 4294901760
          %3472 = vmatprep.subr.mxu0 %v3471
          %v3473 = vand.u32 %v2618, 4294901760
          %3474 = vmatpush1.msra.mxu0 %v3473
          %v3475 = vand.u32 %v2617, 4294901760
          %3476 = vmatprep.subr.mxu0 %v3475
          %v3477 = vand.u32 %v2616, 4294901760
          %3478 = vmatpush1.msra.mxu0 %v3477
          %v3479 = vand.u32 %v2615, 4294901760
          %3480 = vmatprep.subr.mxu0 %v3479
          %v3481 = vand.u32 %v2614, 4294901760
          %3482 = vmatpush1.msra.mxu0 %v3481
          %v3483 = vand.u32 %v2677, 4294901760
          %3484 = vmatprep.subr.mxu0 %v3483
          %v3485 = vand.u32 %v2676, 4294901760
          %3486 = vmatpush2.msra.mxu0 %v3485
          %v3487 = vand.u32 %v2675, 4294901760
          %3488 = vmatprep.subr.mxu0 %v3487
          %v3489 = vand.u32 %v2674, 4294901760
          %3490 = vmatpush2.msra.mxu0 %v3489
          %v3491 = vand.u32 %v2673, 4294901760
          %3492 = vmatprep.subr.mxu0 %v3491
          %v3493 = vand.u32 %v2672, 4294901760
          %3494 = vmatpush2.msra.mxu0 %v3493
          %v3495 = vand.u32 %v2671, 4294901760
          %3496 = vmatprep.subr.mxu0 %v3495
          %v3497 = vand.u32 %v2670, 4294901760
          %3498 = vmatpush2.msra.mxu0 %v3497
          %v3499 = vand.u32 %v2669, 4294901760
          %3500 = vmatprep.subr.mxu0 %v3499
          %v3501 = vand.u32 %v2668, 4294901760
          %3502 = vmatpush2.msra.mxu0 %v3501
          %v3503 = vand.u32 %v2667, 4294901760
          %3504 = vmatprep.subr.mxu0 %v3503
          %v3505 = vand.u32 %v2666, 4294901760
          %3506 = vmatpush2.msra.mxu0 %v3505
          %v3507 = vand.u32 %v2665, 4294901760
          %3508 = vmatprep.subr.mxu0 %v3507
          %v3509 = vand.u32 %v2664, 4294901760
          %3510 = vmatpush2.msra.mxu0 %v3509
          %v3511 = vand.u32 %v2663, 4294901760
          %3512 = vmatprep.subr.mxu0 %v3511
          %v3513 = vand.u32 %v2662, 4294901760
          %3514 = vmatpush2.msra.mxu0 %v3513
          %v3515 = vand.u32 %v2661, 4294901760
          %3516 = vmatprep.subr.mxu0 %v3515
          %v3517 = vand.u32 %v2660, 4294901760
          %3518 = vmatpush2.msra.mxu0 %v3517
          %v3519 = vand.u32 %v2659, 4294901760
          %3520 = vmatprep.subr.mxu0 %v3519
          %v3521 = vand.u32 %v2658, 4294901760
          %3522 = vmatpush2.msra.mxu0 %v3521
          %v3523 = vand.u32 %v2657, 4294901760
          %3524 = vmatprep.subr.mxu0 %v3523
          %v3525 = vand.u32 %v2656, 4294901760
          %3526 = vmatpush2.msra.mxu0 %v3525
          %v3527 = vand.u32 %v2655, 4294901760
          %3528 = vmatprep.subr.mxu0 %v3527
          %v3529 = vand.u32 %v2654, 4294901760
          %3530 = vmatpush2.msra.mxu0 %v3529
          %v3531 = vand.u32 %v2653, 4294901760
          %3532 = vmatprep.subr.mxu0 %v3531
          %v3533 = vand.u32 %v2652, 4294901760
          %3534 = vmatpush2.msra.mxu0 %v3533
          %v3535 = vand.u32 %v2651, 4294901760
          %3536 = vmatprep.subr.mxu0 %v3535
          %v3537 = vand.u32 %v2650, 4294901760
          %3538 = vmatpush2.msra.mxu0 %v3537
          %v3539 = vand.u32 %v2649, 4294901760
          %3540 = vmatprep.subr.mxu0 %v3539
          %v3541 = vand.u32 %v2648, 4294901760
          %3542 = vmatpush2.msra.mxu0 %v3541
          %v3543 = vand.u32 %v2647, 4294901760
          %3544 = vmatprep.subr.mxu0 %v3543
          %v3545 = vand.u32 %v2646, 4294901760
          %3546 = vmatpush2.msra.mxu0 %v3545
          %v3547 = vand.u32 %v2613, 4294901760
          %v3548 = vsub.f32 %v2613, %v3547
          %v3549 = vand.u32 %v3548, 4294901760
          %3550 = vmatprep.mubr.f32.mxu0 %v3549
          %v3551 = vand.u32 %v2612, 4294901760
          %v3552 = vsub.f32 %v2612, %v3551
          %v3553 = vand.u32 %v3552, 4294901760
          %3554 = vmatmul.mubr.f32.gmra.mxu0 %v3553
          %v3555 = vpop.f32.mrf.mxu0
          %v3556 = vadd.f32 %v3415, %v3555
          %v3557 = vpop.f32.mrf.mxu0
          %v3558 = vadd.f32 %v3417, %v3557
          %3559 = vdwg.mxu0
          %v3560 = vand.u32 %v2645, 4294901760
          %v3561 = vsub.f32 %v2645, %v3560
          %v3562 = vand.u32 %v3561, 4294901760
          %3563 = vmatprep.subr.mxu0 %v3562
          %v3564 = vand.u32 %v2644, 4294901760
          %v3565 = vsub.f32 %v2644, %v3564
          %v3566 = vand.u32 %v3565, 4294901760
          %3567 = vmatpush1.msra.mxu0 %v3566
          %v3568 = vand.u32 %v2643, 4294901760
          %v3569 = vsub.f32 %v2643, %v3568
          %v3570 = vand.u32 %v3569, 4294901760
          %3571 = vmatprep.subr.mxu0 %v3570
          %v3572 = vand.u32 %v2642, 4294901760
          %v3573 = vsub.f32 %v2642, %v3572
          %v3574 = vand.u32 %v3573, 4294901760
          %3575 = vmatpush1.msra.mxu0 %v3574
          %v3576 = vand.u32 %v2641, 4294901760
          %v3577 = vsub.f32 %v2641, %v3576
          %v3578 = vand.u32 %v3577, 4294901760
          %3579 = vmatprep.subr.mxu0 %v3578
          %v3580 = vand.u32 %v2640, 4294901760
          %v3581 = vsub.f32 %v2640, %v3580
          %v3582 = vand.u32 %v3581, 4294901760
          %3583 = vmatpush1.msra.mxu0 %v3582
          %v3584 = vand.u32 %v2639, 4294901760
          %v3585 = vsub.f32 %v2639, %v3584
          %v3586 = vand.u32 %v3585, 4294901760
          %3587 = vmatprep.subr.mxu0 %v3586
          %v3588 = vand.u32 %v2638, 4294901760
          %v3589 = vsub.f32 %v2638, %v3588
          %v3590 = vand.u32 %v3589, 4294901760
          %3591 = vmatpush1.msra.mxu0 %v3590
          %v3592 = vand.u32 %v2637, 4294901760
          %v3593 = vsub.f32 %v2637, %v3592
          %v3594 = vand.u32 %v3593, 4294901760
          %3595 = vmatprep.subr.mxu0 %v3594
          %v3596 = vand.u32 %v2636, 4294901760
          %v3597 = vsub.f32 %v2636, %v3596
          %v3598 = vand.u32 %v3597, 4294901760
          %3599 = vmatpush1.msra.mxu0 %v3598
          %v3600 = vand.u32 %v2635, 4294901760
          %v3601 = vsub.f32 %v2635, %v3600
          %v3602 = vand.u32 %v3601, 4294901760
          %3603 = vmatprep.subr.mxu0 %v3602
          %v3604 = vand.u32 %v2634, 4294901760
          %v3605 = vsub.f32 %v2634, %v3604
          %v3606 = vand.u32 %v3605, 4294901760
          %3607 = vmatpush1.msra.mxu0 %v3606
          %v3608 = vand.u32 %v2633, 4294901760
          %v3609 = vsub.f32 %v2633, %v3608
          %v3610 = vand.u32 %v3609, 4294901760
          %3611 = vmatprep.subr.mxu0 %v3610
          %v3612 = vand.u32 %v2632, 4294901760
          %v3613 = vsub.f32 %v2632, %v3612
          %v3614 = vand.u32 %v3613, 4294901760
          %3615 = vmatpush1.msra.mxu0 %v3614
          %v3616 = vand.u32 %v2631, 4294901760
          %v3617 = vsub.f32 %v2631, %v3616
          %v3618 = vand.u32 %v3617, 4294901760
          %3619 = vmatprep.subr.mxu0 %v3618
          %v3620 = vand.u32 %v2630, 4294901760
          %v3621 = vsub.f32 %v2630, %v3620
          %v3622 = vand.u32 %v3621, 4294901760
          %3623 = vmatpush1.msra.mxu0 %v3622
          %v3624 = vand.u32 %v2629, 4294901760
          %v3625 = vsub.f32 %v2629, %v3624
          %v3626 = vand.u32 %v3625, 4294901760
          %3627 = vmatprep.subr.mxu0 %v3626
          %v3628 = vand.u32 %v2628, 4294901760
          %v3629 = vsub.f32 %v2628, %v3628
          %v3630 = vand.u32 %v3629, 4294901760
          %3631 = vmatpush1.msra.mxu0 %v3630
          %v3632 = vand.u32 %v2627, 4294901760
          %v3633 = vsub.f32 %v2627, %v3632
          %v3634 = vand.u32 %v3633, 4294901760
          %3635 = vmatprep.subr.mxu0 %v3634
          %v3636 = vand.u32 %v2626, 4294901760
          %v3637 = vsub.f32 %v2626, %v3636
          %v3638 = vand.u32 %v3637, 4294901760
          %3639 = vmatpush1.msra.mxu0 %v3638
          %v3640 = vand.u32 %v2625, 4294901760
          %v3641 = vsub.f32 %v2625, %v3640
          %v3642 = vand.u32 %v3641, 4294901760
          %3643 = vmatprep.subr.mxu0 %v3642
          %v3644 = vand.u32 %v2624, 4294901760
          %v3645 = vsub.f32 %v2624, %v3644
          %v3646 = vand.u32 %v3645, 4294901760
          %3647 = vmatpush1.msra.mxu0 %v3646
          %v3648 = vand.u32 %v2623, 4294901760
          %v3649 = vsub.f32 %v2623, %v3648
          %v3650 = vand.u32 %v3649, 4294901760
          %3651 = vmatprep.subr.mxu0 %v3650
          %v3652 = vand.u32 %v2622, 4294901760
          %v3653 = vsub.f32 %v2622, %v3652
          %v3654 = vand.u32 %v3653, 4294901760
          %3655 = vmatpush1.msra.mxu0 %v3654
          %v3656 = vand.u32 %v2621, 4294901760
          %v3657 = vsub.f32 %v2621, %v3656
          %v3658 = vand.u32 %v3657, 4294901760
          %3659 = vmatprep.subr.mxu0 %v3658
          %v3660 = vand.u32 %v2620, 4294901760
          %v3661 = vsub.f32 %v2620, %v3660
          %v3662 = vand.u32 %v3661, 4294901760
          %3663 = vmatpush1.msra.mxu0 %v3662
          %v3664 = vand.u32 %v2619, 4294901760
          %v3665 = vsub.f32 %v2619, %v3664
          %v3666 = vand.u32 %v3665, 4294901760
          %3667 = vmatprep.subr.mxu0 %v3666
          %v3668 = vand.u32 %v2618, 4294901760
          %v3669 = vsub.f32 %v2618, %v3668
          %v3670 = vand.u32 %v3669, 4294901760
          %3671 = vmatpush1.msra.mxu0 %v3670
          %v3672 = vand.u32 %v2617, 4294901760
          %v3673 = vsub.f32 %v2617, %v3672
          %v3674 = vand.u32 %v3673, 4294901760
          %3675 = vmatprep.subr.mxu0 %v3674
          %v3676 = vand.u32 %v2616, 4294901760
          %v3677 = vsub.f32 %v2616, %v3676
          %v3678 = vand.u32 %v3677, 4294901760
          %3679 = vmatpush1.msra.mxu0 %v3678
          %v3680 = vand.u32 %v2615, 4294901760
          %v3681 = vsub.f32 %v2615, %v3680
          %v3682 = vand.u32 %v3681, 4294901760
          %3683 = vmatprep.subr.mxu0 %v3682
          %v3684 = vand.u32 %v2614, 4294901760
          %v3685 = vsub.f32 %v2614, %v3684
          %v3686 = vand.u32 %v3685, 4294901760
          %3687 = vmatpush1.msra.mxu0 %v3686
          %v3688 = vand.u32 %v2677, 4294901760
          %v3689 = vsub.f32 %v2677, %v3688
          %v3690 = vand.u32 %v3689, 4294901760
          %3691 = vmatprep.subr.mxu0 %v3690
          %v3692 = vand.u32 %v2676, 4294901760
          %v3693 = vsub.f32 %v2676, %v3692
          %v3694 = vand.u32 %v3693, 4294901760
          %3695 = vmatpush2.msra.mxu0 %v3694
          %v3696 = vand.u32 %v2675, 4294901760
          %v3697 = vsub.f32 %v2675, %v3696
          %v3698 = vand.u32 %v3697, 4294901760
          %3699 = vmatprep.subr.mxu0 %v3698
          %v3700 = vand.u32 %v2674, 4294901760
          %v3701 = vsub.f32 %v2674, %v3700
          %v3702 = vand.u32 %v3701, 4294901760
          %3703 = vmatpush2.msra.mxu0 %v3702
          %v3704 = vand.u32 %v2673, 4294901760
          %v3705 = vsub.f32 %v2673, %v3704
          %v3706 = vand.u32 %v3705, 4294901760
          %3707 = vmatprep.subr.mxu0 %v3706
          %v3708 = vand.u32 %v2672, 4294901760
          %v3709 = vsub.f32 %v2672, %v3708
          %v3710 = vand.u32 %v3709, 4294901760
          %3711 = vmatpush2.msra.mxu0 %v3710
          %v3712 = vand.u32 %v2671, 4294901760
          %v3713 = vsub.f32 %v2671, %v3712
          %v3714 = vand.u32 %v3713, 4294901760
          %3715 = vmatprep.subr.mxu0 %v3714
          %v3716 = vand.u32 %v2670, 4294901760
          %v3717 = vsub.f32 %v2670, %v3716
          %v3718 = vand.u32 %v3717, 4294901760
          %3719 = vmatpush2.msra.mxu0 %v3718
          %v3720 = vand.u32 %v2669, 4294901760
          %v3721 = vsub.f32 %v2669, %v3720
          %v3722 = vand.u32 %v3721, 4294901760
          %3723 = vmatprep.subr.mxu0 %v3722
          %v3724 = vand.u32 %v2668, 4294901760
          %v3725 = vsub.f32 %v2668, %v3724
          %v3726 = vand.u32 %v3725, 4294901760
          %3727 = vmatpush2.msra.mxu0 %v3726
          %v3728 = vand.u32 %v2667, 4294901760
          %v3729 = vsub.f32 %v2667, %v3728
          %v3730 = vand.u32 %v3729, 4294901760
          %3731 = vmatprep.subr.mxu0 %v3730
          %v3732 = vand.u32 %v2666, 4294901760
          %v3733 = vsub.f32 %v2666, %v3732
          %v3734 = vand.u32 %v3733, 4294901760
          %3735 = vmatpush2.msra.mxu0 %v3734
          %v3736 = vand.u32 %v2665, 4294901760
          %v3737 = vsub.f32 %v2665, %v3736
          %v3738 = vand.u32 %v3737, 4294901760
          %3739 = vmatprep.subr.mxu0 %v3738
          %v3740 = vand.u32 %v2664, 4294901760
          %v3741 = vsub.f32 %v2664, %v3740
          %v3742 = vand.u32 %v3741, 4294901760
          %3743 = vmatpush2.msra.mxu0 %v3742
          %v3744 = vand.u32 %v2663, 4294901760
          %v3745 = vsub.f32 %v2663, %v3744
          %v3746 = vand.u32 %v3745, 4294901760
          %3747 = vmatprep.subr.mxu0 %v3746
          %v3748 = vand.u32 %v2662, 4294901760
          %v3749 = vsub.f32 %v2662, %v3748
          %v3750 = vand.u32 %v3749, 4294901760
          %3751 = vmatpush2.msra.mxu0 %v3750
          %v3752 = vand.u32 %v2661, 4294901760
          %v3753 = vsub.f32 %v2661, %v3752
          %v3754 = vand.u32 %v3753, 4294901760
          %3755 = vmatprep.subr.mxu0 %v3754
          %v3756 = vand.u32 %v2660, 4294901760
          %v3757 = vsub.f32 %v2660, %v3756
          %v3758 = vand.u32 %v3757, 4294901760
          %3759 = vmatpush2.msra.mxu0 %v3758
          %v3760 = vand.u32 %v2659, 4294901760
          %v3761 = vsub.f32 %v2659, %v3760
          %v3762 = vand.u32 %v3761, 4294901760
          %3763 = vmatprep.subr.mxu0 %v3762
          %v3764 = vand.u32 %v2658, 4294901760
          %v3765 = vsub.f32 %v2658, %v3764
          %v3766 = vand.u32 %v3765, 4294901760
          %3767 = vmatpush2.msra.mxu0 %v3766
          %v3768 = vand.u32 %v2657, 4294901760
          %v3769 = vsub.f32 %v2657, %v3768
          %v3770 = vand.u32 %v3769, 4294901760
          %3771 = vmatprep.subr.mxu0 %v3770
          %v3772 = vand.u32 %v2656, 4294901760
          %v3773 = vsub.f32 %v2656, %v3772
          %v3774 = vand.u32 %v3773, 4294901760
          %3775 = vmatpush2.msra.mxu0 %v3774
          %v3776 = vand.u32 %v2655, 4294901760
          %v3777 = vsub.f32 %v2655, %v3776
          %v3778 = vand.u32 %v3777, 4294901760
          %3779 = vmatprep.subr.mxu0 %v3778
          %v3780 = vand.u32 %v2654, 4294901760
          %v3781 = vsub.f32 %v2654, %v3780
          %v3782 = vand.u32 %v3781, 4294901760
          %3783 = vmatpush2.msra.mxu0 %v3782
          %v3784 = vand.u32 %v2653, 4294901760
          %v3785 = vsub.f32 %v2653, %v3784
          %v3786 = vand.u32 %v3785, 4294901760
          %3787 = vmatprep.subr.mxu0 %v3786
          %v3788 = vand.u32 %v2652, 4294901760
          %v3789 = vsub.f32 %v2652, %v3788
          %v3790 = vand.u32 %v3789, 4294901760
          %3791 = vmatpush2.msra.mxu0 %v3790
          %v3792 = vand.u32 %v2651, 4294901760
          %v3793 = vsub.f32 %v2651, %v3792
          %v3794 = vand.u32 %v3793, 4294901760
          %3795 = vmatprep.subr.mxu0 %v3794
          %v3796 = vand.u32 %v2650, 4294901760
          %v3797 = vsub.f32 %v2650, %v3796
          %v3798 = vand.u32 %v3797, 4294901760
          %3799 = vmatpush2.msra.mxu0 %v3798
          %v3800 = vand.u32 %v2649, 4294901760
          %v3801 = vsub.f32 %v2649, %v3800
          %v3802 = vand.u32 %v3801, 4294901760
          %3803 = vmatprep.subr.mxu0 %v3802
          %v3804 = vand.u32 %v2648, 4294901760
          %v3805 = vsub.f32 %v2648, %v3804
          %v3806 = vand.u32 %v3805, 4294901760
          %3807 = vmatpush2.msra.mxu0 %v3806
          %v3808 = vand.u32 %v2647, 4294901760
          %v3809 = vsub.f32 %v2647, %v3808
          %v3810 = vand.u32 %v3809, 4294901760
          %3811 = vmatprep.subr.mxu0 %v3810
          %v3812 = vand.u32 %v2646, 4294901760
          %v3813 = vsub.f32 %v2646, %v3812
          %v3814 = vand.u32 %v3813, 4294901760
          %3815 = vmatpush2.msra.mxu0 %v3814
          %v3816 = vand.u32 %v2613, 4294901760
          %3817 = vmatprep.mubr.f32.mxu0 %v3816
          %v3818 = vand.u32 %v2612, 4294901760
          %3819 = vmatmul.mubr.f32.gmra.mxu0 %v3818
          %v3820 = vpop.f32.mrf.mxu0
          %v3821 = vadd.f32 %v3556, %v3820
          %v3822 = vpop.f32.mrf.mxu0
          %v3823 = vadd.f32 %v3558, %v3822
          %3824 = vdwg.mxu0
          %v3825 = vand.u32 %v2645, 4294901760
          %3826 = vmatprep.subr.mxu0 %v3825
          %v3827 = vand.u32 %v2644, 4294901760
          %3828 = vmatpush1.msra.mxu0 %v3827
          %v3829 = vand.u32 %v2643, 4294901760
          %3830 = vmatprep.subr.mxu0 %v3829
          %v3831 = vand.u32 %v2642, 4294901760
          %3832 = vmatpush1.msra.mxu0 %v3831
          %v3833 = vand.u32 %v2641, 4294901760
          %3834 = vmatprep.subr.mxu0 %v3833
          %v3835 = vand.u32 %v2640, 4294901760
          %3836 = vmatpush1.msra.mxu0 %v3835
          %v3837 = vand.u32 %v2639, 4294901760
          %3838 = vmatprep.subr.mxu0 %v3837
          %v3839 = vand.u32 %v2638, 4294901760
          %3840 = vmatpush1.msra.mxu0 %v3839
          %v3841 = vand.u32 %v2637, 4294901760
          %3842 = vmatprep.subr.mxu0 %v3841
          %v3843 = vand.u32 %v2636, 4294901760
          %3844 = vmatpush1.msra.mxu0 %v3843
          %v3845 = vand.u32 %v2635, 4294901760
          %3846 = vmatprep.subr.mxu0 %v3845
          %v3847 = vand.u32 %v2634, 4294901760
          %3848 = vmatpush1.msra.mxu0 %v3847
          %v3849 = vand.u32 %v2633, 4294901760
          %3850 = vmatprep.subr.mxu0 %v3849
          %v3851 = vand.u32 %v2632, 4294901760
          %3852 = vmatpush1.msra.mxu0 %v3851
          %v3853 = vand.u32 %v2631, 4294901760
          %3854 = vmatprep.subr.mxu0 %v3853
          %v3855 = vand.u32 %v2630, 4294901760
          %3856 = vmatpush1.msra.mxu0 %v3855
          %v3857 = vand.u32 %v2629, 4294901760
          %3858 = vmatprep.subr.mxu0 %v3857
          %v3859 = vand.u32 %v2628, 4294901760
          %3860 = vmatpush1.msra.mxu0 %v3859
          %v3861 = vand.u32 %v2627, 4294901760
          %3862 = vmatprep.subr.mxu0 %v3861
          %v3863 = vand.u32 %v2626, 4294901760
          %3864 = vmatpush1.msra.mxu0 %v3863
          %v3865 = vand.u32 %v2625, 4294901760
          %3866 = vmatprep.subr.mxu0 %v3865
          %v3867 = vand.u32 %v2624, 4294901760
          %3868 = vmatpush1.msra.mxu0 %v3867
          %v3869 = vand.u32 %v2623, 4294901760
          %3870 = vmatprep.subr.mxu0 %v3869
          %v3871 = vand.u32 %v2622, 4294901760
          %3872 = vmatpush1.msra.mxu0 %v3871
          %v3873 = vand.u32 %v2621, 4294901760
          %3874 = vmatprep.subr.mxu0 %v3873
          %v3875 = vand.u32 %v2620, 4294901760
          %3876 = vmatpush1.msra.mxu0 %v3875
          %v3877 = vand.u32 %v2619, 4294901760
          %3878 = vmatprep.subr.mxu0 %v3877
          %v3879 = vand.u32 %v2618, 4294901760
          %3880 = vmatpush1.msra.mxu0 %v3879
          %v3881 = vand.u32 %v2617, 4294901760
          %3882 = vmatprep.subr.mxu0 %v3881
          %v3883 = vand.u32 %v2616, 4294901760
          %3884 = vmatpush1.msra.mxu0 %v3883
          %v3885 = vand.u32 %v2615, 4294901760
          %3886 = vmatprep.subr.mxu0 %v3885
          %v3887 = vand.u32 %v2614, 4294901760
          %3888 = vmatpush1.msra.mxu0 %v3887
          %v3889 = vand.u32 %v2677, 4294901760
          %3890 = vmatprep.subr.mxu0 %v3889
          %v3891 = vand.u32 %v2676, 4294901760
          %3892 = vmatpush2.msra.mxu0 %v3891
          %v3893 = vand.u32 %v2675, 4294901760
          %3894 = vmatprep.subr.mxu0 %v3893
          %v3895 = vand.u32 %v2674, 4294901760
          %3896 = vmatpush2.msra.mxu0 %v3895
          %v3897 = vand.u32 %v2673, 4294901760
          %3898 = vmatprep.subr.mxu0 %v3897
          %v3899 = vand.u32 %v2672, 4294901760
          %3900 = vmatpush2.msra.mxu0 %v3899
          %v3901 = vand.u32 %v2671, 4294901760
          %3902 = vmatprep.subr.mxu0 %v3901
          %v3903 = vand.u32 %v2670, 4294901760
          %3904 = vmatpush2.msra.mxu0 %v3903
          %v3905 = vand.u32 %v2669, 4294901760
          %3906 = vmatprep.subr.mxu0 %v3905
          %v3907 = vand.u32 %v2668, 4294901760
          %3908 = vmatpush2.msra.mxu0 %v3907
          %v3909 = vand.u32 %v2667, 4294901760
          %3910 = vmatprep.subr.mxu0 %v3909
          %v3911 = vand.u32 %v2666, 4294901760
          %3912 = vmatpush2.msra.mxu0 %v3911
          %v3913 = vand.u32 %v2665, 4294901760
          %3914 = vmatprep.subr.mxu0 %v3913
          %v3915 = vand.u32 %v2664, 4294901760
          %3916 = vmatpush2.msra.mxu0 %v3915
          %v3917 = vand.u32 %v2663, 4294901760
          %3918 = vmatprep.subr.mxu0 %v3917
          %v3919 = vand.u32 %v2662, 4294901760
          %3920 = vmatpush2.msra.mxu0 %v3919
          %v3921 = vand.u32 %v2661, 4294901760
          %3922 = vmatprep.subr.mxu0 %v3921
          %v3923 = vand.u32 %v2660, 4294901760
          %3924 = vmatpush2.msra.mxu0 %v3923
          %v3925 = vand.u32 %v2659, 4294901760
          %3926 = vmatprep.subr.mxu0 %v3925
          %v3927 = vand.u32 %v2658, 4294901760
          %3928 = vmatpush2.msra.mxu0 %v3927
          %v3929 = vand.u32 %v2657, 4294901760
          %3930 = vmatprep.subr.mxu0 %v3929
          %v3931 = vand.u32 %v2656, 4294901760
          %3932 = vmatpush2.msra.mxu0 %v3931
          %v3933 = vand.u32 %v2655, 4294901760
          %3934 = vmatprep.subr.mxu0 %v3933
          %v3935 = vand.u32 %v2654, 4294901760
          %3936 = vmatpush2.msra.mxu0 %v3935
          %v3937 = vand.u32 %v2653, 4294901760
          %3938 = vmatprep.subr.mxu0 %v3937
          %v3939 = vand.u32 %v2652, 4294901760
          %3940 = vmatpush2.msra.mxu0 %v3939
          %v3941 = vand.u32 %v2651, 4294901760
          %3942 = vmatprep.subr.mxu0 %v3941
          %v3943 = vand.u32 %v2650, 4294901760
          %3944 = vmatpush2.msra.mxu0 %v3943
          %v3945 = vand.u32 %v2649, 4294901760
          %3946 = vmatprep.subr.mxu0 %v3945
          %v3947 = vand.u32 %v2648, 4294901760
          %3948 = vmatpush2.msra.mxu0 %v3947
          %v3949 = vand.u32 %v2647, 4294901760
          %3950 = vmatprep.subr.mxu0 %v3949
          %v3951 = vand.u32 %v2646, 4294901760
          %3952 = vmatpush2.msra.mxu0 %v3951
          %v3953 = vand.u32 %v2613, 4294901760
          %3954 = vmatprep.mubr.f32.mxu0 %v3953
          %v3955 = vand.u32 %v2612, 4294901760
          %3956 = vmatmul.mubr.f32.gmra.mxu0 %v3955
          %v3957 = vpop.f32.mrf.mxu0
          %v3958 = vadd.f32 %v3821, %v3957
          %v3959 = vpop.f32.mrf.mxu0
          %v3960 = vadd.f32 %v3823, %v3959
          %3961 = vdwg.mxu0
          %3962 = vst [vmem:[#allocation2] sm:$0xff] %v3958
          %3963 = vst [vmem:[#allocation2 + $0x8] sm:$0xff] %v3960
        $region59: #{tpu_custom_call.1} parent=39 // pred_fallthru
          _
        %s3964 = sand.u32 %s174, 1
        %s3965 = scalar_lea.sflag [#allocation5], %s3964
        %s3966 = sand.u32 %s174, 1
        %s3967 = smul.addr %s3966, 16
        %s3968 = scalar_lea.vmem [#allocation6], %s3967
        // Predicated region
        $region60: #{tpu_custom_call.1} parent=39 // pred_check
          %p3969 = pneg %p184
        $region61: #{tpu_custom_call.1} parent=39 // pred_check_branch
          %3971 = sbr.rel (%p3969) target = $region63
        $region62: #{tpu_custom_call.1} parent=39 // pred_region
          %s3973 = ssub.s32 256, 256
          %3974 = vsyncadd %s3965, %s3973
          %s3975 = smul.addr %s26, 2
          %s3976 = smul.addr %s27, 4
          %s3977 = sadd.s32 %s3975, %s3976
          %s3978 = smul.addr %s3977, 128
          %s3979 = scalar_lea.hbm %s5, %s3978
          %s3981 = sshll.u32 %s3968, 4
          %s3982 = int_to_ptr.vmem [resolvable:$true] %s3981
          %3984 = dma.vmem_to_hbm [thread:$0]  %s3982, 256, %s3979, %s3965
        $region63: #{tpu_custom_call.1} parent=39 // pred_fallthru
          _
      $region40: #{tpu_custom_call.1} parent=5 // pred_fallthru
        _
      %p3985 = scmp.le.s32.totalorder 2, %s17
      // Predicated region
      $region64: #{tpu_custom_call.1} parent=5 // pred_check
        %p3986 = pneg %p3985
      $region65: #{tpu_custom_call.1} parent=5 // pred_check_branch
        %3988 = sbr.rel (%p3986) target = $region67
      $region66: #{tpu_custom_call.1} parent=5 // pred_region
        %s3989 = ssub.s32 %s17, 2
        // Predicated region
        $region68: #{tpu_custom_call.1} parent=66 // pred_check
          %p3990 = pneg %p190
        $region69: #{tpu_custom_call.1} parent=66 // pred_check_branch
          %3992 = sbr.rel (%p3990) target = $region71
        $region70: #{tpu_custom_call.1} parent=66 // pred_region
          %s3993 = sand.u32 %s175, 1
          %s3994 = scalar_lea.sflag [#allocation5], %s3993
          %s3995 = sand.u32 %s175, 1
          %s3996 = smul.addr %s3995, 16
          %s3997 = scalar_lea.vmem [#allocation6], %s3996
          %3998 = dma.done %s3994, 256
        $region71: #{tpu_custom_call.1} parent=66 // pred_fallthru
          _
      $region67: #{tpu_custom_call.1} parent=5 // pred_fallthru
        _
    $region6: #{tpu_custom_call.1} parent=1 // loop_footer
      %s21 = sadd.s32 1, %s17
    $region7: #{tpu_custom_call.1} parent=1 // loop_footer_branch
      %16 = sbr.rel target = $region3
    $region8: #{tpu_custom_call.1} parent=1 // loop_exit
      _
    %3999 = vsyncpa [#allocation4], 1
    %s4000 = scalar_lea.sflag [#allocation4], 1
    %4001 = vsyncpa %s4000, 1
    %4002 = vsyncpa [#allocation5], 1
    %s4003 = scalar_lea.sflag [#allocation5], 1
    %4004 = vsyncpa %s4003, 1

</llo_original>
